<compile_context>
chip_gen: v6e
topology: v6e:2x2x1
jax: 0.10.0
libtpu: 0.0.40
codegen_flags: <defaults>
</compile_context>

<pallas_src>
import functools
import math

import jax
import jax.numpy as jnp
from jax import lax
from jax.experimental import pallas as pl
from jax.experimental.pallas import tpu as pltpu

_SLOPE = 0.2  # leaky_relu negative slope


def _leaky_relu(x):
    return jnp.where(x >= 0, x, _SLOPE * x)


def _fused_resnet_block_kernel(*refs, nb, H, W, Cin, Ch, Cout,
                               learned_shortcut, mm_dtype):
    """out = shortcut(x) + 0.1 * conv_1(actvn(conv_0(actvn(x)))), fully fused.

    refs = (x, w0r, b0, w1r, b1, [ws], out, xp_scratch, d1p_scratch)
    """
    if learned_shortcut:
        (x_ref, w0_ref, b0_ref, w1_ref, b1_ref, ws_ref,
         out_ref, xp_scr, d1p_scr) = refs
    else:
        (x_ref, w0_ref, b0_ref, w1_ref, b1_ref,
         out_ref, xp_scr, d1p_scr) = refs
        ws_ref = None

    M = nb * H * W

    # Zero both padded scratches (borders must be zero; interiors get fully
    # overwritten below).  Done every step so correctness never depends on
    # which TensorCore ran grid step 0; the scratches are only a few KiB.
    xp_scr[...] = jnp.zeros_like(xp_scr)
    d1p_scr[...] = jnp.zeros_like(d1p_scr)

    x = x_ref[...].astype(jnp.float32)                 # (nb, H, W, Cin)

    # ---- conv_0(leaky_relu(x)): in-VMEM zero padding + one im2col matmul ----
    xp_scr[:, 1:H + 1, 1:W + 1, :] = _leaky_relu(x)
    cols0 = jnp.concatenate(
        [xp_scr[:, dy:dy + H, dx:dx + W, :]
         for dy in range(3) for dx in range(3)],
        axis=-1).reshape(M, 9 * Cin)                   # (M, 9*Cin)
    d1 = jnp.dot(cols0.astype(mm_dtype), w0_ref[...].astype(mm_dtype),
                 preferred_element_type=jnp.float32)
    d1 = d1 + b0_ref[...].astype(jnp.float32)          # (M, Ch)

    # ---- conv_1(leaky_relu(d1)): d1 never leaves VMEM ----
    d1p_scr[:, 1:H + 1, 1:W + 1, :] = _leaky_relu(d1).reshape(nb, H, W, Ch)
    cols1 = jnp.concatenate(
        [d1p_scr[:, dy:dy + H, dx:dx + W, :]
         for dy in range(3) for dx in range(3)],
        axis=-1).reshape(M, 9 * Ch)                    # (M, 9*Ch)
    d2 = jnp.dot(cols1.astype(mm_dtype), w1_ref[...].astype(mm_dtype),
                 preferred_element_type=jnp.float32)
    d2 = d2 + b1_ref[...].astype(jnp.float32)          # (M, Cout)

    # ---- shortcut (pre-activation x) + residual ----
    xm = x.reshape(M, Cin)
    if learned_shortcut:
        xs = jnp.dot(xm.astype(mm_dtype), ws_ref[...].astype(mm_dtype),
                     preferred_element_type=jnp.float32)
    else:
        xs = xm                                        # requires Cin == Cout

    out = xs + 0.1 * d2
    # Note: the store keeps the (.., W, Cout) layout (minor-dim-preserving
    # reshapes only, which are known to lower); folding W into the lane dim
    # for fully dense stores needs a minor-dim relayout and the store path is
    # no longer dominant after fusion.
    out_ref[...] = out.reshape(nb, H, W, Cout).astype(out_ref.dtype)


def _pick_batch_block(N, per_image_bytes, budget_bytes=8 << 20):
    """Largest batch block that (a) divides N, (b) keeps >=2 grid steps so both
    v7x TensorCores stay busy, (c) stays under a conservative VMEM budget
    (fits comfortably in v7x's 64 MiB / default scoped limits with
    double-buffering)."""
    best = 1
    for nb in range(1, N + 1):
        if N % nb or nb * per_image_bytes > budget_bytes:
            continue
        if N // nb >= 2:
            best = nb
    return best


def resnet_block_forward_nhwc(x_nhwc, params, *, use_bf16_matmul=False):
    """Fused ResnetBlock forward; input/output NHWC (no layout transposes)."""
    N, H, W, Cin = x_nhwc.shape
    w0, b0 = params["w0"], params["b0"]
    w1, b1 = params["w1"], params["b1"]
    ws = params.get("ws", None)
    learned = ws is not None
    Ch = w0.shape[-1]
    Cout = w1.shape[-1]
    dtype = x_nhwc.dtype
    if not learned:
        assert Cin == Cout, "identity shortcut requires fin == fout"

    # Weights flattened for the im2col matmuls (tiny, one-time XLA reshapes).
    w0r = w0.reshape(9 * Cin, Ch)
    w1r = w1.reshape(9 * Ch, Cout)
    b0r = b0.reshape(1, Ch)
    b1r = b1.reshape(1, Cout)

    # Rough f32 working-set estimate per image (blocks x2 buffers, scratches,
    # im2col live values) used to cap the batch block.
    per_img = 4 * (2 * H * W * Cin + 2 * H * W * Cout
                   + (H + 2) * (W + 2) * (Cin + Ch)
                   + 10 * H * W * (Cin + Ch) + H * W * Cout)
    nb = _pick_batch_block(N, per_img)
    grid = (N // nb,)

    mm_dtype = jnp.bfloat16 if use_bf16_matmul else jnp.float32

    kernel = functools.partial(
        _fused_resnet_block_kernel, nb=nb, H=H, W=W, Cin=Cin, Ch=Ch,
        Cout=Cout, learned_shortcut=learned, mm_dtype=mm_dtype)

    in_specs = [
        pl.BlockSpec((nb, H, W, Cin), lambda n: (n, 0, 0, 0)),
        pl.BlockSpec((9 * Cin, Ch), lambda n: (0, 0)),
        pl.BlockSpec((1, Ch), lambda n: (0, 0)),
        pl.BlockSpec((9 * Ch, Cout), lambda n: (0, 0)),
        pl.BlockSpec((1, Cout), lambda n: (0, 0)),
    ]
    args = [x_nhwc, w0r, b0r, w1r, b1r]
    if learned:
        in_specs.append(pl.BlockSpec((Cin, Cout), lambda n: (0, 0)))
        args.append(ws)

    out = pl.pallas_call(
        kernel,
        out_shape=jax.ShapeDtypeStruct((N, H, W, Cout), dtype),
        grid_spec=pltpu.PrefetchScalarGridSpec(
            num_scalar_prefetch=0,
            grid=grid,
            in_specs=in_specs,
            out_specs=pl.BlockSpec((nb, H, W, Cout), lambda n: (n, 0, 0, 0)),
            scratch_shapes=[
                pltpu.VMEM((nb, H + 2, W + 2, Cin), jnp.float32),  # padded actvn(x)
                pltpu.VMEM((nb, H + 2, W + 2, Ch), jnp.float32),   # padded actvn(dx1)
            ],
        ),
        compiler_params=pltpu.CompilerParams(
            dimension_semantics=("parallel",)),
    )(*args)
    return out


def resnet_block_forward(x_nchw, params, *, use_bf16_matmul=False):
    """Pallas ResnetBlock.forward with the PyTorch NCHW interface."""
    x = jnp.transpose(x_nchw, (0, 2, 3, 1))            # NHWC
    y = resnet_block_forward_nhwc(x, params, use_bf16_matmul=use_bf16_matmul)
    return jnp.transpose(y, (0, 3, 1, 2))               # back to NCHW


def init_resnet_block_params(key, fin, fout, fhidden=None, is_bias=True,
                             dtype=jnp.float32):
    """Deterministic synthetic parameters, PyTorch-default-like uniform init."""
    if fhidden is None:
        fhidden = min(fin, fout)
    keys = jax.random.split(key, 5)

    def u(k, shape, fan_in):
        bound = 1.0 / math.sqrt(fan_in)
        return jax.random.uniform(k, shape, dtype, -bound, bound)

    params = {
        "w0": u(keys[0], (3, 3, fin, fhidden), fin * 9),       # HWIO
        "b0": u(keys[1], (fhidden,), fin * 9),
        "w1": u(keys[2], (3, 3, fhidden, fout), fhidden * 9),  # HWIO
        "b1": (u(keys[3], (fout,), fhidden * 9) if is_bias
               else jnp.zeros((fout,), dtype)),
    }
    if fin != fout:                                            # learned shortcut
        params["ws"] = u(keys[4], (fin, fout), fin)            # 1x1 conv (I, O)
    return params


def reference_forward(x_nchw, params):
    """Pure-JAX reference matching the PyTorch module semantics (NCHW)."""
    def conv(x, w_hwio, b, pad):
        w_oihw = jnp.transpose(w_hwio, (3, 2, 0, 1))
        y = lax.conv_general_dilated(
            x, w_oihw, window_strides=(1, 1),
            padding=[(pad, pad), (pad, pad)],
            dimension_numbers=("NCHW", "OIHW", "NCHW"))
        if b is not None:
            y = y + b[None, :, None, None]
        return y

    if "ws" in params:
        xs = conv(x_nchw, params["ws"][None, None], None, 0)
    else:
        xs = x_nchw
    dx = conv(_leaky_relu(x_nchw), params["w0"], params["b0"], 1)
    dx = conv(_leaky_relu(dx), params["w1"], params["b1"], 1)
    return xs + 0.1 * dx


if __name__ == "__main__":
    key = jax.random.PRNGKey(0)
    kx, kp = jax.random.split(key)

    # fin != fout -> learned shortcut path
    N, fin, fout, H, W = 2, 4, 8, 16, 16
    x = jax.random.normal(kx, (N, fin, H, W), jnp.float32)
    params = init_resnet_block_params(kp, fin, fout, is_bias=True)

    out = jax.block_until_ready(resnet_block_forward(x, params))
    ref = reference_forward(x, params)
    assert out.shape == (N, fout, H, W), out.shape
    assert jnp.allclose(out, ref, atol=1e-4, rtol=1e-4), \
        float(jnp.max(jnp.abs(out - ref)))

    # fin == fout -> identity shortcut path (no ws tensor DMA'd at all)
    params_id = init_resnet_block_params(jax.random.PRNGKey(1), fout, fout)
    x2 = jax.random.normal(jax.random.PRNGKey(2), (N, fout, H, W), jnp.float32)
    out2 = jax.block_until_ready(resnet_block_forward(x2, params_id))
    ref2 = reference_forward(x2, params_id)
    assert jnp.allclose(out2, ref2, atol=1e-4, rtol=1e-4), \
        float(jnp.max(jnp.abs(out2 - ref2)))

    print("KERNEL_OK")
</pallas_src>

<mosaic_0001>
module attributes {stable_mosaic.version = 11 : i64} {
  func.func @_fused_resnet_block_kernel(%arg0: i32, %arg1: memref<1x16x16x4xf32, #tpu.memory_space<vmem>>, %arg2: memref<36x4xf32, #tpu.memory_space<vmem>>, %arg3: memref<1x4xf32, #tpu.memory_space<vmem>>, %arg4: memref<36x8xf32, #tpu.memory_space<vmem>>, %arg5: memref<1x8xf32, #tpu.memory_space<vmem>>, %arg6: memref<4x8xf32, #tpu.memory_space<vmem>>, %arg7: memref<1x16x16x8xf32, #tpu.memory_space<vmem>>, %arg8: memref<1x18x18x4xf32, #tpu.memory_space<vmem>>, %arg9: memref<1x18x18x4xf32, #tpu.memory_space<vmem>>) attributes {dimension_semantics = [#tpu.dimension_semantics<parallel>], iteration_bounds = array<i64: 2>, scalar_prefetch = 0 : i64, scratch_operands = 2 : i64, tpu.core_type = #tpu.core_type<tc>, window_params = [{transform_indices = @transform_0, window_bounds = array<i64: 1, 16, 16, 4>}, {pipeline_mode = #tpu.pipeline_mode<synchronous>, transform_indices = @transform_1, window_bounds = array<i64: 36, 4>}, {pipeline_mode = #tpu.pipeline_mode<synchronous>, transform_indices = @transform_2, window_bounds = array<i64: 1, 4>}, {pipeline_mode = #tpu.pipeline_mode<synchronous>, transform_indices = @transform_3, window_bounds = array<i64: 36, 8>}, {pipeline_mode = #tpu.pipeline_mode<synchronous>, transform_indices = @transform_4, window_bounds = array<i64: 1, 8>}, {pipeline_mode = #tpu.pipeline_mode<synchronous>, transform_indices = @transform_5, window_bounds = array<i64: 4, 8>}, {transform_indices = @transform_6, window_bounds = array<i64: 1, 16, 16, 8>}]} {
    %cst = arith.constant 0.000000e+00 : f32
    %0 = vector.broadcast %cst : f32 to vector<1x18x18x4xf32>
    %c0 = arith.constant 0 : index
    %c0_0 = arith.constant 0 : index
    %c0_1 = arith.constant 0 : index
    %c0_2 = arith.constant 0 : index
    %1 = vector.load %arg8[%c0, %c0_0, %c0_1, %c0_2] : memref<1x18x18x4xf32, #tpu.memory_space<vmem>>, vector<1x18x18x4xf32>
    tpu.vector_store %arg8[%c0, %c0_0, %c0_1, %c0_2], %0 {strides = array<i32>} : memref<1x18x18x4xf32, #tpu.memory_space<vmem>>, vector<1x18x18x4xf32>,
    %cst_3 = arith.constant 0.000000e+00 : f32
    %2 = vector.broadcast %cst_3 : f32 to vector<1x18x18x4xf32>
    %c0_4 = arith.constant 0 : index
    %c0_5 = arith.constant 0 : index
    %c0_6 = arith.constant 0 : index
    %c0_7 = arith.constant 0 : index
    %3 = vector.load %arg9[%c0_4, %c0_5, %c0_6, %c0_7] : memref<1x18x18x4xf32, #tpu.memory_space<vmem>>, vector<1x18x18x4xf32>
    tpu.vector_store %arg9[%c0_4, %c0_5, %c0_6, %c0_7], %2 {strides = array<i32>} : memref<1x18x18x4xf32, #tpu.memory_space<vmem>>, vector<1x18x18x4xf32>,
    %c0_8 = arith.constant 0 : index
    %c0_9 = arith.constant 0 : index
    %c0_10 = arith.constant 0 : index
    %c0_11 = arith.constant 0 : index
    %4 = vector.load %arg1[%c0_8, %c0_9, %c0_10, %c0_11] : memref<1x16x16x4xf32, #tpu.memory_space<vmem>>, vector<1x16x16x4xf32>
    %cst_12 = arith.constant 0.000000e+00 : f32
    %5 = vector.broadcast %cst_12 : f32 to vector<1x16x16x4xf32>
    %6 = arith.cmpf oge, %4, %5 : vector<1x16x16x4xf32>
    %cst_13 = arith.constant 2.000000e-01 : f32
    %7 = vector.broadcast %cst_13 : f32 to vector<1x16x16x4xf32>
    %8 = arith.mulf %7, %4 : vector<1x16x16x4xf32>
    %9 = arith.select %6, %4, %8 : vector<1x16x16x4xi1>, vector<1x16x16x4xf32>
    %c0_14 = arith.constant 0 : index
    %c1 = arith.constant 1 : index
    %c1_15 = arith.constant 1 : index
    %c0_16 = arith.constant 0 : index
    %10 = vector.load %arg8[%c0_14, %c1, %c1_15, %c0_16] : memref<1x18x18x4xf32, #tpu.memory_space<vmem>>, vector<1x16x16x4xf32>
    tpu.vector_store %arg8[%c0_14, %c1, %c1_15, %c0_16], %9 {strides = array<i32>} : memref<1x18x18x4xf32, #tpu.memory_space<vmem>>, vector<1x16x16x4xf32>,
    %c0_17 = arith.constant 0 : index
    %c0_18 = arith.constant 0 : index
    %c0_19 = arith.constant 0 : index
    %c0_20 = arith.constant 0 : index
    %11 = vector.load %arg8[%c0_17, %c0_18, %c0_19, %c0_20] : memref<1x18x18x4xf32, #tpu.memory_space<vmem>>, vector<1x16x16x4xf32>
    %c0_21 = arith.constant 0 : index
    %c0_22 = arith.constant 0 : index
    %c1_23 = arith.constant 1 : index
    %c0_24 = arith.constant 0 : index
    %12 = vector.load %arg8[%c0_21, %c0_22, %c1_23, %c0_24] : memref<1x18x18x4xf32, #tpu.memory_space<vmem>>, vector<1x16x16x4xf32>
    %c0_25 = arith.constant 0 : index
    %c0_26 = arith.constant 0 : index
    %c2 = arith.constant 2 : index
    %c0_27 = arith.constant 0 : index
    %13 = vector.load %arg8[%c0_25, %c0_26, %c2, %c0_27] : memref<1x18x18x4xf32, #tpu.memory_space<vmem>>, vector<1x16x16x4xf32>
    %c0_28 = arith.constant 0 : index
    %c1_29 = arith.constant 1 : index
    %c0_30 = arith.constant 0 : index
    %c0_31 = arith.constant 0 : index
    %14 = vector.load %arg8[%c0_28, %c1_29, %c0_30, %c0_31] : memref<1x18x18x4xf32, #tpu.memory_space<vmem>>, vector<1x16x16x4xf32>
    %c0_32 = arith.constant 0 : index
    %c1_33 = arith.constant 1 : index
    %c1_34 = arith.constant 1 : index
    %c0_35 = arith.constant 0 : index
    %15 = vector.load %arg8[%c0_32, %c1_33, %c1_34, %c0_35] : memref<1x18x18x4xf32, #tpu.memory_space<vmem>>, vector<1x16x16x4xf32>
    %c0_36 = arith.constant 0 : index
    %c1_37 = arith.constant 1 : index
    %c2_38 = arith.constant 2 : index
    %c0_39 = arith.constant 0 : index
    %16 = vector.load %arg8[%c0_36, %c1_37, %c2_38, %c0_39] : memref<1x18x18x4xf32, #tpu.memory_space<vmem>>, vector<1x16x16x4xf32>
    %c0_40 = arith.constant 0 : index
    %c2_41 = arith.constant 2 : index
    %c0_42 = arith.constant 0 : index
    %c0_43 = arith.constant 0 : index
    %17 = vector.load %arg8[%c0_40, %c2_41, %c0_42, %c0_43] : memref<1x18x18x4xf32, #tpu.memory_space<vmem>>, vector<1x16x16x4xf32>
    %c0_44 = arith.constant 0 : index
    %c2_45 = arith.constant 2 : index
    %c1_46 = arith.constant 1 : index
    %c0_47 = arith.constant 0 : index
    %18 = vector.load %arg8[%c0_44, %c2_45, %c1_46, %c0_47] : memref<1x18x18x4xf32, #tpu.memory_space<vmem>>, vector<1x16x16x4xf32>
    %c0_48 = arith.constant 0 : index
    %c2_49 = arith.constant 2 : index
    %c2_50 = arith.constant 2 : index
    %c0_51 = arith.constant 0 : index
    %19 = vector.load %arg8[%c0_48, %c2_49, %c2_50, %c0_51] : memref<1x18x18x4xf32, #tpu.memory_space<vmem>>, vector<1x16x16x4xf32>
    %20 = tpu.concatenate %11, %12, %13, %14, %15, %16, %17, %18, %19 in 3 : vector<1x16x16x4xf32>, vector<1x16x16x4xf32>, vector<1x16x16x4xf32>, vector<1x16x16x4xf32>, vector<1x16x16x4xf32>, vector<1x16x16x4xf32>, vector<1x16x16x4xf32>, vector<1x16x16x4xf32>, vector<1x16x16x4xf32> -> vector<1x16x16x36xf32>
    %21 = vector.shape_cast %20 : vector<1x16x16x36xf32> to vector<256x36xf32>
    %c0_52 = arith.constant 0 : index
    %c0_53 = arith.constant 0 : index
    %22 = vector.load %arg2[%c0_52, %c0_53] : memref<36x4xf32, #tpu.memory_space<vmem>>, vector<36x4xf32>
    %cst_54 = arith.constant dense<0.000000e+00> : vector<256x4xf32>
    %23 = tpu.matmul %21, %22, %cst_54 {dimension_numbers = #tpu.dot_dimension_numbers<[1], [0], [0], [1], [0, 0, 1, 1], [], []>} : vector<256x36xf32>, vector<36x4xf32>, vector<256x4xf32> -> vector<256x4xf32>
    %c0_55 = arith.constant 0 : index
    %c0_56 = arith.constant 0 : index
    %24 = vector.load %arg3[%c0_55, %c0_56] : memref<1x4xf32, #tpu.memory_space<vmem>>, vector<1x4xf32>
    %25 = vector.broadcast %24 : vector<1x4xf32> to vector<256x4xf32>
    %26 = arith.addf %23, %25 : vector<256x4xf32>
    %cst_57 = arith.constant 0.000000e+00 : f32
    %27 = vector.broadcast %cst_57 : f32 to vector<256x4xf32>
    %28 = arith.cmpf oge, %26, %27 : vector<256x4xf32>
    %cst_58 = arith.constant 2.000000e-01 : f32
    %29 = vector.broadcast %cst_58 : f32 to vector<256x4xf32>
    %30 = arith.mulf %29, %26 : vector<256x4xf32>
    %31 = arith.select %28, %26, %30 : vector<256x4xi1>, vector<256x4xf32>
    %32 = vector.shape_cast %31 : vector<256x4xf32> to vector<1x16x16x4xf32>
    %c0_59 = arith.constant 0 : index
    %c1_60 = arith.constant 1 : index
    %c1_61 = arith.constant 1 : index
    %c0_62 = arith.constant 0 : index
    %33 = vector.load %arg9[%c0_59, %c1_60, %c1_61, %c0_62] : memref<1x18x18x4xf32, #tpu.memory_space<vmem>>, vector<1x16x16x4xf32>
    tpu.vector_store %arg9[%c0_59, %c1_60, %c1_61, %c0_62], %32 {strides = array<i32>} : memref<1x18x18x4xf32, #tpu.memory_space<vmem>>, vector<1x16x16x4xf32>,
    %c0_63 = arith.constant 0 : index
    %c0_64 = arith.constant 0 : index
    %c0_65 = arith.constant 0 : index
    %c0_66 = arith.constant 0 : index
    %34 = vector.load %arg9[%c0_63, %c0_64, %c0_65, %c0_66] : memref<1x18x18x4xf32, #tpu.memory_space<vmem>>, vector<1x16x16x4xf32>
    %c0_67 = arith.constant 0 : index
    %c0_68 = arith.constant 0 : index
    %c1_69 = arith.constant 1 : index
    %c0_70 = arith.constant 0 : index
    %35 = vector.load %arg9[%c0_67, %c0_68, %c1_69, %c0_70] : memref<1x18x18x4xf32, #tpu.memory_space<vmem>>, vector<1x16x16x4xf32>
    %c0_71 = arith.constant 0 : index
    %c0_72 = arith.constant 0 : index
    %c2_73 = arith.constant 2 : index
    %c0_74 = arith.constant 0 : index
    %36 = vector.load %arg9[%c0_71, %c0_72, %c2_73, %c0_74] : memref<1x18x18x4xf32, #tpu.memory_space<vmem>>, vector<1x16x16x4xf32>
    %c0_75 = arith.constant 0 : index
    %c1_76 = arith.constant 1 : index
    %c0_77 = arith.constant 0 : index
    %c0_78 = arith.constant 0 : index
    %37 = vector.load %arg9[%c0_75, %c1_76, %c0_77, %c0_78] : memref<1x18x18x4xf32, #tpu.memory_space<vmem>>, vector<1x16x16x4xf32>
    %c0_79 = arith.constant 0 : index
    %c1_80 = arith.constant 1 : index
    %c1_81 = arith.constant 1 : index
    %c0_82 = arith.constant 0 : index
    %38 = vector.load %arg9[%c0_79, %c1_80, %c1_81, %c0_82] : memref<1x18x18x4xf32, #tpu.memory_space<vmem>>, vector<1x16x16x4xf32>
    %c0_83 = arith.constant 0 : index
    %c1_84 = arith.constant 1 : index
    %c2_85 = arith.constant 2 : index
    %c0_86 = arith.constant 0 : index
    %39 = vector.load %arg9[%c0_83, %c1_84, %c2_85, %c0_86] : memref<1x18x18x4xf32, #tpu.memory_space<vmem>>, vector<1x16x16x4xf32>
    %c0_87 = arith.constant 0 : index
    %c2_88 = arith.constant 2 : index
    %c0_89 = arith.constant 0 : index
    %c0_90 = arith.constant 0 : index
    %40 = vector.load %arg9[%c0_87, %c2_88, %c0_89, %c0_90] : memref<1x18x18x4xf32, #tpu.memory_space<vmem>>, vector<1x16x16x4xf32>
    %c0_91 = arith.constant 0 : index
    %c2_92 = arith.constant 2 : index
    %c1_93 = arith.constant 1 : index
    %c0_94 = arith.constant 0 : index
    %41 = vector.load %arg9[%c0_91, %c2_92, %c1_93, %c0_94] : memref<1x18x18x4xf32, #tpu.memory_space<vmem>>, vector<1x16x16x4xf32>
    %c0_95 = arith.constant 0 : index
    %c2_96 = arith.constant 2 : index
    %c2_97 = arith.constant 2 : index
    %c0_98 = arith.constant 0 : index
    %42 = vector.load %arg9[%c0_95, %c2_96, %c2_97, %c0_98] : memref<1x18x18x4xf32, #tpu.memory_space<vmem>>, vector<1x16x16x4xf32>
    %43 = tpu.concatenate %34, %35, %36, %37, %38, %39, %40, %41, %42 in 3 : vector<1x16x16x4xf32>, vector<1x16x16x4xf32>, vector<1x16x16x4xf32>, vector<1x16x16x4xf32>, vector<1x16x16x4xf32>, vector<1x16x16x4xf32>, vector<1x16x16x4xf32>, vector<1x16x16x4xf32>, vector<1x16x16x4xf32> -> vector<1x16x16x36xf32>
    %44 = vector.shape_cast %43 : vector<1x16x16x36xf32> to vector<256x36xf32>
    %c0_99 = arith.constant 0 : index
    %c0_100 = arith.constant 0 : index
    %45 = vector.load %arg4[%c0_99, %c0_100] : memref<36x8xf32, #tpu.memory_space<vmem>>, vector<36x8xf32>
    %cst_101 = arith.constant dense<0.000000e+00> : vector<256x8xf32>
    %46 = tpu.matmul %44, %45, %cst_101 {dimension_numbers = #tpu.dot_dimension_numbers<[1], [0], [0], [1], [0, 0, 1, 1], [], []>} : vector<256x36xf32>, vector<36x8xf32>, vector<256x8xf32> -> vector<256x8xf32>
    %c0_102 = arith.constant 0 : index
    %c0_103 = arith.constant 0 : index
    %47 = vector.load %arg5[%c0_102, %c0_103] : memref<1x8xf32, #tpu.memory_space<vmem>>, vector<1x8xf32>
    %48 = vector.broadcast %47 : vector<1x8xf32> to vector<256x8xf32>
    %49 = arith.addf %46, %48 : vector<256x8xf32>
    %50 = vector.shape_cast %4 : vector<1x16x16x4xf32> to vector<256x4xf32>
    %c0_104 = arith.constant 0 : index
    %c0_105 = arith.constant 0 : index
    %51 = vector.load %arg6[%c0_104, %c0_105] : memref<4x8xf32, #tpu.memory_space<vmem>>, vector<4x8xf32>
    %cst_106 = arith.constant dense<0.000000e+00> : vector<256x8xf32>
    %52 = tpu.matmul %50, %51, %cst_106 {dimension_numbers = #tpu.dot_dimension_numbers<[1], [0], [0], [1], [0, 0, 1, 1], [], []>} : vector<256x4xf32>, vector<4x8xf32>, vector<256x8xf32> -> vector<256x8xf32>
    %cst_107 = arith.constant 1.000000e-01 : f32
    %53 = vector.broadcast %cst_107 : f32 to vector<256x8xf32>
    %54 = arith.mulf %53, %49 : vector<256x8xf32>
    %55 = arith.addf %52, %54 : vector<256x8xf32>
    %56 = vector.shape_cast %55 : vector<256x8xf32> to vector<1x16x16x8xf32>
    %c0_108 = arith.constant 0 : index
    %c0_109 = arith.constant 0 : index
    %c0_110 = arith.constant 0 : index
    %c0_111 = arith.constant 0 : index
    %57 = vector.load %arg7[%c0_108, %c0_109, %c0_110, %c0_111] : memref<1x16x16x8xf32, #tpu.memory_space<vmem>>, vector<1x16x16x8xf32>
    tpu.vector_store %arg7[%c0_108, %c0_109, %c0_110, %c0_111], %56 {strides = array<i32>} : memref<1x16x16x8xf32, #tpu.memory_space<vmem>>, vector<1x16x16x8xf32>,
    return
  }
  func.func @transform_0(%arg0: i32) -> (i32, i32, i32, i32) {
    %c0_i32 = arith.constant 0 : i32
    %c0_i32_0 = arith.constant 0 : i32
    %c0_i32_1 = arith.constant 0 : i32
    %c0_i32_2 = arith.constant 0 : i32
    return %arg0, %c0_i32, %c0_i32_0, %c0_i32_1 : i32, i32, i32, i32
  }
  func.func @transform_1(%arg0: i32) -> (i32, i32) {
    %c0_i32 = arith.constant 0 : i32
    %c0_i32_0 = arith.constant 0 : i32
    %c0_i32_1 = arith.constant 0 : i32
    return %c0_i32, %c0_i32_0 : i32, i32
  }
  func.func @transform_2(%arg0: i32) -> (i32, i32) {
    %c0_i32 = arith.constant 0 : i32
    %c0_i32_0 = arith.constant 0 : i32
    %c0_i32_1 = arith.constant 0 : i32
    return %c0_i32, %c0_i32_0 : i32, i32
  }
  func.func @transform_3(%arg0: i32) -> (i32, i32) {
    %c0_i32 = arith.constant 0 : i32
    %c0_i32_0 = arith.constant 0 : i32
    %c0_i32_1 = arith.constant 0 : i32
    return %c0_i32, %c0_i32_0 : i32, i32
  }
  func.func @transform_4(%arg0: i32) -> (i32, i32) {
    %c0_i32 = arith.constant 0 : i32
    %c0_i32_0 = arith.constant 0 : i32
    %c0_i32_1 = arith.constant 0 : i32
    return %c0_i32, %c0_i32_0 : i32, i32
  }
  func.func @transform_5(%arg0: i32) -> (i32, i32) {
    %c0_i32 = arith.constant 0 : i32
    %c0_i32_0 = arith.constant 0 : i32
    %c0_i32_1 = arith.constant 0 : i32
    return %c0_i32, %c0_i32_0 : i32, i32
  }
  func.func @transform_6(%arg0: i32) -> (i32, i32, i32, i32) {
    %c0_i32 = arith.constant 0 : i32
    %c0_i32_0 = arith.constant 0 : i32
    %c0_i32_1 = arith.constant 0 : i32
    %c0_i32_2 = arith.constant 0 : i32
    return %arg0, %c0_i32, %c0_i32_0, %c0_i32_1 : i32, i32, i32, i32
  }
}

</mosaic_0001>

<llo_original>
// kernel: tpu_custom_call.1
$region0: #{tpu_custom_call.1}
  #allocation0 [shape = 'u32[]', space=smem, size = 0x4, offset = 0x4, fixed_abs, tag = 'smem constant byte address 0x4 - core index']
  #allocation1 [shape = 'u32[144,128]{1,0:T(1,128)}', space=vmem, size = 0x12000, scoped, tag = 'internal scratch']
  #allocation2 [shape = 'f32[1,18,18,4]{3,2,1,0:T(8,128)}', space=vmem, size = 0x36000, scoped, tag = 'scratch operand']
  #allocation3 [shape = 'f32[1,18,18,4]{3,2,1,0:T(8,128)}', space=vmem, size = 0x36000, scoped, tag = 'scratch operand']
  %s0 = inlined_call_operand.vmem [shape: f32[2,16,16,4], index: 0, kind: input, shape index: {}]
  %s1 = inlined_call_operand.vmem [shape: f32[36,4], index: 1, kind: input, shape index: {}]
  %s2 = inlined_call_operand.vmem [shape: f32[1,4], index: 2, kind: input, shape index: {}]
  %s3 = inlined_call_operand.vmem [shape: f32[36,8], index: 3, kind: input, shape index: {}]
  %s4 = inlined_call_operand.vmem [shape: f32[1,8], index: 4, kind: input, shape index: {}]
  %s5 = inlined_call_operand.vmem [shape: f32[4,8], index: 5, kind: input, shape index: {}]
  %s6 = inlined_call_operand.vmem [shape: f32[2,16,16,8], index: 6, kind: output, shape index: {}]
  %s7 = sld [smem:[#allocation0]]
  $region57: #{tpu_custom_call.1} parent=0
    _
  %s9 = ssub.s32 1, %s7
  %s10 = scalar_select 0, %s9, %s7
  loop: start=0, step=1, limit=4
  $region2: #{tpu_custom_call.1} parent=0 // loop_pre_header
    _
  $region3: #{tpu_custom_call.1} parent=0 // loop_header
    %s12 = sphi 0, %s16
    %p13 = scmp.ge.s32.totalorder %s12, 4
    %s22 = sphi 0, %s24
    %s25 = sphi 0, %s22
    %s26 = sphi 0, %s25
    %s42 = sphi 0, %s26
    %s46 = sphi 0, %s46
    %s48 = sphi 0, %s46
    %s49 = sphi 0, %s48
    %s63 = sphi 0, %s49
    %s67 = sphi 0, %s67
    %s69 = sphi 0, %s67
    %s70 = sphi 0, %s69
    %s84 = sphi 0, %s70
    %s88 = sphi 0, %s88
    %s90 = sphi 0, %s88
    %s91 = sphi 0, %s90
    %s105 = sphi 0, %s91
    %s109 = sphi 0, %s109
    %s111 = sphi 0, %s109
    %s112 = sphi 0, %s111
    %s126 = sphi 0, %s112
    %s130 = sphi 0, %s130
    %s132 = sphi 0, %s130
    %s133 = sphi 0, %s132
    %s147 = sphi 0, %s133
    %s153 = sphi 0, %s155
    %s156 = sphi 0, %s153
    %s157 = sphi 0, %s156
    %s173 = sphi 0, %s157
  $region4: #{tpu_custom_call.1} parent=0 // loop_header_branch
    %15 = sbr.rel (%p13) target = $region8
  $region5: #{tpu_custom_call.1} parent=0 // loop_body
    %s17 = ssub.s32 %s12, 1
    %s18 = ssub.s32 %s12, 2
    %s19 = sadd.s32 %s12, 1
    %s20 = ssub.s32 %s12, %s19
    %p21 = scmp.eq.s32.totalorder %s20, 0
    %s23 = sadd.s32 %s22, 1
    %s24 = scalar_select %p21, %s22, %s23
    %p27 = pneg %p21
    %p28 = scmp.eq.s32.totalorder %s12, 1
    %p29 = por %p27, %p28
    %p30 = scmp.ne.s32.totalorder %s22, %s25
    %p31 = scmp.eq.s32.totalorder %s12, 0
    %p32 = por %p30, %p31
    %p33 = scmp.ne.s32.totalorder %s22, %s25
    %p34 = scmp.eq.s32.totalorder %s17, 1
    %p35 = por %p33, %p34
    %p36 = scmp.ne.s32.totalorder %s25, %s26
    %p37 = scmp.eq.s32.totalorder %s17, 0
    %p38 = por %p36, %p37
    %p39 = scmp.ne.s32.totalorder %s25, %s26
    %p40 = scmp.eq.s32.totalorder %s18, 1
    %p41 = por %p39, %p40
    %p43 = scmp.ne.s32.totalorder %s26, %s42
    %p44 = scmp.eq.s32.totalorder %s18, 0
    %p45 = por %p43, %p44
    %s47 = sadd.s32 %s46, 1
    %p50 = scmp.eq.s32.totalorder %s12, 1
    %p51 = scmp.ne.s32.totalorder %s46, %s48
    %p52 = scmp.eq.s32.totalorder %s12, 0
    %p53 = por %p51, %p52
    %p54 = scmp.ne.s32.totalorder %s46, %s48
    %p55 = scmp.eq.s32.totalorder %s17, 1
    %p56 = por %p54, %p55
    %p57 = scmp.ne.s32.totalorder %s48, %s49
    %p58 = scmp.eq.s32.totalorder %s17, 0
    %p59 = por %p57, %p58
    %p60 = scmp.ne.s32.totalorder %s48, %s49
    %p61 = scmp.eq.s32.totalorder %s18, 1
    %p62 = por %p60, %p61
    %p64 = scmp.ne.s32.totalorder %s49, %s63
    %p65 = scmp.eq.s32.totalorder %s18, 0
    %p66 = por %p64, %p65
    %s68 = sadd.s32 %s67, 1
    %p71 = scmp.eq.s32.totalorder %s12, 1
    %p72 = scmp.ne.s32.totalorder %s67, %s69
    %p73 = scmp.eq.s32.totalorder %s12, 0
    %p74 = por %p72, %p73
    %p75 = scmp.ne.s32.totalorder %s67, %s69
    %p76 = scmp.eq.s32.totalorder %s17, 1
    %p77 = por %p75, %p76
    %p78 = scmp.ne.s32.totalorder %s69, %s70
    %p79 = scmp.eq.s32.totalorder %s17, 0
    %p80 = por %p78, %p79
    %p81 = scmp.ne.s32.totalorder %s69, %s70
    %p82 = scmp.eq.s32.totalorder %s18, 1
    %p83 = por %p81, %p82
    %p85 = scmp.ne.s32.totalorder %s70, %s84
    %p86 = scmp.eq.s32.totalorder %s18, 0
    %p87 = por %p85, %p86
    %s89 = sadd.s32 %s88, 1
    %p92 = scmp.eq.s32.totalorder %s12, 1
    %p93 = scmp.ne.s32.totalorder %s88, %s90
    %p94 = scmp.eq.s32.totalorder %s12, 0
    %p95 = por %p93, %p94
    %p96 = scmp.ne.s32.totalorder %s88, %s90
    %p97 = scmp.eq.s32.totalorder %s17, 1
    %p98 = por %p96, %p97
    %p99 = scmp.ne.s32.totalorder %s90, %s91
    %p100 = scmp.eq.s32.totalorder %s17, 0
    %p101 = por %p99, %p100
    %p102 = scmp.ne.s32.totalorder %s90, %s91
    %p103 = scmp.eq.s32.totalorder %s18, 1
    %p104 = por %p102, %p103
    %p106 = scmp.ne.s32.totalorder %s91, %s105
    %p107 = scmp.eq.s32.totalorder %s18, 0
    %p108 = por %p106, %p107
    %s110 = sadd.s32 %s109, 1
    %p113 = scmp.eq.s32.totalorder %s12, 1
    %p114 = scmp.ne.s32.totalorder %s109, %s111
    %p115 = scmp.eq.s32.totalorder %s12, 0
    %p116 = por %p114, %p115
    %p117 = scmp.ne.s32.totalorder %s109, %s111
    %p118 = scmp.eq.s32.totalorder %s17, 1
    %p119 = por %p117, %p118
    %p120 = scmp.ne.s32.totalorder %s111, %s112
    %p121 = scmp.eq.s32.totalorder %s17, 0
    %p122 = por %p120, %p121
    %p123 = scmp.ne.s32.totalorder %s111, %s112
    %p124 = scmp.eq.s32.totalorder %s18, 1
    %p125 = por %p123, %p124
    %p127 = scmp.ne.s32.totalorder %s112, %s126
    %p128 = scmp.eq.s32.totalorder %s18, 0
    %p129 = por %p127, %p128
    %s131 = sadd.s32 %s130, 1
    %p134 = scmp.eq.s32.totalorder %s12, 1
    %p135 = scmp.ne.s32.totalorder %s130, %s132
    %p136 = scmp.eq.s32.totalorder %s12, 0
    %p137 = por %p135, %p136
    %p138 = scmp.ne.s32.totalorder %s130, %s132
    %p139 = scmp.eq.s32.totalorder %s17, 1
    %p140 = por %p138, %p139
    %p141 = scmp.ne.s32.totalorder %s132, %s133
    %p142 = scmp.eq.s32.totalorder %s17, 0
    %p143 = por %p141, %p142
    %p144 = scmp.ne.s32.totalorder %s132, %s133
    %p145 = scmp.eq.s32.totalorder %s18, 1
    %p146 = por %p144, %p145
    %p148 = scmp.ne.s32.totalorder %s133, %s147
    %p149 = scmp.eq.s32.totalorder %s18, 0
    %p150 = por %p148, %p149
    %s151 = ssub.s32 %s12, %s19
    %p152 = scmp.eq.s32.totalorder %s151, 0
    %s154 = sadd.s32 %s153, 1
    %s155 = scalar_select %p152, %s153, %s154
    %p158 = pneg %p152
    %p159 = scmp.eq.s32.totalorder %s12, 1
    %p160 = por %p158, %p159
    %p161 = scmp.ne.s32.totalorder %s153, %s156
    %p162 = scmp.eq.s32.totalorder %s12, 0
    %p163 = por %p161, %p162
    %p164 = scmp.ne.s32.totalorder %s153, %s156
    %p165 = scmp.eq.s32.totalorder %s17, 1
    %p166 = por %p164, %p165
    %p167 = scmp.ne.s32.totalorder %s156, %s157
    %p168 = scmp.eq.s32.totalorder %s17, 0
    %p169 = por %p167, %p168
    %p170 = scmp.ne.s32.totalorder %s156, %s157
    %p171 = scmp.eq.s32.totalorder %s18, 1
    %p172 = por %p170, %p171
    %p174 = scmp.ne.s32.totalorder %s157, %s173
    %p175 = scmp.eq.s32.totalorder %s18, 0
    %p176 = por %p174, %p175
    %p177 = scmp.le.s32.totalorder 1, %s12
    %p178 = scmp.lt.s32.totalorder %s12, 3
    %p179 = pnand %p177, %p178
    %p180 = pneg %p179
    // Predicated region
    $region9: #{tpu_custom_call.1} parent=5 // pred_check
      _
    $region10: #{tpu_custom_call.1} parent=5 // pred_check_branch
      %182 = sbr.rel (%p179) target = $region12
    $region11: #{tpu_custom_call.1} parent=5 // pred_region
      %s183 = ssub.s32 %s12, 1
      // Predicated region
      $region13: #{tpu_custom_call.1} parent=11 // pred_check
        %p184 = pneg %p59
      $region14: #{tpu_custom_call.1} parent=11 // pred_check_branch
        %186 = sbr.rel (%p184) target = $region16
      $region15: #{tpu_custom_call.1} parent=11 // pred_region
        _
      $region16: #{tpu_custom_call.1} parent=11 // pred_fallthru
        _
      // Predicated region
      $region17: #{tpu_custom_call.1} parent=11 // pred_check
        %p187 = pneg %p80
      $region18: #{tpu_custom_call.1} parent=11 // pred_check_branch
        %189 = sbr.rel (%p187) target = $region20
      $region19: #{tpu_custom_call.1} parent=11 // pred_region
        _
      $region20: #{tpu_custom_call.1} parent=11 // pred_fallthru
        _
      // Predicated region
      $region21: #{tpu_custom_call.1} parent=11 // pred_check
        %p190 = pneg %p101
      $region22: #{tpu_custom_call.1} parent=11 // pred_check_branch
        %192 = sbr.rel (%p190) target = $region24
      $region23: #{tpu_custom_call.1} parent=11 // pred_region
        _
      $region24: #{tpu_custom_call.1} parent=11 // pred_fallthru
        _
      // Predicated region
      $region25: #{tpu_custom_call.1} parent=11 // pred_check
        %p193 = pneg %p122
      $region26: #{tpu_custom_call.1} parent=11 // pred_check_branch
        %195 = sbr.rel (%p193) target = $region28
      $region27: #{tpu_custom_call.1} parent=11 // pred_region
        _
      $region28: #{tpu_custom_call.1} parent=11 // pred_fallthru
        _
      // Predicated region
      $region29: #{tpu_custom_call.1} parent=11 // pred_check
        %p196 = pneg %p143
      $region30: #{tpu_custom_call.1} parent=11 // pred_check_branch
        %198 = sbr.rel (%p196) target = $region32
      $region31: #{tpu_custom_call.1} parent=11 // pred_region
        _
      $region32: #{tpu_custom_call.1} parent=11 // pred_fallthru
        _
    $region12: #{tpu_custom_call.1} parent=5 // pred_fallthru
      _
    %p199 = scmp.lt.s32.totalorder %s12, 2
    // Predicated region
    $region33: #{tpu_custom_call.1} parent=5 // pred_check
      %p200 = pneg %p199
    $region34: #{tpu_custom_call.1} parent=5 // pred_check_branch
      %202 = sbr.rel (%p200) target = $region36
    $region35: #{tpu_custom_call.1} parent=5 // pred_region
      // Predicated region
      $region37: #{tpu_custom_call.1} parent=35 // pred_check
        %p203 = pneg %p32
      $region38: #{tpu_custom_call.1} parent=35 // pred_check_branch
        %205 = sbr.rel (%p203) target = $region40
      $region39: #{tpu_custom_call.1} parent=35 // pred_region
        %p206 = scmp.lt.s32.totalorder %s12, 1
        %s207 = scalar_select %p206, %s12, 1
        %s208 = smul.addr %s207, 32
        %s209 = smul.addr %s208, 8
        %s210 = scalar_lea.vmem %s0, %s209
      $region40: #{tpu_custom_call.1} parent=35 // pred_fallthru
        _
    $region36: #{tpu_custom_call.1} parent=5 // pred_fallthru
      _
    %p211 = scmp.le.s32.totalorder 1, %s12
    %p212 = scmp.lt.s32.totalorder %s12, 3
    %p213 = pnand %p211, %p212
    %p214 = pneg %p213
    // Predicated region
    $region41: #{tpu_custom_call.1} parent=5 // pred_check
      _
    $region42: #{tpu_custom_call.1} parent=5 // pred_check_branch
      %216 = sbr.rel (%p213) target = $region44
    $region43: #{tpu_custom_call.1} parent=5 // pred_region
      %s217 = ssub.s32 %s12, 1
      %p218 = scmp.lt.s32.totalorder %s17, 1
      %s219 = scalar_select %p218, %s17, 1
      %s220 = smul.addr %s219, 32
      %s221 = smul.addr %s220, 8
      %s222 = scalar_lea.vmem %s0, %s221
      %p223 = pneg %p38
      %p224 = pneg %p35
      %p225 = pneg %p59
      %p226 = pneg %p56
      %p227 = pneg %p80
      %p228 = pneg %p77
      %p229 = pneg %p101
      %p230 = pneg %p98
      %p231 = pneg %p122
      %p232 = pneg %p119
      %p233 = pneg %p143
      %p234 = pneg %p140
      %p235 = pneg %p169
      %p236 = pneg %p166
      %p237 = scmp.lt.s32.totalorder %s17, 1
      %s238 = scalar_select %p237, %s17, 1
      %s239 = smul.addr %s238, 32
      %s240 = smul.addr %s239, 8
      %s241 = scalar_lea.vmem %s6, %s240
      %p242 = scmp.lt.s32.totalorder %s17, 1
      %s243 = scalar_select %p242, %s17, 1
      %s244 = smul.addr %s243, 32
      %s245 = smul.addr %s244, 8
      %s246 = scalar_lea.vmem %s0, %s245
      %p247 = scmp.lt.s32.totalorder %s17, 1
      %s248 = scalar_select %p247, %s17, 1
      %s249 = smul.addr %s248, 32
      %s250 = smul.addr %s249, 8
      %s251 = scalar_lea.vmem %s6, %s250
      %vm252 = vcmask 31744
      %253 = vst.msk [vmem:[#allocation2] sm:$0xff] %vm252, 0.0
      %254 = vst.msk [vmem:[#allocation2 + $0x8] sm:$0xff] %vm252, 0.0
      %vm255 = vcmask 25600
      %256 = vst.msk [vmem:[#allocation2 + $0x10] sm:$0x3] %vm255, 0.0
      %257 = vst.msk [vmem:[#allocation2 + $0x18] sm:$0xff] %vm252, 0.0
      %258 = vst.msk [vmem:[#allocation2 + $0x20] sm:$0xff] %vm252, 0.0
      %259 = vst.msk [vmem:[#allocation2 + $0x28] sm:$0x3] %vm255, 0.0
      %260 = vst.msk [vmem:[#allocation2 + $0x30] sm:$0xff] %vm252, 0.0
      %261 = vst.msk [vmem:[#allocation2 + $0x38] sm:$0xff] %vm252, 0.0
      %262 = vst.msk [vmem:[#allocation2 + $0x40] sm:$0x3] %vm255, 0.0
      %263 = vst.msk [vmem:[#allocation2 + $0x48] sm:$0xff] %vm252, 0.0
      %264 = vst.msk [vmem:[#allocation2 + $0x50] sm:$0xff] %vm252, 0.0
      %265 = vst.msk [vmem:[#allocation2 + $0x58] sm:$0x3] %vm255, 0.0
      %266 = vst.msk [vmem:[#allocation2 + $0x60] sm:$0xff] %vm252, 0.0
      %267 = vst.msk [vmem:[#allocation2 + $0x68] sm:$0xff] %vm252, 0.0
      %268 = vst.msk [vmem:[#allocation2 + $0x70] sm:$0x3] %vm255, 0.0
      %269 = vst.msk [vmem:[#allocation2 + $0x78] sm:$0xff] %vm252, 0.0
      %270 = vst.msk [vmem:[#allocation2 + $0x80] sm:$0xff] %vm252, 0.0
      %271 = vst.msk [vmem:[#allocation2 + $0x88] sm:$0x3] %vm255, 0.0
      %272 = vst.msk [vmem:[#allocation2 + $0x90] sm:$0xff] %vm252, 0.0
      %273 = vst.msk [vmem:[#allocation2 + $0x98] sm:$0xff] %vm252, 0.0
      %274 = vst.msk [vmem:[#allocation2 + $0xa0] sm:$0x3] %vm255, 0.0
      %275 = vst.msk [vmem:[#allocation2 + $0xa8] sm:$0xff] %vm252, 0.0
      %276 = vst.msk [vmem:[#allocation2 + $0xb0] sm:$0xff] %vm252, 0.0
      %277 = vst.msk [vmem:[#allocation2 + $0xb8] sm:$0x3] %vm255, 0.0
      %278 = vst.msk [vmem:[#allocation2 + $0xc0] sm:$0xff] %vm252, 0.0
      %279 = vst.msk [vmem:[#allocation2 + $0xc8] sm:$0xff] %vm252, 0.0
      %280 = vst.msk [vmem:[#allocation2 + $0xd0] sm:$0x3] %vm255, 0.0
      %281 = vst.msk [vmem:[#allocation2 + $0xd8] sm:$0xff] %vm252, 0.0
      %282 = vst.msk [vmem:[#allocation2 + $0xe0] sm:$0xff] %vm252, 0.0
      %283 = vst.msk [vmem:[#allocation2 + $0xe8] sm:$0x3] %vm255, 0.0
      %284 = vst.msk [vmem:[#allocation2 + $0xf0] sm:$0xff] %vm252, 0.0
      %285 = vst.msk [vmem:[#allocation2 + $0xf8] sm:$0xff] %vm252, 0.0
      %286 = vst.msk [vmem:[#allocation2 + $0x100] sm:$0x3] %vm255, 0.0
      %287 = vst.msk [vmem:[#allocation2 + $0x108] sm:$0xff] %vm252, 0.0
      %288 = vst.msk [vmem:[#allocation2 + $0x110] sm:$0xff] %vm252, 0.0
      %289 = vst.msk [vmem:[#allocation2 + $0x118] sm:$0x3] %vm255, 0.0
      %290 = vst.msk [vmem:[#allocation2 + $0x120] sm:$0xff] %vm252, 0.0
      %291 = vst.msk [vmem:[#allocation2 + $0x128] sm:$0xff] %vm252, 0.0
      %292 = vst.msk [vmem:[#allocation2 + $0x130] sm:$0x3] %vm255, 0.0
      %293 = vst.msk [vmem:[#allocation2 + $0x138] sm:$0xff] %vm252, 0.0
      %294 = vst.msk [vmem:[#allocation2 + $0x140] sm:$0xff] %vm252, 0.0
      %295 = vst.msk [vmem:[#allocation2 + $0x148] sm:$0x3] %vm255, 0.0
      %296 = vst.msk [vmem:[#allocation2 + $0x150] sm:$0xff] %vm252, 0.0
      %297 = vst.msk [vmem:[#allocation2 + $0x158] sm:$0xff] %vm252, 0.0
      %298 = vst.msk [vmem:[#allocation2 + $0x160] sm:$0x3] %vm255, 0.0
      %299 = vst.msk [vmem:[#allocation2 + $0x168] sm:$0xff] %vm252, 0.0
      %300 = vst.msk [vmem:[#allocation2 + $0x170] sm:$0xff] %vm252, 0.0
      %301 = vst.msk [vmem:[#allocation2 + $0x178] sm:$0x3] %vm255, 0.0
      %302 = vst.msk [vmem:[#allocation2 + $0x180] sm:$0xff] %vm252, 0.0
      %303 = vst.msk [vmem:[#allocation2 + $0x188] sm:$0xff] %vm252, 0.0
      %304 = vst.msk [vmem:[#allocation2 + $0x190] sm:$0x3] %vm255, 0.0
      %305 = vst.msk [vmem:[#allocation2 + $0x198] sm:$0xff] %vm252, 0.0
      %306 = vst.msk [vmem:[#allocation2 + $0x1a0] sm:$0xff] %vm252, 0.0
      %307 = vst.msk [vmem:[#allocation2 + $0x1a8] sm:$0x3] %vm255, 0.0
      %308 = vst.msk [vmem:[#allocation3] sm:$0xff] %vm252, 0.0
      %309 = vst.msk [vmem:[#allocation3 + $0x8] sm:$0xff] %vm252, 0.0
      %310 = vst.msk [vmem:[#allocation3 + $0x10] sm:$0x3] %vm255, 0.0
      %311 = vst.msk [vmem:[#allocation3 + $0x18] sm:$0xff] %vm252, 0.0
      %312 = vst.msk [vmem:[#allocation3 + $0x20] sm:$0xff] %vm252, 0.0
      %313 = vst.msk [vmem:[#allocation3 + $0x28] sm:$0x3] %vm255, 0.0
      %314 = vst.msk [vmem:[#allocation3 + $0x30] sm:$0xff] %vm252, 0.0
      %315 = vst.msk [vmem:[#allocation3 + $0x38] sm:$0xff] %vm252, 0.0
      %316 = vst.msk [vmem:[#allocation3 + $0x40] sm:$0x3] %vm255, 0.0
      %317 = vst.msk [vmem:[#allocation3 + $0x48] sm:$0xff] %vm252, 0.0
      %318 = vst.msk [vmem:[#allocation3 + $0x50] sm:$0xff] %vm252, 0.0
      %319 = vst.msk [vmem:[#allocation3 + $0x58] sm:$0x3] %vm255, 0.0
      %320 = vst.msk [vmem:[#allocation3 + $0x60] sm:$0xff] %vm252, 0.0
      %321 = vst.msk [vmem:[#allocation3 + $0x68] sm:$0xff] %vm252, 0.0
      %322 = vst.msk [vmem:[#allocation3 + $0x70] sm:$0x3] %vm255, 0.0
      %323 = vst.msk [vmem:[#allocation3 + $0x78] sm:$0xff] %vm252, 0.0
      %324 = vst.msk [vmem:[#allocation3 + $0x80] sm:$0xff] %vm252, 0.0
      %325 = vst.msk [vmem:[#allocation3 + $0x88] sm:$0x3] %vm255, 0.0
      %326 = vst.msk [vmem:[#allocation3 + $0x90] sm:$0xff] %vm252, 0.0
      %327 = vst.msk [vmem:[#allocation3 + $0x98] sm:$0xff] %vm252, 0.0
      %328 = vst.msk [vmem:[#allocation3 + $0xa0] sm:$0x3] %vm255, 0.0
      %329 = vst.msk [vmem:[#allocation3 + $0xa8] sm:$0xff] %vm252, 0.0
      %330 = vst.msk [vmem:[#allocation3 + $0xb0] sm:$0xff] %vm252, 0.0
      %331 = vst.msk [vmem:[#allocation3 + $0xb8] sm:$0x3] %vm255, 0.0
      %332 = vst.msk [vmem:[#allocation3 + $0xc0] sm:$0xff] %vm252, 0.0
      %333 = vst.msk [vmem:[#allocation3 + $0xc8] sm:$0xff] %vm252, 0.0
      %334 = vst.msk [vmem:[#allocation3 + $0xd0] sm:$0x3] %vm255, 0.0
      %335 = vst.msk [vmem:[#allocation3 + $0xd8] sm:$0xff] %vm252, 0.0
      %336 = vst.msk [vmem:[#allocation3 + $0xe0] sm:$0xff] %vm252, 0.0
      %337 = vst.msk [vmem:[#allocation3 + $0xe8] sm:$0x3] %vm255, 0.0
      %338 = vst.msk [vmem:[#allocation3 + $0xf0] sm:$0xff] %vm252, 0.0
      %339 = vst.msk [vmem:[#allocation3 + $0xf8] sm:$0xff] %vm252, 0.0
      %340 = vst.msk [vmem:[#allocation3 + $0x100] sm:$0x3] %vm255, 0.0
      %341 = vst.msk [vmem:[#allocation3 + $0x108] sm:$0xff] %vm252, 0.0
      %342 = vst.msk [vmem:[#allocation3 + $0x110] sm:$0xff] %vm252, 0.0
      %343 = vst.msk [vmem:[#allocation3 + $0x118] sm:$0x3] %vm255, 0.0
      %344 = vst.msk [vmem:[#allocation3 + $0x120] sm:$0xff] %vm252, 0.0
      %345 = vst.msk [vmem:[#allocation3 + $0x128] sm:$0xff] %vm252, 0.0
      %346 = vst.msk [vmem:[#allocation3 + $0x130] sm:$0x3] %vm255, 0.0
      %347 = vst.msk [vmem:[#allocation3 + $0x138] sm:$0xff] %vm252, 0.0
      %348 = vst.msk [vmem:[#allocation3 + $0x140] sm:$0xff] %vm252, 0.0
      %349 = vst.msk [vmem:[#allocation3 + $0x148] sm:$0x3] %vm255, 0.0
      %350 = vst.msk [vmem:[#allocation3 + $0x150] sm:$0xff] %vm252, 0.0
      %351 = vst.msk [vmem:[#allocation3 + $0x158] sm:$0xff] %vm252, 0.0
      %352 = vst.msk [vmem:[#allocation3 + $0x160] sm:$0x3] %vm255, 0.0
      %353 = vst.msk [vmem:[#allocation3 + $0x168] sm:$0xff] %vm252, 0.0
      %354 = vst.msk [vmem:[#allocation3 + $0x170] sm:$0xff] %vm252, 0.0
      %355 = vst.msk [vmem:[#allocation3 + $0x178] sm:$0x3] %vm255, 0.0
      %356 = vst.msk [vmem:[#allocation3 + $0x180] sm:$0xff] %vm252, 0.0
      %357 = vst.msk [vmem:[#allocation3 + $0x188] sm:$0xff] %vm252, 0.0
      %358 = vst.msk [vmem:[#allocation3 + $0x190] sm:$0x3] %vm255, 0.0
      %359 = vst.msk [vmem:[#allocation3 + $0x198] sm:$0xff] %vm252, 0.0
      %360 = vst.msk [vmem:[#allocation3 + $0x1a0] sm:$0xff] %vm252, 0.0
      %361 = vst.msk [vmem:[#allocation3 + $0x1a8] sm:$0x3] %vm255, 0.0
      %v362 = vld [vmem:[%s246] sm:$0xff]
      %v363 = vld [vmem:[%s246 + $0x8] sm:$0xff]
      %v364 = vld [vmem:[%s246 + $0x10] sm:$0xff]
      %v365 = vld [vmem:[%s246 + $0x18] sm:$0xff]
      %v366 = vld [vmem:[%s246 + $0x20] sm:$0xff]
      %v367 = vld [vmem:[%s246 + $0x28] sm:$0xff]
      %v368 = vld [vmem:[%s246 + $0x30] sm:$0xff]
      %v369 = vld [vmem:[%s246 + $0x38] sm:$0xff]
      %v370 = vld [vmem:[%s246 + $0x40] sm:$0xff]
      %v371 = vld [vmem:[%s246 + $0x48] sm:$0xff]
      %v372 = vld [vmem:[%s246 + $0x50] sm:$0xff]
      %v373 = vld [vmem:[%s246 + $0x58] sm:$0xff]
      %v374 = vld [vmem:[%s246 + $0x60] sm:$0xff]
      %v375 = vld [vmem:[%s246 + $0x68] sm:$0xff]
      %v376 = vld [vmem:[%s246 + $0x70] sm:$0xff]
      %v377 = vld [vmem:[%s246 + $0x78] sm:$0xff]
      %v378 = vld [vmem:[%s246 + $0x80] sm:$0xff]
      %v379 = vld [vmem:[%s246 + $0x88] sm:$0xff]
      %v380 = vld [vmem:[%s246 + $0x90] sm:$0xff]
      %v381 = vld [vmem:[%s246 + $0x98] sm:$0xff]
      %v382 = vld [vmem:[%s246 + $0xa0] sm:$0xff]
      %v383 = vld [vmem:[%s246 + $0xa8] sm:$0xff]
      %v384 = vld [vmem:[%s246 + $0xb0] sm:$0xff]
      %v385 = vld [vmem:[%s246 + $0xb8] sm:$0xff]
      %v386 = vld [vmem:[%s246 + $0xc0] sm:$0xff]
      %v387 = vld [vmem:[%s246 + $0xc8] sm:$0xff]
      %v388 = vld [vmem:[%s246 + $0xd0] sm:$0xff]
      %v389 = vld [vmem:[%s246 + $0xd8] sm:$0xff]
      %v390 = vld [vmem:[%s246 + $0xe0] sm:$0xff]
      %v391 = vld [vmem:[%s246 + $0xe8] sm:$0xff]
      %v392 = vld [vmem:[%s246 + $0xf0] sm:$0xff]
      %v393 = vld [vmem:[%s246 + $0xf8] sm:$0xff]
      %vm394 = vcmp.ge.f32.partialorder %v362, 0.0
      %vm395 = vcmp.ge.f32.partialorder %v363, 0.0
      %vm396 = vcmp.ge.f32.partialorder %v364, 0.0
      %vm397 = vcmp.ge.f32.partialorder %v365, 0.0
      %vm398 = vcmp.ge.f32.partialorder %v366, 0.0
      %vm399 = vcmp.ge.f32.partialorder %v367, 0.0
      %vm400 = vcmp.ge.f32.partialorder %v368, 0.0
      %vm401 = vcmp.ge.f32.partialorder %v369, 0.0
      %vm402 = vcmp.ge.f32.partialorder %v370, 0.0
      %vm403 = vcmp.ge.f32.partialorder %v371, 0.0
      %vm404 = vcmp.ge.f32.partialorder %v372, 0.0
      %vm405 = vcmp.ge.f32.partialorder %v373, 0.0
      %vm406 = vcmp.ge.f32.partialorder %v374, 0.0
      %vm407 = vcmp.ge.f32.partialorder %v375, 0.0
      %vm408 = vcmp.ge.f32.partialorder %v376, 0.0
      %vm409 = vcmp.ge.f32.partialorder %v377, 0.0
      %vm410 = vcmp.ge.f32.partialorder %v378, 0.0
      %vm411 = vcmp.ge.f32.partialorder %v379, 0.0
      %vm412 = vcmp.ge.f32.partialorder %v380, 0.0
      %vm413 = vcmp.ge.f32.partialorder %v381, 0.0
      %vm414 = vcmp.ge.f32.partialorder %v382, 0.0
      %vm415 = vcmp.ge.f32.partialorder %v383, 0.0
      %vm416 = vcmp.ge.f32.partialorder %v384, 0.0
      %vm417 = vcmp.ge.f32.partialorder %v385, 0.0
      %vm418 = vcmp.ge.f32.partialorder %v386, 0.0
      %vm419 = vcmp.ge.f32.partialorder %v387, 0.0
      %vm420 = vcmp.ge.f32.partialorder %v388, 0.0
      %vm421 = vcmp.ge.f32.partialorder %v389, 0.0
      %vm422 = vcmp.ge.f32.partialorder %v390, 0.0
      %vm423 = vcmp.ge.f32.partialorder %v391, 0.0
      %vm424 = vcmp.ge.f32.partialorder %v392, 0.0
      %vm425 = vcmp.ge.f32.partialorder %v393, 0.0
      %v426 = vmul.f32 %v362, 0.2
      %v427 = vmul.f32 %v363, 0.2
      %v428 = vmul.f32 %v364, 0.2
      %v429 = vmul.f32 %v365, 0.2
      %v430 = vmul.f32 %v366, 0.2
      %v431 = vmul.f32 %v367, 0.2
      %v432 = vmul.f32 %v368, 0.2
      %v433 = vmul.f32 %v369, 0.2
      %v434 = vmul.f32 %v370, 0.2
      %v435 = vmul.f32 %v371, 0.2
      %v436 = vmul.f32 %v372, 0.2
      %v437 = vmul.f32 %v373, 0.2
      %v438 = vmul.f32 %v374, 0.2
      %v439 = vmul.f32 %v375, 0.2
      %v440 = vmul.f32 %v376, 0.2
      %v441 = vmul.f32 %v377, 0.2
      %v442 = vmul.f32 %v378, 0.2
      %v443 = vmul.f32 %v379, 0.2
      %v444 = vmul.f32 %v380, 0.2
      %v445 = vmul.f32 %v381, 0.2
      %v446 = vmul.f32 %v382, 0.2
      %v447 = vmul.f32 %v383, 0.2
      %v448 = vmul.f32 %v384, 0.2
      %v449 = vmul.f32 %v385, 0.2
      %v450 = vmul.f32 %v386, 0.2
      %v451 = vmul.f32 %v387, 0.2
      %v452 = vmul.f32 %v388, 0.2
      %v453 = vmul.f32 %v389, 0.2
      %v454 = vmul.f32 %v390, 0.2
      %v455 = vmul.f32 %v391, 0.2
      %v456 = vmul.f32 %v392, 0.2
      %v457 = vmul.f32 %v393, 0.2
      %v458 = vsel %vm394, %v362, %v426
      %v459 = vsel %vm395, %v363, %v427
      %v460 = vsel %vm396, %v364, %v428
      %v461 = vsel %vm397, %v365, %v429
      %v462 = vsel %vm398, %v366, %v430
      %v463 = vsel %vm399, %v367, %v431
      %v464 = vsel %vm400, %v368, %v432
      %v465 = vsel %vm401, %v369, %v433
      %v466 = vsel %vm402, %v370, %v434
      %v467 = vsel %vm403, %v371, %v435
      %v468 = vsel %vm404, %v372, %v436
      %v469 = vsel %vm405, %v373, %v437
      %v470 = vsel %vm406, %v374, %v438
      %v471 = vsel %vm407, %v375, %v439
      %v472 = vsel %vm408, %v376, %v440
      %v473 = vsel %vm409, %v377, %v441
      %v474 = vsel %vm410, %v378, %v442
      %v475 = vsel %vm411, %v379, %v443
      %v476 = vsel %vm412, %v380, %v444
      %v477 = vsel %vm413, %v381, %v445
      %v478 = vsel %vm414, %v382, %v446
      %v479 = vsel %vm415, %v383, %v447
      %v480 = vsel %vm416, %v384, %v448
      %v481 = vsel %vm417, %v385, %v449
      %v482 = vsel %vm418, %v386, %v450
      %v483 = vsel %vm419, %v387, %v451
      %v484 = vsel %vm420, %v388, %v452
      %v485 = vsel %vm421, %v389, %v453
      %v486 = vsel %vm422, %v390, %v454
      %v487 = vsel %vm423, %v391, %v455
      %v488 = vsel %vm424, %v392, %v456
      %v489 = vsel %vm425, %v393, %v457
      %s490 = scalar_lea.vmem [#allocation2], 24
      %491 = vst.msk [vmem:[%s490 + $0x1] sm:$0xff] %vm252, %v458
      %492 = vst.msk [vmem:[%s490 + $0x9] sm:$0xff] %vm252, %v459
      %493 = vst.msk [vmem:[%s490 + $0x19] sm:$0xff] %vm252, %v460
      %494 = vst.msk [vmem:[%s490 + $0x21] sm:$0xff] %vm252, %v461
      %495 = vst.msk [vmem:[%s490 + $0x31] sm:$0xff] %vm252, %v462
      %496 = vst.msk [vmem:[%s490 + $0x39] sm:$0xff] %vm252, %v463
      %497 = vst.msk [vmem:[%s490 + $0x49] sm:$0xff] %vm252, %v464
      %498 = vst.msk [vmem:[%s490 + $0x51] sm:$0xff] %vm252, %v465
      %499 = vst.msk [vmem:[%s490 + $0x61] sm:$0xff] %vm252, %v466
      %500 = vst.msk [vmem:[%s490 + $0x69] sm:$0xff] %vm252, %v467
      %501 = vst.msk [vmem:[%s490 + $0x79] sm:$0xff] %vm252, %v468
      %502 = vst.msk [vmem:[%s490 + $0x81] sm:$0xff] %vm252, %v469
      %503 = vst.msk [vmem:[%s490 + $0x91] sm:$0xff] %vm252, %v470
      %504 = vst.msk [vmem:[%s490 + $0x99] sm:$0xff] %vm252, %v471
      %505 = vst.msk [vmem:[%s490 + $0xa9] sm:$0xff] %vm252, %v472
      %506 = vst.msk [vmem:[%s490 + $0xb1] sm:$0xff] %vm252, %v473
      %507 = vst.msk [vmem:[%s490 + $0xc1] sm:$0xff] %vm252, %v474
      %508 = vst.msk [vmem:[%s490 + $0xc9] sm:$0xff] %vm252, %v475
      %509 = vst.msk [vmem:[%s490 + $0xd9] sm:$0xff] %vm252, %v476
      %510 = vst.msk [vmem:[%s490 + $0xe1] sm:$0xff] %vm252, %v477
      %511 = vst.msk [vmem:[%s490 + $0xf1] sm:$0xff] %vm252, %v478
      %512 = vst.msk [vmem:[%s490 + $0xf9] sm:$0xff] %vm252, %v479
      %513 = vst.msk [vmem:[%s490 + $0x109] sm:$0xff] %vm252, %v480
      %514 = vst.msk [vmem:[%s490 + $0x111] sm:$0xff] %vm252, %v481
      %515 = vst.msk [vmem:[%s490 + $0x121] sm:$0xff] %vm252, %v482
      %516 = vst.msk [vmem:[%s490 + $0x129] sm:$0xff] %vm252, %v483
      %517 = vst.msk [vmem:[%s490 + $0x139] sm:$0xff] %vm252, %v484
      %518 = vst.msk [vmem:[%s490 + $0x141] sm:$0xff] %vm252, %v485
      %519 = vst.msk [vmem:[%s490 + $0x151] sm:$0xff] %vm252, %v486
      %520 = vst.msk [vmem:[%s490 + $0x159] sm:$0xff] %vm252, %v487
      %521 = vst.msk [vmem:[%s490 + $0x169] sm:$0xff] %vm252, %v488
      %522 = vst.msk [vmem:[%s490 + $0x171] sm:$0xff] %vm252, %v489
      %v523 = vld [vmem:[#allocation2] sm:$0xff]
      %v524 = vld [vmem:[#allocation2 + $0x8] sm:$0xff]
      %v525 = vld [vmem:[#allocation2 + $0x18] sm:$0xff]
      %v526 = vld [vmem:[#allocation2 + $0x20] sm:$0xff]
      %v527 = vld [vmem:[#allocation2 + $0x30] sm:$0xff]
      %v528 = vld [vmem:[#allocation2 + $0x38] sm:$0xff]
      %v529 = vld [vmem:[#allocation2 + $0x48] sm:$0xff]
      %v530 = vld [vmem:[#allocation2 + $0x50] sm:$0xff]
      %v531 = vld [vmem:[#allocation2 + $0x60] sm:$0xff]
      %v532 = vld [vmem:[#allocation2 + $0x68] sm:$0xff]
      %v533 = vld [vmem:[#allocation2 + $0x78] sm:$0xff]
      %v534 = vld [vmem:[#allocation2 + $0x80] sm:$0xff]
      %v535 = vld [vmem:[#allocation2 + $0x90] sm:$0xff]
      %v536 = vld [vmem:[#allocation2 + $0x98] sm:$0xff]
      %v537 = vld [vmem:[#allocation2 + $0xa8] sm:$0xff]
      %v538 = vld [vmem:[#allocation2 + $0xb0] sm:$0xff]
      %v539 = vld [vmem:[#allocation2 + $0xc0] sm:$0xff]
      %v540 = vld [vmem:[#allocation2 + $0xc8] sm:$0xff]
      %v541 = vld [vmem:[#allocation2 + $0xd8] sm:$0xff]
      %v542 = vld [vmem:[#allocation2 + $0xe0] sm:$0xff]
      %v543 = vld [vmem:[#allocation2 + $0xf0] sm:$0xff]
      %v544 = vld [vmem:[#allocation2 + $0xf8] sm:$0xff]
      %v545 = vld [vmem:[#allocation2 + $0x108] sm:$0xff]
      %v546 = vld [vmem:[#allocation2 + $0x110] sm:$0xff]
      %v547 = vld [vmem:[#allocation2 + $0x120] sm:$0xff]
      %v548 = vld [vmem:[#allocation2 + $0x128] sm:$0xff]
      %v549 = vld [vmem:[#allocation2 + $0x138] sm:$0xff]
      %v550 = vld [vmem:[#allocation2 + $0x140] sm:$0xff]
      %v551 = vld [vmem:[#allocation2 + $0x150] sm:$0xff]
      %v552 = vld [vmem:[#allocation2 + $0x158] sm:$0xff]
      %v553 = vld [vmem:[#allocation2 + $0x168] sm:$0xff]
      %v554 = vld [vmem:[#allocation2 + $0x170] sm:$0xff]
      %v555 = vld [vmem:[#allocation2 + $0x1] sm:$0xff]
      %v556 = vld [vmem:[#allocation2 + $0x9] sm:$0xff]
      %v557 = vld [vmem:[#allocation2 + $0x19] sm:$0xff]
      %v558 = vld [vmem:[#allocation2 + $0x21] sm:$0xff]
      %v559 = vld [vmem:[#allocation2 + $0x31] sm:$0xff]
      %v560 = vld [vmem:[#allocation2 + $0x39] sm:$0xff]
      %v561 = vld [vmem:[#allocation2 + $0x49] sm:$0xff]
      %v562 = vld [vmem:[#allocation2 + $0x51] sm:$0xff]
      %v563 = vld [vmem:[#allocation2 + $0x61] sm:$0xff]
      %v564 = vld [vmem:[#allocation2 + $0x69] sm:$0xff]
      %v565 = vld [vmem:[#allocation2 + $0x79] sm:$0xff]
      %v566 = vld [vmem:[#allocation2 + $0x81] sm:$0xff]
      %v567 = vld [vmem:[#allocation2 + $0x91] sm:$0xff]
      %v568 = vld [vmem:[#allocation2 + $0x99] sm:$0xff]
      %v569 = vld [vmem:[#allocation2 + $0xa9] sm:$0xff]
      %v570 = vld [vmem:[#allocation2 + $0xb1] sm:$0xff]
      %v571 = vld [vmem:[#allocation2 + $0xc1] sm:$0xff]
      %v572 = vld [vmem:[#allocation2 + $0xc9] sm:$0xff]
      %v573 = vld [vmem:[#allocation2 + $0xd9] sm:$0xff]
      %v574 = vld [vmem:[#allocation2 + $0xe1] sm:$0xff]
      %v575 = vld [vmem:[#allocation2 + $0xf1] sm:$0xff]
      %v576 = vld [vmem:[#allocation2 + $0xf9] sm:$0xff]
      %v577 = vld [vmem:[#allocation2 + $0x109] sm:$0xff]
      %v578 = vld [vmem:[#allocation2 + $0x111] sm:$0xff]
      %v579 = vld [vmem:[#allocation2 + $0x121] sm:$0xff]
      %v580 = vld [vmem:[#allocation2 + $0x129] sm:$0xff]
      %v581 = vld [vmem:[#allocation2 + $0x139] sm:$0xff]
      %v582 = vld [vmem:[#allocation2 + $0x141] sm:$0xff]
      %v583 = vld [vmem:[#allocation2 + $0x151] sm:$0xff]
      %v584 = vld [vmem:[#allocation2 + $0x159] sm:$0xff]
      %v585 = vld [vmem:[#allocation2 + $0x169] sm:$0xff]
      %v586 = vld [vmem:[#allocation2 + $0x171] sm:$0xff]
      %v587 = vld [vmem:[#allocation2 + $0x2] sm:$0xff]
      %v588 = vld [vmem:[#allocation2 + $0xa] sm:$0xff]
      %v589 = vld [vmem:[#allocation2 + $0x1a] sm:$0xff]
      %v590 = vld [vmem:[#allocation2 + $0x22] sm:$0xff]
      %v591 = vld [vmem:[#allocation2 + $0x32] sm:$0xff]
      %v592 = vld [vmem:[#allocation2 + $0x3a] sm:$0xff]
      %v593 = vld [vmem:[#allocation2 + $0x4a] sm:$0xff]
      %v594 = vld [vmem:[#allocation2 + $0x52] sm:$0xff]
      %v595 = vld [vmem:[#allocation2 + $0x62] sm:$0xff]
      %v596 = vld [vmem:[#allocation2 + $0x6a] sm:$0xff]
      %v597 = vld [vmem:[#allocation2 + $0x7a] sm:$0xff]
      %v598 = vld [vmem:[#allocation2 + $0x82] sm:$0xff]
      %v599 = vld [vmem:[#allocation2 + $0x92] sm:$0xff]
      %v600 = vld [vmem:[#allocation2 + $0x9a] sm:$0xff]
      %v601 = vld [vmem:[#allocation2 + $0xaa] sm:$0xff]
      %v602 = vld [vmem:[#allocation2 + $0xb2] sm:$0xff]
      %v603 = vld [vmem:[#allocation2 + $0xc2] sm:$0xff]
      %v604 = vld [vmem:[#allocation2 + $0xca] sm:$0xff]
      %v605 = vld [vmem:[#allocation2 + $0xda] sm:$0xff]
      %v606 = vld [vmem:[#allocation2 + $0xe2] sm:$0xff]
      %v607 = vld [vmem:[#allocation2 + $0xf2] sm:$0xff]
      %v608 = vld [vmem:[#allocation2 + $0xfa] sm:$0xff]
      %v609 = vld [vmem:[#allocation2 + $0x10a] sm:$0xff]
      %v610 = vld [vmem:[#allocation2 + $0x112] sm:$0xff]
      %v611 = vld [vmem:[#allocation2 + $0x122] sm:$0xff]
      %v612 = vld [vmem:[#allocation2 + $0x12a] sm:$0xff]
      %v613 = vld [vmem:[#allocation2 + $0x13a] sm:$0xff]
      %v614 = vld [vmem:[#allocation2 + $0x142] sm:$0xff]
      %v615 = vld [vmem:[#allocation2 + $0x152] sm:$0xff]
      %v616 = vld [vmem:[#allocation2 + $0x15a] sm:$0xff]
      %v617 = vld [vmem:[#allocation2 + $0x16a] sm:$0xff]
      %v618 = vld [vmem:[#allocation2 + $0x172] sm:$0xff]
      %v619 = vld [vmem:[%s490] sm:$0xff]
      %v620 = vld [vmem:[%s490 + $0x8] sm:$0xff]
      %v621 = vld [vmem:[%s490 + $0x18] sm:$0xff]
      %v622 = vld [vmem:[%s490 + $0x20] sm:$0xff]
      %v623 = vld [vmem:[%s490 + $0x30] sm:$0xff]
      %v624 = vld [vmem:[%s490 + $0x38] sm:$0xff]
      %v625 = vld [vmem:[%s490 + $0x48] sm:$0xff]
      %v626 = vld [vmem:[%s490 + $0x50] sm:$0xff]
      %v627 = vld [vmem:[%s490 + $0x60] sm:$0xff]
      %v628 = vld [vmem:[%s490 + $0x68] sm:$0xff]
      %v629 = vld [vmem:[%s490 + $0x78] sm:$0xff]
      %v630 = vld [vmem:[%s490 + $0x80] sm:$0xff]
      %v631 = vld [vmem:[%s490 + $0x90] sm:$0xff]
      %v632 = vld [vmem:[%s490 + $0x98] sm:$0xff]
      %v633 = vld [vmem:[%s490 + $0xa8] sm:$0xff]
      %v634 = vld [vmem:[%s490 + $0xb0] sm:$0xff]
      %v635 = vld [vmem:[%s490 + $0xc0] sm:$0xff]
      %v636 = vld [vmem:[%s490 + $0xc8] sm:$0xff]
      %v637 = vld [vmem:[%s490 + $0xd8] sm:$0xff]
      %v638 = vld [vmem:[%s490 + $0xe0] sm:$0xff]
      %v639 = vld [vmem:[%s490 + $0xf0] sm:$0xff]
      %v640 = vld [vmem:[%s490 + $0xf8] sm:$0xff]
      %v641 = vld [vmem:[%s490 + $0x108] sm:$0xff]
      %v642 = vld [vmem:[%s490 + $0x110] sm:$0xff]
      %v643 = vld [vmem:[%s490 + $0x120] sm:$0xff]
      %v644 = vld [vmem:[%s490 + $0x128] sm:$0xff]
      %v645 = vld [vmem:[%s490 + $0x138] sm:$0xff]
      %v646 = vld [vmem:[%s490 + $0x140] sm:$0xff]
      %v647 = vld [vmem:[%s490 + $0x150] sm:$0xff]
      %v648 = vld [vmem:[%s490 + $0x158] sm:$0xff]
      %v649 = vld [vmem:[%s490 + $0x168] sm:$0xff]
      %v650 = vld [vmem:[%s490 + $0x170] sm:$0xff]
      %v651 = vld [vmem:[%s490 + $0x1] sm:$0xff]
      %v652 = vld [vmem:[%s490 + $0x9] sm:$0xff]
      %v653 = vld [vmem:[%s490 + $0x19] sm:$0xff]
      %v654 = vld [vmem:[%s490 + $0x21] sm:$0xff]
      %v655 = vld [vmem:[%s490 + $0x31] sm:$0xff]
      %v656 = vld [vmem:[%s490 + $0x39] sm:$0xff]
      %v657 = vld [vmem:[%s490 + $0x49] sm:$0xff]
      %v658 = vld [vmem:[%s490 + $0x51] sm:$0xff]
      %v659 = vld [vmem:[%s490 + $0x61] sm:$0xff]
      %v660 = vld [vmem:[%s490 + $0x69] sm:$0xff]
      %v661 = vld [vmem:[%s490 + $0x79] sm:$0xff]
      %v662 = vld [vmem:[%s490 + $0x81] sm:$0xff]
      %v663 = vld [vmem:[%s490 + $0x91] sm:$0xff]
      %v664 = vld [vmem:[%s490 + $0x99] sm:$0xff]
      %v665 = vld [vmem:[%s490 + $0xa9] sm:$0xff]
      %v666 = vld [vmem:[%s490 + $0xb1] sm:$0xff]
      %v667 = vld [vmem:[%s490 + $0xc1] sm:$0xff]
      %v668 = vld [vmem:[%s490 + $0xc9] sm:$0xff]
      %v669 = vld [vmem:[%s490 + $0xd9] sm:$0xff]
      %v670 = vld [vmem:[%s490 + $0xe1] sm:$0xff]
      %v671 = vld [vmem:[%s490 + $0xf1] sm:$0xff]
      %v672 = vld [vmem:[%s490 + $0xf9] sm:$0xff]
      %v673 = vld [vmem:[%s490 + $0x109] sm:$0xff]
      %v674 = vld [vmem:[%s490 + $0x111] sm:$0xff]
      %v675 = vld [vmem:[%s490 + $0x121] sm:$0xff]
      %v676 = vld [vmem:[%s490 + $0x129] sm:$0xff]
      %v677 = vld [vmem:[%s490 + $0x139] sm:$0xff]
      %v678 = vld [vmem:[%s490 + $0x141] sm:$0xff]
      %v679 = vld [vmem:[%s490 + $0x151] sm:$0xff]
      %v680 = vld [vmem:[%s490 + $0x159] sm:$0xff]
      %v681 = vld [vmem:[%s490 + $0x169] sm:$0xff]
      %v682 = vld [vmem:[%s490 + $0x171] sm:$0xff]
      %v683 = vld [vmem:[%s490 + $0x2] sm:$0xff]
      %v684 = vld [vmem:[%s490 + $0xa] sm:$0xff]
      %v685 = vld [vmem:[%s490 + $0x1a] sm:$0xff]
      %v686 = vld [vmem:[%s490 + $0x22] sm:$0xff]
      %v687 = vld [vmem:[%s490 + $0x32] sm:$0xff]
      %v688 = vld [vmem:[%s490 + $0x3a] sm:$0xff]
      %v689 = vld [vmem:[%s490 + $0x4a] sm:$0xff]
      %v690 = vld [vmem:[%s490 + $0x52] sm:$0xff]
      %v691 = vld [vmem:[%s490 + $0x62] sm:$0xff]
      %v692 = vld [vmem:[%s490 + $0x6a] sm:$0xff]
      %v693 = vld [vmem:[%s490 + $0x7a] sm:$0xff]
      %v694 = vld [vmem:[%s490 + $0x82] sm:$0xff]
      %v695 = vld [vmem:[%s490 + $0x92] sm:$0xff]
      %v696 = vld [vmem:[%s490 + $0x9a] sm:$0xff]
      %v697 = vld [vmem:[%s490 + $0xaa] sm:$0xff]
      %v698 = vld [vmem:[%s490 + $0xb2] sm:$0xff]
      %v699 = vld [vmem:[%s490 + $0xc2] sm:$0xff]
      %v700 = vld [vmem:[%s490 + $0xca] sm:$0xff]
      %v701 = vld [vmem:[%s490 + $0xda] sm:$0xff]
      %v702 = vld [vmem:[%s490 + $0xe2] sm:$0xff]
      %v703 = vld [vmem:[%s490 + $0xf2] sm:$0xff]
      %v704 = vld [vmem:[%s490 + $0xfa] sm:$0xff]
      %v705 = vld [vmem:[%s490 + $0x10a] sm:$0xff]
      %v706 = vld [vmem:[%s490 + $0x112] sm:$0xff]
      %v707 = vld [vmem:[%s490 + $0x122] sm:$0xff]
      %v708 = vld [vmem:[%s490 + $0x12a] sm:$0xff]
      %v709 = vld [vmem:[%s490 + $0x13a] sm:$0xff]
      %v710 = vld [vmem:[%s490 + $0x142] sm:$0xff]
      %v711 = vld [vmem:[%s490 + $0x152] sm:$0xff]
      %v712 = vld [vmem:[%s490 + $0x15a] sm:$0xff]
      %v713 = vld [vmem:[%s490 + $0x16a] sm:$0xff]
      %v714 = vld [vmem:[%s490 + $0x172] sm:$0xff]
      %s715 = scalar_lea.vmem [#allocation2], 48
      %v716 = vld [vmem:[%s715] sm:$0xff]
      %v717 = vld [vmem:[%s715 + $0x8] sm:$0xff]
      %v718 = vld [vmem:[%s715 + $0x18] sm:$0xff]
      %v719 = vld [vmem:[%s715 + $0x20] sm:$0xff]
      %v720 = vld [vmem:[%s715 + $0x30] sm:$0xff]
      %v721 = vld [vmem:[%s715 + $0x38] sm:$0xff]
      %v722 = vld [vmem:[%s715 + $0x48] sm:$0xff]
      %v723 = vld [vmem:[%s715 + $0x50] sm:$0xff]
      %v724 = vld [vmem:[%s715 + $0x60] sm:$0xff]
      %v725 = vld [vmem:[%s715 + $0x68] sm:$0xff]
      %v726 = vld [vmem:[%s715 + $0x78] sm:$0xff]
      %v727 = vld [vmem:[%s715 + $0x80] sm:$0xff]
      %v728 = vld [vmem:[%s715 + $0x90] sm:$0xff]
      %v729 = vld [vmem:[%s715 + $0x98] sm:$0xff]
      %v730 = vld [vmem:[%s715 + $0xa8] sm:$0xff]
      %v731 = vld [vmem:[%s715 + $0xb0] sm:$0xff]
      %v732 = vld [vmem:[%s715 + $0xc0] sm:$0xff]
      %v733 = vld [vmem:[%s715 + $0xc8] sm:$0xff]
      %v734 = vld [vmem:[%s715 + $0xd8] sm:$0xff]
      %v735 = vld [vmem:[%s715 + $0xe0] sm:$0xff]
      %v736 = vld [vmem:[%s715 + $0xf0] sm:$0xff]
      %v737 = vld [vmem:[%s715 + $0xf8] sm:$0xff]
      %v738 = vld [vmem:[%s715 + $0x108] sm:$0xff]
      %v739 = vld [vmem:[%s715 + $0x110] sm:$0xff]
      %v740 = vld [vmem:[%s715 + $0x120] sm:$0xff]
      %v741 = vld [vmem:[%s715 + $0x128] sm:$0xff]
      %v742 = vld [vmem:[%s715 + $0x138] sm:$0xff]
      %v743 = vld [vmem:[%s715 + $0x140] sm:$0xff]
      %v744 = vld [vmem:[%s715 + $0x150] sm:$0xff]
      %v745 = vld [vmem:[%s715 + $0x158] sm:$0xff]
      %v746 = vld [vmem:[%s715 + $0x168] sm:$0xff]
      %v747 = vld [vmem:[%s715 + $0x170] sm:$0xff]
      %v748 = vld [vmem:[%s715 + $0x1] sm:$0xff]
      %v749 = vld [vmem:[%s715 + $0x9] sm:$0xff]
      %v750 = vld [vmem:[%s715 + $0x19] sm:$0xff]
      %v751 = vld [vmem:[%s715 + $0x21] sm:$0xff]
      %v752 = vld [vmem:[%s715 + $0x31] sm:$0xff]
      %v753 = vld [vmem:[%s715 + $0x39] sm:$0xff]
      %v754 = vld [vmem:[%s715 + $0x49] sm:$0xff]
      %v755 = vld [vmem:[%s715 + $0x51] sm:$0xff]
      %v756 = vld [vmem:[%s715 + $0x61] sm:$0xff]
      %v757 = vld [vmem:[%s715 + $0x69] sm:$0xff]
      %v758 = vld [vmem:[%s715 + $0x79] sm:$0xff]
      %v759 = vld [vmem:[%s715 + $0x81] sm:$0xff]
      %v760 = vld [vmem:[%s715 + $0x91] sm:$0xff]
      %v761 = vld [vmem:[%s715 + $0x99] sm:$0xff]
      %v762 = vld [vmem:[%s715 + $0xa9] sm:$0xff]
      %v763 = vld [vmem:[%s715 + $0xb1] sm:$0xff]
      %v764 = vld [vmem:[%s715 + $0xc1] sm:$0xff]
      %v765 = vld [vmem:[%s715 + $0xc9] sm:$0xff]
      %v766 = vld [vmem:[%s715 + $0xd9] sm:$0xff]
      %v767 = vld [vmem:[%s715 + $0xe1] sm:$0xff]
      %v768 = vld [vmem:[%s715 + $0xf1] sm:$0xff]
      %v769 = vld [vmem:[%s715 + $0xf9] sm:$0xff]
      %v770 = vld [vmem:[%s715 + $0x109] sm:$0xff]
      %v771 = vld [vmem:[%s715 + $0x111] sm:$0xff]
      %v772 = vld [vmem:[%s715 + $0x121] sm:$0xff]
      %v773 = vld [vmem:[%s715 + $0x129] sm:$0xff]
      %v774 = vld [vmem:[%s715 + $0x139] sm:$0xff]
      %v775 = vld [vmem:[%s715 + $0x141] sm:$0xff]
      %v776 = vld [vmem:[%s715 + $0x151] sm:$0xff]
      %v777 = vld [vmem:[%s715 + $0x159] sm:$0xff]
      %v778 = vld [vmem:[%s715 + $0x169] sm:$0xff]
      %v779 = vld [vmem:[%s715 + $0x171] sm:$0xff]
      %v780 = vld [vmem:[%s715 + $0x2] sm:$0xff]
      %v781 = vld [vmem:[%s715 + $0xa] sm:$0xff]
      %v782 = vld [vmem:[%s715 + $0x1a] sm:$0xff]
      %v783 = vld [vmem:[%s715 + $0x22] sm:$0xff]
      %v784 = vld [vmem:[%s715 + $0x32] sm:$0xff]
      %v785 = vld [vmem:[%s715 + $0x3a] sm:$0xff]
      %v786 = vld [vmem:[%s715 + $0x4a] sm:$0xff]
      %v787 = vld [vmem:[%s715 + $0x52] sm:$0xff]
      %v788 = vld [vmem:[%s715 + $0x62] sm:$0xff]
      %v789 = vld [vmem:[%s715 + $0x6a] sm:$0xff]
      %v790 = vld [vmem:[%s715 + $0x7a] sm:$0xff]
      %v791 = vld [vmem:[%s715 + $0x82] sm:$0xff]
      %v792 = vld [vmem:[%s715 + $0x92] sm:$0xff]
      %v793 = vld [vmem:[%s715 + $0x9a] sm:$0xff]
      %v794 = vld [vmem:[%s715 + $0xaa] sm:$0xff]
      %v795 = vld [vmem:[%s715 + $0xb2] sm:$0xff]
      %v796 = vld [vmem:[%s715 + $0xc2] sm:$0xff]
      %v797 = vld [vmem:[%s715 + $0xca] sm:$0xff]
      %v798 = vld [vmem:[%s715 + $0xda] sm:$0xff]
      %v799 = vld [vmem:[%s715 + $0xe2] sm:$0xff]
      %v800 = vld [vmem:[%s715 + $0xf2] sm:$0xff]
      %v801 = vld [vmem:[%s715 + $0xfa] sm:$0xff]
      %v802 = vld [vmem:[%s715 + $0x10a] sm:$0xff]
      %v803 = vld [vmem:[%s715 + $0x112] sm:$0xff]
      %v804 = vld [vmem:[%s715 + $0x122] sm:$0xff]
      %v805 = vld [vmem:[%s715 + $0x12a] sm:$0xff]
      %v806 = vld [vmem:[%s715 + $0x13a] sm:$0xff]
      %v807 = vld [vmem:[%s715 + $0x142] sm:$0xff]
      %v808 = vld [vmem:[%s715 + $0x152] sm:$0xff]
      %v809 = vld [vmem:[%s715 + $0x15a] sm:$0xff]
      %v810 = vld [vmem:[%s715 + $0x16a] sm:$0xff]
      %v811 = vld [vmem:[%s715 + $0x172] sm:$0xff]
      %844 = vrot.lane.b32.xlu0 %v555, 4
      %v845 = vpop.permute.xlu0 %844
      %846 = vrot.lane.b32.xlu0 %v556, 4
      %v847 = vpop.permute.xlu0 %846
      %848 = vrot.lane.b32.xlu0 %v557, 4
      %v849 = vpop.permute.xlu0 %848
      %850 = vrot.lane.b32.xlu0 %v558, 4
      %v851 = vpop.permute.xlu0 %850
      %852 = vrot.lane.b32.xlu0 %v559, 4
      %v853 = vpop.permute.xlu0 %852
      %854 = vrot.lane.b32.xlu0 %v560, 4
      %v855 = vpop.permute.xlu0 %854
      %856 = vrot.lane.b32.xlu0 %v561, 4
      %v857 = vpop.permute.xlu0 %856
      %858 = vrot.lane.b32.xlu0 %v562, 4
      %v859 = vpop.permute.xlu0 %858
      %860 = vrot.lane.b32.xlu0 %v563, 4
      %v861 = vpop.permute.xlu0 %860
      %862 = vrot.lane.b32.xlu0 %v564, 4
      %v863 = vpop.permute.xlu0 %862
      %864 = vrot.lane.b32.xlu0 %v565, 4
      %v865 = vpop.permute.xlu0 %864
      %866 = vrot.lane.b32.xlu0 %v566, 4
      %v867 = vpop.permute.xlu0 %866
      %868 = vrot.lane.b32.xlu0 %v567, 4
      %v869 = vpop.permute.xlu0 %868
      %870 = vrot.lane.b32.xlu0 %v568, 4
      %v871 = vpop.permute.xlu0 %870
      %872 = vrot.lane.b32.xlu0 %v569, 4
      %v873 = vpop.permute.xlu0 %872
      %874 = vrot.lane.b32.xlu0 %v570, 4
      %v875 = vpop.permute.xlu0 %874
      %876 = vrot.lane.b32.xlu0 %v571, 4
      %v877 = vpop.permute.xlu0 %876
      %878 = vrot.lane.b32.xlu0 %v572, 4
      %v879 = vpop.permute.xlu0 %878
      %880 = vrot.lane.b32.xlu0 %v573, 4
      %v881 = vpop.permute.xlu0 %880
      %882 = vrot.lane.b32.xlu0 %v574, 4
      %v883 = vpop.permute.xlu0 %882
      %884 = vrot.lane.b32.xlu0 %v575, 4
      %v885 = vpop.permute.xlu0 %884
      %886 = vrot.lane.b32.xlu0 %v576, 4
      %v887 = vpop.permute.xlu0 %886
      %888 = vrot.lane.b32.xlu0 %v577, 4
      %v889 = vpop.permute.xlu0 %888
      %890 = vrot.lane.b32.xlu0 %v578, 4
      %v891 = vpop.permute.xlu0 %890
      %892 = vrot.lane.b32.xlu0 %v579, 4
      %v893 = vpop.permute.xlu0 %892
      %894 = vrot.lane.b32.xlu0 %v580, 4
      %v895 = vpop.permute.xlu0 %894
      %896 = vrot.lane.b32.xlu0 %v581, 4
      %v897 = vpop.permute.xlu0 %896
      %898 = vrot.lane.b32.xlu0 %v582, 4
      %v899 = vpop.permute.xlu0 %898
      %900 = vrot.lane.b32.xlu0 %v583, 4
      %v901 = vpop.permute.xlu0 %900
      %902 = vrot.lane.b32.xlu0 %v584, 4
      %v903 = vpop.permute.xlu0 %902
      %904 = vrot.lane.b32.xlu0 %v585, 4
      %v905 = vpop.permute.xlu0 %904
      %906 = vrot.lane.b32.xlu0 %v586, 4
      %v907 = vpop.permute.xlu0 %906
      %972 = vrot.lane.b32.xlu0 %v587, 8
      %v973 = vpop.permute.xlu0 %972
      %974 = vrot.lane.b32.xlu0 %v588, 8
      %v975 = vpop.permute.xlu0 %974
      %976 = vrot.lane.b32.xlu0 %v589, 8
      %v977 = vpop.permute.xlu0 %976
      %978 = vrot.lane.b32.xlu0 %v590, 8
      %v979 = vpop.permute.xlu0 %978
      %980 = vrot.lane.b32.xlu0 %v591, 8
      %v981 = vpop.permute.xlu0 %980
      %982 = vrot.lane.b32.xlu0 %v592, 8
      %v983 = vpop.permute.xlu0 %982
      %984 = vrot.lane.b32.xlu0 %v593, 8
      %v985 = vpop.permute.xlu0 %984
      %986 = vrot.lane.b32.xlu0 %v594, 8
      %v987 = vpop.permute.xlu0 %986
      %988 = vrot.lane.b32.xlu0 %v595, 8
      %v989 = vpop.permute.xlu0 %988
      %990 = vrot.lane.b32.xlu0 %v596, 8
      %v991 = vpop.permute.xlu0 %990
      %992 = vrot.lane.b32.xlu0 %v597, 8
      %v993 = vpop.permute.xlu0 %992
      %994 = vrot.lane.b32.xlu0 %v598, 8
      %v995 = vpop.permute.xlu0 %994
      %996 = vrot.lane.b32.xlu0 %v599, 8
      %v997 = vpop.permute.xlu0 %996
      %998 = vrot.lane.b32.xlu0 %v600, 8
      %v999 = vpop.permute.xlu0 %998
      %1000 = vrot.lane.b32.xlu0 %v601, 8
      %v1001 = vpop.permute.xlu0 %1000
      %1002 = vrot.lane.b32.xlu0 %v602, 8
      %v1003 = vpop.permute.xlu0 %1002
      %1004 = vrot.lane.b32.xlu0 %v603, 8
      %v1005 = vpop.permute.xlu0 %1004
      %1006 = vrot.lane.b32.xlu0 %v604, 8
      %v1007 = vpop.permute.xlu0 %1006
      %1008 = vrot.lane.b32.xlu0 %v605, 8
      %v1009 = vpop.permute.xlu0 %1008
      %1010 = vrot.lane.b32.xlu0 %v606, 8
      %v1011 = vpop.permute.xlu0 %1010
      %1012 = vrot.lane.b32.xlu0 %v607, 8
      %v1013 = vpop.permute.xlu0 %1012
      %1014 = vrot.lane.b32.xlu0 %v608, 8
      %v1015 = vpop.permute.xlu0 %1014
      %1016 = vrot.lane.b32.xlu0 %v609, 8
      %v1017 = vpop.permute.xlu0 %1016
      %1018 = vrot.lane.b32.xlu0 %v610, 8
      %v1019 = vpop.permute.xlu0 %1018
      %1020 = vrot.lane.b32.xlu0 %v611, 8
      %v1021 = vpop.permute.xlu0 %1020
      %1022 = vrot.lane.b32.xlu0 %v612, 8
      %v1023 = vpop.permute.xlu0 %1022
      %1024 = vrot.lane.b32.xlu0 %v613, 8
      %v1025 = vpop.permute.xlu0 %1024
      %1026 = vrot.lane.b32.xlu0 %v614, 8
      %v1027 = vpop.permute.xlu0 %1026
      %1028 = vrot.lane.b32.xlu0 %v615, 8
      %v1029 = vpop.permute.xlu0 %1028
      %1030 = vrot.lane.b32.xlu0 %v616, 8
      %v1031 = vpop.permute.xlu0 %1030
      %1032 = vrot.lane.b32.xlu0 %v617, 8
      %v1033 = vpop.permute.xlu0 %1032
      %1034 = vrot.lane.b32.xlu0 %v618, 8
      %v1035 = vpop.permute.xlu0 %1034
      %1100 = vrot.lane.b32.xlu0 %v619, 12
      %v1101 = vpop.permute.xlu0 %1100
      %1102 = vrot.lane.b32.xlu0 %v620, 12
      %v1103 = vpop.permute.xlu0 %1102
      %1104 = vrot.lane.b32.xlu0 %v621, 12
      %v1105 = vpop.permute.xlu0 %1104
      %1106 = vrot.lane.b32.xlu0 %v622, 12
      %v1107 = vpop.permute.xlu0 %1106
      %1108 = vrot.lane.b32.xlu0 %v623, 12
      %v1109 = vpop.permute.xlu0 %1108
      %1110 = vrot.lane.b32.xlu0 %v624, 12
      %v1111 = vpop.permute.xlu0 %1110
      %1112 = vrot.lane.b32.xlu0 %v625, 12
      %v1113 = vpop.permute.xlu0 %1112
      %1114 = vrot.lane.b32.xlu0 %v626, 12
      %v1115 = vpop.permute.xlu0 %1114
      %1116 = vrot.lane.b32.xlu0 %v627, 12
      %v1117 = vpop.permute.xlu0 %1116
      %1118 = vrot.lane.b32.xlu0 %v628, 12
      %v1119 = vpop.permute.xlu0 %1118
      %1120 = vrot.lane.b32.xlu0 %v629, 12
      %v1121 = vpop.permute.xlu0 %1120
      %1122 = vrot.lane.b32.xlu0 %v630, 12
      %v1123 = vpop.permute.xlu0 %1122
      %1124 = vrot.lane.b32.xlu0 %v631, 12
      %v1125 = vpop.permute.xlu0 %1124
      %1126 = vrot.lane.b32.xlu0 %v632, 12
      %v1127 = vpop.permute.xlu0 %1126
      %1128 = vrot.lane.b32.xlu0 %v633, 12
      %v1129 = vpop.permute.xlu0 %1128
      %1130 = vrot.lane.b32.xlu0 %v634, 12
      %v1131 = vpop.permute.xlu0 %1130
      %1132 = vrot.lane.b32.xlu0 %v635, 12
      %v1133 = vpop.permute.xlu0 %1132
      %1134 = vrot.lane.b32.xlu0 %v636, 12
      %v1135 = vpop.permute.xlu0 %1134
      %1136 = vrot.lane.b32.xlu0 %v637, 12
      %v1137 = vpop.permute.xlu0 %1136
      %1138 = vrot.lane.b32.xlu0 %v638, 12
      %v1139 = vpop.permute.xlu0 %1138
      %1140 = vrot.lane.b32.xlu0 %v639, 12
      %v1141 = vpop.permute.xlu0 %1140
      %1142 = vrot.lane.b32.xlu0 %v640, 12
      %v1143 = vpop.permute.xlu0 %1142
      %1144 = vrot.lane.b32.xlu0 %v641, 12
      %v1145 = vpop.permute.xlu0 %1144
      %1146 = vrot.lane.b32.xlu0 %v642, 12
      %v1147 = vpop.permute.xlu0 %1146
      %1148 = vrot.lane.b32.xlu0 %v643, 12
      %v1149 = vpop.permute.xlu0 %1148
      %1150 = vrot.lane.b32.xlu0 %v644, 12
      %v1151 = vpop.permute.xlu0 %1150
      %1152 = vrot.lane.b32.xlu0 %v645, 12
      %v1153 = vpop.permute.xlu0 %1152
      %1154 = vrot.lane.b32.xlu0 %v646, 12
      %v1155 = vpop.permute.xlu0 %1154
      %1156 = vrot.lane.b32.xlu0 %v647, 12
      %v1157 = vpop.permute.xlu0 %1156
      %1158 = vrot.lane.b32.xlu0 %v648, 12
      %v1159 = vpop.permute.xlu0 %1158
      %1160 = vrot.lane.b32.xlu0 %v649, 12
      %v1161 = vpop.permute.xlu0 %1160
      %1162 = vrot.lane.b32.xlu0 %v650, 12
      %v1163 = vpop.permute.xlu0 %1162
      %1228 = vrot.lane.b32.xlu0 %v651, 16
      %v1229 = vpop.permute.xlu0 %1228
      %1230 = vrot.lane.b32.xlu0 %v652, 16
      %v1231 = vpop.permute.xlu0 %1230
      %1232 = vrot.lane.b32.xlu0 %v653, 16
      %v1233 = vpop.permute.xlu0 %1232
      %1234 = vrot.lane.b32.xlu0 %v654, 16
      %v1235 = vpop.permute.xlu0 %1234
      %1236 = vrot.lane.b32.xlu0 %v655, 16
      %v1237 = vpop.permute.xlu0 %1236
      %1238 = vrot.lane.b32.xlu0 %v656, 16
      %v1239 = vpop.permute.xlu0 %1238
      %1240 = vrot.lane.b32.xlu0 %v657, 16
      %v1241 = vpop.permute.xlu0 %1240
      %1242 = vrot.lane.b32.xlu0 %v658, 16
      %v1243 = vpop.permute.xlu0 %1242
      %1244 = vrot.lane.b32.xlu0 %v659, 16
      %v1245 = vpop.permute.xlu0 %1244
      %1246 = vrot.lane.b32.xlu0 %v660, 16
      %v1247 = vpop.permute.xlu0 %1246
      %1248 = vrot.lane.b32.xlu0 %v661, 16
      %v1249 = vpop.permute.xlu0 %1248
      %1250 = vrot.lane.b32.xlu0 %v662, 16
      %v1251 = vpop.permute.xlu0 %1250
      %1252 = vrot.lane.b32.xlu0 %v663, 16
      %v1253 = vpop.permute.xlu0 %1252
      %1254 = vrot.lane.b32.xlu0 %v664, 16
      %v1255 = vpop.permute.xlu0 %1254
      %1256 = vrot.lane.b32.xlu0 %v665, 16
      %v1257 = vpop.permute.xlu0 %1256
      %1258 = vrot.lane.b32.xlu0 %v666, 16
      %v1259 = vpop.permute.xlu0 %1258
      %1260 = vrot.lane.b32.xlu0 %v667, 16
      %v1261 = vpop.permute.xlu0 %1260
      %1262 = vrot.lane.b32.xlu0 %v668, 16
      %v1263 = vpop.permute.xlu0 %1262
      %1264 = vrot.lane.b32.xlu0 %v669, 16
      %v1265 = vpop.permute.xlu0 %1264
      %1266 = vrot.lane.b32.xlu0 %v670, 16
      %v1267 = vpop.permute.xlu0 %1266
      %1268 = vrot.lane.b32.xlu0 %v671, 16
      %v1269 = vpop.permute.xlu0 %1268
      %1270 = vrot.lane.b32.xlu0 %v672, 16
      %v1271 = vpop.permute.xlu0 %1270
      %1272 = vrot.lane.b32.xlu0 %v673, 16
      %v1273 = vpop.permute.xlu0 %1272
      %1274 = vrot.lane.b32.xlu0 %v674, 16
      %v1275 = vpop.permute.xlu0 %1274
      %1276 = vrot.lane.b32.xlu0 %v675, 16
      %v1277 = vpop.permute.xlu0 %1276
      %1278 = vrot.lane.b32.xlu0 %v676, 16
      %v1279 = vpop.permute.xlu0 %1278
      %1280 = vrot.lane.b32.xlu0 %v677, 16
      %v1281 = vpop.permute.xlu0 %1280
      %1282 = vrot.lane.b32.xlu0 %v678, 16
      %v1283 = vpop.permute.xlu0 %1282
      %1284 = vrot.lane.b32.xlu0 %v679, 16
      %v1285 = vpop.permute.xlu0 %1284
      %1286 = vrot.lane.b32.xlu0 %v680, 16
      %v1287 = vpop.permute.xlu0 %1286
      %1288 = vrot.lane.b32.xlu0 %v681, 16
      %v1289 = vpop.permute.xlu0 %1288
      %1290 = vrot.lane.b32.xlu0 %v682, 16
      %v1291 = vpop.permute.xlu0 %1290
      %1356 = vrot.lane.b32.xlu0 %v683, 20
      %v1357 = vpop.permute.xlu0 %1356
      %1358 = vrot.lane.b32.xlu0 %v684, 20
      %v1359 = vpop.permute.xlu0 %1358
      %1360 = vrot.lane.b32.xlu0 %v685, 20
      %v1361 = vpop.permute.xlu0 %1360
      %1362 = vrot.lane.b32.xlu0 %v686, 20
      %v1363 = vpop.permute.xlu0 %1362
      %1364 = vrot.lane.b32.xlu0 %v687, 20
      %v1365 = vpop.permute.xlu0 %1364
      %1366 = vrot.lane.b32.xlu0 %v688, 20
      %v1367 = vpop.permute.xlu0 %1366
      %1368 = vrot.lane.b32.xlu0 %v689, 20
      %v1369 = vpop.permute.xlu0 %1368
      %1370 = vrot.lane.b32.xlu0 %v690, 20
      %v1371 = vpop.permute.xlu0 %1370
      %1372 = vrot.lane.b32.xlu0 %v691, 20
      %v1373 = vpop.permute.xlu0 %1372
      %1374 = vrot.lane.b32.xlu0 %v692, 20
      %v1375 = vpop.permute.xlu0 %1374
      %1376 = vrot.lane.b32.xlu0 %v693, 20
      %v1377 = vpop.permute.xlu0 %1376
      %1378 = vrot.lane.b32.xlu0 %v694, 20
      %v1379 = vpop.permute.xlu0 %1378
      %1380 = vrot.lane.b32.xlu0 %v695, 20
      %v1381 = vpop.permute.xlu0 %1380
      %1382 = vrot.lane.b32.xlu0 %v696, 20
      %v1383 = vpop.permute.xlu0 %1382
      %1384 = vrot.lane.b32.xlu0 %v697, 20
      %v1385 = vpop.permute.xlu0 %1384
      %1386 = vrot.lane.b32.xlu0 %v698, 20
      %v1387 = vpop.permute.xlu0 %1386
      %1388 = vrot.lane.b32.xlu0 %v699, 20
      %v1389 = vpop.permute.xlu0 %1388
      %1390 = vrot.lane.b32.xlu0 %v700, 20
      %v1391 = vpop.permute.xlu0 %1390
      %1392 = vrot.lane.b32.xlu0 %v701, 20
      %v1393 = vpop.permute.xlu0 %1392
      %1394 = vrot.lane.b32.xlu0 %v702, 20
      %v1395 = vpop.permute.xlu0 %1394
      %1396 = vrot.lane.b32.xlu0 %v703, 20
      %v1397 = vpop.permute.xlu0 %1396
      %1398 = vrot.lane.b32.xlu0 %v704, 20
      %v1399 = vpop.permute.xlu0 %1398
      %1400 = vrot.lane.b32.xlu0 %v705, 20
      %v1401 = vpop.permute.xlu0 %1400
      %1402 = vrot.lane.b32.xlu0 %v706, 20
      %v1403 = vpop.permute.xlu0 %1402
      %1404 = vrot.lane.b32.xlu0 %v707, 20
      %v1405 = vpop.permute.xlu0 %1404
      %1406 = vrot.lane.b32.xlu0 %v708, 20
      %v1407 = vpop.permute.xlu0 %1406
      %1408 = vrot.lane.b32.xlu0 %v709, 20
      %v1409 = vpop.permute.xlu0 %1408
      %1410 = vrot.lane.b32.xlu0 %v710, 20
      %v1411 = vpop.permute.xlu0 %1410
      %1412 = vrot.lane.b32.xlu0 %v711, 20
      %v1413 = vpop.permute.xlu0 %1412
      %1414 = vrot.lane.b32.xlu0 %v712, 20
      %v1415 = vpop.permute.xlu0 %1414
      %1416 = vrot.lane.b32.xlu0 %v713, 20
      %v1417 = vpop.permute.xlu0 %1416
      %1418 = vrot.lane.b32.xlu0 %v714, 20
      %v1419 = vpop.permute.xlu0 %1418
      %1484 = vrot.lane.b32.xlu0 %v716, 24
      %v1485 = vpop.permute.xlu0 %1484
      %1486 = vrot.lane.b32.xlu0 %v717, 24
      %v1487 = vpop.permute.xlu0 %1486
      %1488 = vrot.lane.b32.xlu0 %v718, 24
      %v1489 = vpop.permute.xlu0 %1488
      %1490 = vrot.lane.b32.xlu0 %v719, 24
      %v1491 = vpop.permute.xlu0 %1490
      %1492 = vrot.lane.b32.xlu0 %v720, 24
      %v1493 = vpop.permute.xlu0 %1492
      %1494 = vrot.lane.b32.xlu0 %v721, 24
      %v1495 = vpop.permute.xlu0 %1494
      %1496 = vrot.lane.b32.xlu0 %v722, 24
      %v1497 = vpop.permute.xlu0 %1496
      %1498 = vrot.lane.b32.xlu0 %v723, 24
      %v1499 = vpop.permute.xlu0 %1498
      %1500 = vrot.lane.b32.xlu0 %v724, 24
      %v1501 = vpop.permute.xlu0 %1500
      %1502 = vrot.lane.b32.xlu0 %v725, 24
      %v1503 = vpop.permute.xlu0 %1502
      %1504 = vrot.lane.b32.xlu0 %v726, 24
      %v1505 = vpop.permute.xlu0 %1504
      %1506 = vrot.lane.b32.xlu0 %v727, 24
      %v1507 = vpop.permute.xlu0 %1506
      %1508 = vrot.lane.b32.xlu0 %v728, 24
      %v1509 = vpop.permute.xlu0 %1508
      %1510 = vrot.lane.b32.xlu0 %v729, 24
      %v1511 = vpop.permute.xlu0 %1510
      %1512 = vrot.lane.b32.xlu0 %v730, 24
      %v1513 = vpop.permute.xlu0 %1512
      %1514 = vrot.lane.b32.xlu0 %v731, 24
      %v1515 = vpop.permute.xlu0 %1514
      %1516 = vrot.lane.b32.xlu0 %v732, 24
      %v1517 = vpop.permute.xlu0 %1516
      %1518 = vrot.lane.b32.xlu0 %v733, 24
      %v1519 = vpop.permute.xlu0 %1518
      %1520 = vrot.lane.b32.xlu0 %v734, 24
      %v1521 = vpop.permute.xlu0 %1520
      %1522 = vrot.lane.b32.xlu0 %v735, 24
      %v1523 = vpop.permute.xlu0 %1522
      %1524 = vrot.lane.b32.xlu0 %v736, 24
      %v1525 = vpop.permute.xlu0 %1524
      %1526 = vrot.lane.b32.xlu0 %v737, 24
      %v1527 = vpop.permute.xlu0 %1526
      %1528 = vrot.lane.b32.xlu0 %v738, 24
      %v1529 = vpop.permute.xlu0 %1528
      %1530 = vrot.lane.b32.xlu0 %v739, 24
      %v1531 = vpop.permute.xlu0 %1530
      %1532 = vrot.lane.b32.xlu0 %v740, 24
      %v1533 = vpop.permute.xlu0 %1532
      %1534 = vrot.lane.b32.xlu0 %v741, 24
      %v1535 = vpop.permute.xlu0 %1534
      %1536 = vrot.lane.b32.xlu0 %v742, 24
      %v1537 = vpop.permute.xlu0 %1536
      %1538 = vrot.lane.b32.xlu0 %v743, 24
      %v1539 = vpop.permute.xlu0 %1538
      %1540 = vrot.lane.b32.xlu0 %v744, 24
      %v1541 = vpop.permute.xlu0 %1540
      %1542 = vrot.lane.b32.xlu0 %v745, 24
      %v1543 = vpop.permute.xlu0 %1542
      %1544 = vrot.lane.b32.xlu0 %v746, 24
      %v1545 = vpop.permute.xlu0 %1544
      %1546 = vrot.lane.b32.xlu0 %v747, 24
      %v1547 = vpop.permute.xlu0 %1546
      %1612 = vrot.lane.b32.xlu0 %v748, 28
      %v1613 = vpop.permute.xlu0 %1612
      %1614 = vrot.lane.b32.xlu0 %v749, 28
      %v1615 = vpop.permute.xlu0 %1614
      %1616 = vrot.lane.b32.xlu0 %v750, 28
      %v1617 = vpop.permute.xlu0 %1616
      %1618 = vrot.lane.b32.xlu0 %v751, 28
      %v1619 = vpop.permute.xlu0 %1618
      %1620 = vrot.lane.b32.xlu0 %v752, 28
      %v1621 = vpop.permute.xlu0 %1620
      %1622 = vrot.lane.b32.xlu0 %v753, 28
      %v1623 = vpop.permute.xlu0 %1622
      %1624 = vrot.lane.b32.xlu0 %v754, 28
      %v1625 = vpop.permute.xlu0 %1624
      %1626 = vrot.lane.b32.xlu0 %v755, 28
      %v1627 = vpop.permute.xlu0 %1626
      %1628 = vrot.lane.b32.xlu0 %v756, 28
      %v1629 = vpop.permute.xlu0 %1628
      %1630 = vrot.lane.b32.xlu0 %v757, 28
      %v1631 = vpop.permute.xlu0 %1630
      %1632 = vrot.lane.b32.xlu0 %v758, 28
      %v1633 = vpop.permute.xlu0 %1632
      %1634 = vrot.lane.b32.xlu0 %v759, 28
      %v1635 = vpop.permute.xlu0 %1634
      %1636 = vrot.lane.b32.xlu0 %v760, 28
      %v1637 = vpop.permute.xlu0 %1636
      %1638 = vrot.lane.b32.xlu0 %v761, 28
      %v1639 = vpop.permute.xlu0 %1638
      %1640 = vrot.lane.b32.xlu0 %v762, 28
      %v1641 = vpop.permute.xlu0 %1640
      %1642 = vrot.lane.b32.xlu0 %v763, 28
      %v1643 = vpop.permute.xlu0 %1642
      %1644 = vrot.lane.b32.xlu0 %v764, 28
      %v1645 = vpop.permute.xlu0 %1644
      %1646 = vrot.lane.b32.xlu0 %v765, 28
      %v1647 = vpop.permute.xlu0 %1646
      %1648 = vrot.lane.b32.xlu0 %v766, 28
      %v1649 = vpop.permute.xlu0 %1648
      %1650 = vrot.lane.b32.xlu0 %v767, 28
      %v1651 = vpop.permute.xlu0 %1650
      %1652 = vrot.lane.b32.xlu0 %v768, 28
      %v1653 = vpop.permute.xlu0 %1652
      %1654 = vrot.lane.b32.xlu0 %v769, 28
      %v1655 = vpop.permute.xlu0 %1654
      %1656 = vrot.lane.b32.xlu0 %v770, 28
      %v1657 = vpop.permute.xlu0 %1656
      %1658 = vrot.lane.b32.xlu0 %v771, 28
      %v1659 = vpop.permute.xlu0 %1658
      %1660 = vrot.lane.b32.xlu0 %v772, 28
      %v1661 = vpop.permute.xlu0 %1660
      %1662 = vrot.lane.b32.xlu0 %v773, 28
      %v1663 = vpop.permute.xlu0 %1662
      %1664 = vrot.lane.b32.xlu0 %v774, 28
      %v1665 = vpop.permute.xlu0 %1664
      %1666 = vrot.lane.b32.xlu0 %v775, 28
      %v1667 = vpop.permute.xlu0 %1666
      %1668 = vrot.lane.b32.xlu0 %v776, 28
      %v1669 = vpop.permute.xlu0 %1668
      %1670 = vrot.lane.b32.xlu0 %v777, 28
      %v1671 = vpop.permute.xlu0 %1670
      %1672 = vrot.lane.b32.xlu0 %v778, 28
      %v1673 = vpop.permute.xlu0 %1672
      %1674 = vrot.lane.b32.xlu0 %v779, 28
      %v1675 = vpop.permute.xlu0 %1674
      %1740 = vrot.lane.b32.xlu0 %v780, 32
      %v1741 = vpop.permute.xlu0 %1740
      %1742 = vrot.lane.b32.xlu0 %v781, 32
      %v1743 = vpop.permute.xlu0 %1742
      %1744 = vrot.lane.b32.xlu0 %v782, 32
      %v1745 = vpop.permute.xlu0 %1744
      %1746 = vrot.lane.b32.xlu0 %v783, 32
      %v1747 = vpop.permute.xlu0 %1746
      %1748 = vrot.lane.b32.xlu0 %v784, 32
      %v1749 = vpop.permute.xlu0 %1748
      %1750 = vrot.lane.b32.xlu0 %v785, 32
      %v1751 = vpop.permute.xlu0 %1750
      %1752 = vrot.lane.b32.xlu0 %v786, 32
      %v1753 = vpop.permute.xlu0 %1752
      %1754 = vrot.lane.b32.xlu0 %v787, 32
      %v1755 = vpop.permute.xlu0 %1754
      %1756 = vrot.lane.b32.xlu0 %v788, 32
      %v1757 = vpop.permute.xlu0 %1756
      %1758 = vrot.lane.b32.xlu0 %v789, 32
      %v1759 = vpop.permute.xlu0 %1758
      %1760 = vrot.lane.b32.xlu0 %v790, 32
      %v1761 = vpop.permute.xlu0 %1760
      %1762 = vrot.lane.b32.xlu0 %v791, 32
      %v1763 = vpop.permute.xlu0 %1762
      %1764 = vrot.lane.b32.xlu0 %v792, 32
      %v1765 = vpop.permute.xlu0 %1764
      %1766 = vrot.lane.b32.xlu0 %v793, 32
      %v1767 = vpop.permute.xlu0 %1766
      %1768 = vrot.lane.b32.xlu0 %v794, 32
      %v1769 = vpop.permute.xlu0 %1768
      %1770 = vrot.lane.b32.xlu0 %v795, 32
      %v1771 = vpop.permute.xlu0 %1770
      %1772 = vrot.lane.b32.xlu0 %v796, 32
      %v1773 = vpop.permute.xlu0 %1772
      %1774 = vrot.lane.b32.xlu0 %v797, 32
      %v1775 = vpop.permute.xlu0 %1774
      %1776 = vrot.lane.b32.xlu0 %v798, 32
      %v1777 = vpop.permute.xlu0 %1776
      %1778 = vrot.lane.b32.xlu0 %v799, 32
      %v1779 = vpop.permute.xlu0 %1778
      %1780 = vrot.lane.b32.xlu0 %v800, 32
      %v1781 = vpop.permute.xlu0 %1780
      %1782 = vrot.lane.b32.xlu0 %v801, 32
      %v1783 = vpop.permute.xlu0 %1782
      %1784 = vrot.lane.b32.xlu0 %v802, 32
      %v1785 = vpop.permute.xlu0 %1784
      %1786 = vrot.lane.b32.xlu0 %v803, 32
      %v1787 = vpop.permute.xlu0 %1786
      %1788 = vrot.lane.b32.xlu0 %v804, 32
      %v1789 = vpop.permute.xlu0 %1788
      %1790 = vrot.lane.b32.xlu0 %v805, 32
      %v1791 = vpop.permute.xlu0 %1790
      %1792 = vrot.lane.b32.xlu0 %v806, 32
      %v1793 = vpop.permute.xlu0 %1792
      %1794 = vrot.lane.b32.xlu0 %v807, 32
      %v1795 = vpop.permute.xlu0 %1794
      %1796 = vrot.lane.b32.xlu0 %v808, 32
      %v1797 = vpop.permute.xlu0 %1796
      %1798 = vrot.lane.b32.xlu0 %v809, 32
      %v1799 = vpop.permute.xlu0 %1798
      %1800 = vrot.lane.b32.xlu0 %v810, 32
      %v1801 = vpop.permute.xlu0 %1800
      %1802 = vrot.lane.b32.xlu0 %v811, 32
      %v1803 = vpop.permute.xlu0 %1802
      %v1836 = vsel %vm252, %v523, %v845
      %v1837 = vsel %vm252, %v524, %v847
      %v1838 = vsel %vm252, %v525, %v849
      %v1839 = vsel %vm252, %v526, %v851
      %v1840 = vsel %vm252, %v527, %v853
      %v1841 = vsel %vm252, %v528, %v855
      %v1842 = vsel %vm252, %v529, %v857
      %v1843 = vsel %vm252, %v530, %v859
      %v1844 = vsel %vm252, %v531, %v861
      %v1845 = vsel %vm252, %v532, %v863
      %v1846 = vsel %vm252, %v533, %v865
      %v1847 = vsel %vm252, %v534, %v867
      %v1848 = vsel %vm252, %v535, %v869
      %v1849 = vsel %vm252, %v536, %v871
      %v1850 = vsel %vm252, %v537, %v873
      %v1851 = vsel %vm252, %v538, %v875
      %v1852 = vsel %vm252, %v539, %v877
      %v1853 = vsel %vm252, %v540, %v879
      %v1854 = vsel %vm252, %v541, %v881
      %v1855 = vsel %vm252, %v542, %v883
      %v1856 = vsel %vm252, %v543, %v885
      %v1857 = vsel %vm252, %v544, %v887
      %v1858 = vsel %vm252, %v545, %v889
      %v1859 = vsel %vm252, %v546, %v891
      %v1860 = vsel %vm252, %v547, %v893
      %v1861 = vsel %vm252, %v548, %v895
      %v1862 = vsel %vm252, %v549, %v897
      %v1863 = vsel %vm252, %v550, %v899
      %v1864 = vsel %vm252, %v551, %v901
      %v1865 = vsel %vm252, %v552, %v903
      %v1866 = vsel %vm252, %v553, %v905
      %v1867 = vsel %vm252, %v554, %v907
      %vm1868 = vcmask 64512
      %v1869 = vsel %vm1868, %v1836, %v973
      %v1870 = vsel %vm1868, %v1837, %v975
      %v1871 = vsel %vm1868, %v1838, %v977
      %v1872 = vsel %vm1868, %v1839, %v979
      %v1873 = vsel %vm1868, %v1840, %v981
      %v1874 = vsel %vm1868, %v1841, %v983
      %v1875 = vsel %vm1868, %v1842, %v985
      %v1876 = vsel %vm1868, %v1843, %v987
      %v1877 = vsel %vm1868, %v1844, %v989
      %v1878 = vsel %vm1868, %v1845, %v991
      %v1879 = vsel %vm1868, %v1846, %v993
      %v1880 = vsel %vm1868, %v1847, %v995
      %v1881 = vsel %vm1868, %v1848, %v997
      %v1882 = vsel %vm1868, %v1849, %v999
      %v1883 = vsel %vm1868, %v1850, %v1001
      %v1884 = vsel %vm1868, %v1851, %v1003
      %v1885 = vsel %vm1868, %v1852, %v1005
      %v1886 = vsel %vm1868, %v1853, %v1007
      %v1887 = vsel %vm1868, %v1854, %v1009
      %v1888 = vsel %vm1868, %v1855, %v1011
      %v1889 = vsel %vm1868, %v1856, %v1013
      %v1890 = vsel %vm1868, %v1857, %v1015
      %v1891 = vsel %vm1868, %v1858, %v1017
      %v1892 = vsel %vm1868, %v1859, %v1019
      %v1893 = vsel %vm1868, %v1860, %v1021
      %v1894 = vsel %vm1868, %v1861, %v1023
      %v1895 = vsel %vm1868, %v1862, %v1025
      %v1896 = vsel %vm1868, %v1863, %v1027
      %v1897 = vsel %vm1868, %v1864, %v1029
      %v1898 = vsel %vm1868, %v1865, %v1031
      %v1899 = vsel %vm1868, %v1866, %v1033
      %v1900 = vsel %vm1868, %v1867, %v1035
      %vm1901 = vcmask 97280
      %v1902 = vsel %vm1901, %v1869, %v1101
      %v1903 = vsel %vm1901, %v1870, %v1103
      %v1904 = vsel %vm1901, %v1871, %v1105
      %v1905 = vsel %vm1901, %v1872, %v1107
      %v1906 = vsel %vm1901, %v1873, %v1109
      %v1907 = vsel %vm1901, %v1874, %v1111
      %v1908 = vsel %vm1901, %v1875, %v1113
      %v1909 = vsel %vm1901, %v1876, %v1115
      %v1910 = vsel %vm1901, %v1877, %v1117
      %v1911 = vsel %vm1901, %v1878, %v1119
      %v1912 = vsel %vm1901, %v1879, %v1121
      %v1913 = vsel %vm1901, %v1880, %v1123
      %v1914 = vsel %vm1901, %v1881, %v1125
      %v1915 = vsel %vm1901, %v1882, %v1127
      %v1916 = vsel %vm1901, %v1883, %v1129
      %v1917 = vsel %vm1901, %v1884, %v1131
      %v1918 = vsel %vm1901, %v1885, %v1133
      %v1919 = vsel %vm1901, %v1886, %v1135
      %v1920 = vsel %vm1901, %v1887, %v1137
      %v1921 = vsel %vm1901, %v1888, %v1139
      %v1922 = vsel %vm1901, %v1889, %v1141
      %v1923 = vsel %vm1901, %v1890, %v1143
      %v1924 = vsel %vm1901, %v1891, %v1145
      %v1925 = vsel %vm1901, %v1892, %v1147
      %v1926 = vsel %vm1901, %v1893, %v1149
      %v1927 = vsel %vm1901, %v1894, %v1151
      %v1928 = vsel %vm1901, %v1895, %v1153
      %v1929 = vsel %vm1901, %v1896, %v1155
      %v1930 = vsel %vm1901, %v1897, %v1157
      %v1931 = vsel %vm1901, %v1898, %v1159
      %v1932 = vsel %vm1901, %v1899, %v1161
      %v1933 = vsel %vm1901, %v1900, %v1163
      %vm1934 = vcmask 130048
      %v1935 = vsel %vm1934, %v1902, %v1229
      %v1936 = vsel %vm1934, %v1903, %v1231
      %v1937 = vsel %vm1934, %v1904, %v1233
      %v1938 = vsel %vm1934, %v1905, %v1235
      %v1939 = vsel %vm1934, %v1906, %v1237
      %v1940 = vsel %vm1934, %v1907, %v1239
      %v1941 = vsel %vm1934, %v1908, %v1241
      %v1942 = vsel %vm1934, %v1909, %v1243
      %v1943 = vsel %vm1934, %v1910, %v1245
      %v1944 = vsel %vm1934, %v1911, %v1247
      %v1945 = vsel %vm1934, %v1912, %v1249
      %v1946 = vsel %vm1934, %v1913, %v1251
      %v1947 = vsel %vm1934, %v1914, %v1253
      %v1948 = vsel %vm1934, %v1915, %v1255
      %v1949 = vsel %vm1934, %v1916, %v1257
      %v1950 = vsel %vm1934, %v1917, %v1259
      %v1951 = vsel %vm1934, %v1918, %v1261
      %v1952 = vsel %vm1934, %v1919, %v1263
      %v1953 = vsel %vm1934, %v1920, %v1265
      %v1954 = vsel %vm1934, %v1921, %v1267
      %v1955 = vsel %vm1934, %v1922, %v1269
      %v1956 = vsel %vm1934, %v1923, %v1271
      %v1957 = vsel %vm1934, %v1924, %v1273
      %v1958 = vsel %vm1934, %v1925, %v1275
      %v1959 = vsel %vm1934, %v1926, %v1277
      %v1960 = vsel %vm1934, %v1927, %v1279
      %v1961 = vsel %vm1934, %v1928, %v1281
      %v1962 = vsel %vm1934, %v1929, %v1283
      %v1963 = vsel %vm1934, %v1930, %v1285
      %v1964 = vsel %vm1934, %v1931, %v1287
      %v1965 = vsel %vm1934, %v1932, %v1289
      %v1966 = vsel %vm1934, %v1933, %v1291
      %vm1967 = vcmask 162816
      %v1968 = vsel %vm1967, %v1935, %v1357
      %v1969 = vsel %vm1967, %v1936, %v1359
      %v1970 = vsel %vm1967, %v1937, %v1361
      %v1971 = vsel %vm1967, %v1938, %v1363
      %v1972 = vsel %vm1967, %v1939, %v1365
      %v1973 = vsel %vm1967, %v1940, %v1367
      %v1974 = vsel %vm1967, %v1941, %v1369
      %v1975 = vsel %vm1967, %v1942, %v1371
      %v1976 = vsel %vm1967, %v1943, %v1373
      %v1977 = vsel %vm1967, %v1944, %v1375
      %v1978 = vsel %vm1967, %v1945, %v1377
      %v1979 = vsel %vm1967, %v1946, %v1379
      %v1980 = vsel %vm1967, %v1947, %v1381
      %v1981 = vsel %vm1967, %v1948, %v1383
      %v1982 = vsel %vm1967, %v1949, %v1385
      %v1983 = vsel %vm1967, %v1950, %v1387
      %v1984 = vsel %vm1967, %v1951, %v1389
      %v1985 = vsel %vm1967, %v1952, %v1391
      %v1986 = vsel %vm1967, %v1953, %v1393
      %v1987 = vsel %vm1967, %v1954, %v1395
      %v1988 = vsel %vm1967, %v1955, %v1397
      %v1989 = vsel %vm1967, %v1956, %v1399
      %v1990 = vsel %vm1967, %v1957, %v1401
      %v1991 = vsel %vm1967, %v1958, %v1403
      %v1992 = vsel %vm1967, %v1959, %v1405
      %v1993 = vsel %vm1967, %v1960, %v1407
      %v1994 = vsel %vm1967, %v1961, %v1409
      %v1995 = vsel %vm1967, %v1962, %v1411
      %v1996 = vsel %vm1967, %v1963, %v1413
      %v1997 = vsel %vm1967, %v1964, %v1415
      %v1998 = vsel %vm1967, %v1965, %v1417
      %v1999 = vsel %vm1967, %v1966, %v1419
      %vm2000 = vcmask 195584
      %v2001 = vsel %vm2000, %v1968, %v1485
      %v2002 = vsel %vm2000, %v1969, %v1487
      %v2003 = vsel %vm2000, %v1970, %v1489
      %v2004 = vsel %vm2000, %v1971, %v1491
      %v2005 = vsel %vm2000, %v1972, %v1493
      %v2006 = vsel %vm2000, %v1973, %v1495
      %v2007 = vsel %vm2000, %v1974, %v1497
      %v2008 = vsel %vm2000, %v1975, %v1499
      %v2009 = vsel %vm2000, %v1976, %v1501
      %v2010 = vsel %vm2000, %v1977, %v1503
      %v2011 = vsel %vm2000, %v1978, %v1505
      %v2012 = vsel %vm2000, %v1979, %v1507
      %v2013 = vsel %vm2000, %v1980, %v1509
      %v2014 = vsel %vm2000, %v1981, %v1511
      %v2015 = vsel %vm2000, %v1982, %v1513
      %v2016 = vsel %vm2000, %v1983, %v1515
      %v2017 = vsel %vm2000, %v1984, %v1517
      %v2018 = vsel %vm2000, %v1985, %v1519
      %v2019 = vsel %vm2000, %v1986, %v1521
      %v2020 = vsel %vm2000, %v1987, %v1523
      %v2021 = vsel %vm2000, %v1988, %v1525
      %v2022 = vsel %vm2000, %v1989, %v1527
      %v2023 = vsel %vm2000, %v1990, %v1529
      %v2024 = vsel %vm2000, %v1991, %v1531
      %v2025 = vsel %vm2000, %v1992, %v1533
      %v2026 = vsel %vm2000, %v1993, %v1535
      %v2027 = vsel %vm2000, %v1994, %v1537
      %v2028 = vsel %vm2000, %v1995, %v1539
      %v2029 = vsel %vm2000, %v1996, %v1541
      %v2030 = vsel %vm2000, %v1997, %v1543
      %v2031 = vsel %vm2000, %v1998, %v1545
      %v2032 = vsel %vm2000, %v1999, %v1547
      %vm2033 = vcmask 228352
      %v2034 = vsel %vm2033, %v2001, %v1613
      %v2035 = vsel %vm2033, %v2002, %v1615
      %v2036 = vsel %vm2033, %v2003, %v1617
      %v2037 = vsel %vm2033, %v2004, %v1619
      %v2038 = vsel %vm2033, %v2005, %v1621
      %v2039 = vsel %vm2033, %v2006, %v1623
      %v2040 = vsel %vm2033, %v2007, %v1625
      %v2041 = vsel %vm2033, %v2008, %v1627
      %v2042 = vsel %vm2033, %v2009, %v1629
      %v2043 = vsel %vm2033, %v2010, %v1631
      %v2044 = vsel %vm2033, %v2011, %v1633
      %v2045 = vsel %vm2033, %v2012, %v1635
      %v2046 = vsel %vm2033, %v2013, %v1637
      %v2047 = vsel %vm2033, %v2014, %v1639
      %v2048 = vsel %vm2033, %v2015, %v1641
      %v2049 = vsel %vm2033, %v2016, %v1643
      %v2050 = vsel %vm2033, %v2017, %v1645
      %v2051 = vsel %vm2033, %v2018, %v1647
      %v2052 = vsel %vm2033, %v2019, %v1649
      %v2053 = vsel %vm2033, %v2020, %v1651
      %v2054 = vsel %vm2033, %v2021, %v1653
      %v2055 = vsel %vm2033, %v2022, %v1655
      %v2056 = vsel %vm2033, %v2023, %v1657
      %v2057 = vsel %vm2033, %v2024, %v1659
      %v2058 = vsel %vm2033, %v2025, %v1661
      %v2059 = vsel %vm2033, %v2026, %v1663
      %v2060 = vsel %vm2033, %v2027, %v1665
      %v2061 = vsel %vm2033, %v2028, %v1667
      %v2062 = vsel %vm2033, %v2029, %v1669
      %v2063 = vsel %vm2033, %v2030, %v1671
      %v2064 = vsel %vm2033, %v2031, %v1673
      %v2065 = vsel %vm2033, %v2032, %v1675
      %vm2066 = vcmask 261120
      %v2067 = vsel %vm2066, %v2034, %v1741
      %v2068 = vsel %vm2066, %v2035, %v1743
      %v2069 = vsel %vm2066, %v2036, %v1745
      %v2070 = vsel %vm2066, %v2037, %v1747
      %v2071 = vsel %vm2066, %v2038, %v1749
      %v2072 = vsel %vm2066, %v2039, %v1751
      %v2073 = vsel %vm2066, %v2040, %v1753
      %v2074 = vsel %vm2066, %v2041, %v1755
      %v2075 = vsel %vm2066, %v2042, %v1757
      %v2076 = vsel %vm2066, %v2043, %v1759
      %v2077 = vsel %vm2066, %v2044, %v1761
      %v2078 = vsel %vm2066, %v2045, %v1763
      %v2079 = vsel %vm2066, %v2046, %v1765
      %v2080 = vsel %vm2066, %v2047, %v1767
      %v2081 = vsel %vm2066, %v2048, %v1769
      %v2082 = vsel %vm2066, %v2049, %v1771
      %v2083 = vsel %vm2066, %v2050, %v1773
      %v2084 = vsel %vm2066, %v2051, %v1775
      %v2085 = vsel %vm2066, %v2052, %v1777
      %v2086 = vsel %vm2066, %v2053, %v1779
      %v2087 = vsel %vm2066, %v2054, %v1781
      %v2088 = vsel %vm2066, %v2055, %v1783
      %v2089 = vsel %vm2066, %v2056, %v1785
      %v2090 = vsel %vm2066, %v2057, %v1787
      %v2091 = vsel %vm2066, %v2058, %v1789
      %v2092 = vsel %vm2066, %v2059, %v1791
      %v2093 = vsel %vm2066, %v2060, %v1793
      %v2094 = vsel %vm2066, %v2061, %v1795
      %v2095 = vsel %vm2066, %v2062, %v1797
      %v2096 = vsel %vm2066, %v2063, %v1799
      %v2097 = vsel %vm2066, %v2064, %v1801
      %v2098 = vsel %vm2066, %v2065, %v1803
      %v2099 = vld [vmem:[%s1] sm:$0xff]
      %v2100 = vld [vmem:[%s1 + $0x8] sm:$0xff]
      %v2101 = vld [vmem:[%s1 + $0x10] sm:$0xff]
      %v2102 = vld [vmem:[%s1 + $0x18] sm:$0xff]
      %v2103 = vld [vmem:[%s1 + $0x20] sm:$0xf]
      %v2104 = vld [vmem:[%s2] sm:$0x1]
      %v2106 = vlaneseq
      %v2107 = vshrl.u32 %v2106, 7
      %v2108 = vsub.s32 0, %v2107
      %v2109 = vrot.slane %v2104, %v2108
      %vm2111 = vcmask 293888
      %v2113 = vsel %vm2111, %v2067, 0
      %v2116 = vsel %vm2111, %v2068, 0
      %v2119 = vsel %vm2111, %v2069, 0
      %v2122 = vsel %vm2111, %v2070, 0
      %v2125 = vsel %vm2111, %v2071, 0
      %v2128 = vsel %vm2111, %v2072, 0
      %v2131 = vsel %vm2111, %v2073, 0
      %v2134 = vsel %vm2111, %v2074, 0
      %v2137 = vsel %vm2111, %v2075, 0
      %v2140 = vsel %vm2111, %v2076, 0
      %v2143 = vsel %vm2111, %v2077, 0
      %v2146 = vsel %vm2111, %v2078, 0
      %v2149 = vsel %vm2111, %v2079, 0
      %v2152 = vsel %vm2111, %v2080, 0
      %v2155 = vsel %vm2111, %v2081, 0
      %v2158 = vsel %vm2111, %v2082, 0
      %v2161 = vsel %vm2111, %v2083, 0
      %v2164 = vsel %vm2111, %v2084, 0
      %v2167 = vsel %vm2111, %v2085, 0
      %v2170 = vsel %vm2111, %v2086, 0
      %v2173 = vsel %vm2111, %v2087, 0
      %v2176 = vsel %vm2111, %v2088, 0
      %v2179 = vsel %vm2111, %v2089, 0
      %v2182 = vsel %vm2111, %v2090, 0
      %v2185 = vsel %vm2111, %v2091, 0
      %v2188 = vsel %vm2111, %v2092, 0
      %v2191 = vsel %vm2111, %v2093, 0
      %v2194 = vsel %vm2111, %v2094, 0
      %v2197 = vsel %vm2111, %v2095, 0
      %v2200 = vsel %vm2111, %v2096, 0
      %v2203 = vsel %vm2111, %v2097, 0
      %v2206 = vsel %vm2111, %v2098, 0
      %vm2208 = vcmask 1043456
      %v2210 = vsel %vm2208, %v2103, 0
      %2212 = vmatprep.subr.mxu0 0.0
      %2213 = vmatpush1.msra.mxu0 0.0
      %2214 = vmatprep.subr.mxu0 0.0
      %2215 = vmatpush1.msra.mxu0 0.0
      %2216 = vmatprep.subr.mxu0 0.0
      %2217 = vmatpush1.msra.mxu0 0.0
      %2218 = vmatprep.subr.mxu0 0.0
      %2219 = vmatpush1.msra.mxu0 0.0
      %2220 = vmatprep.subr.mxu0 0.0
      %2221 = vmatpush1.msra.mxu0 0.0
      %2222 = vmatprep.subr.mxu0 0.0
      %2223 = vmatpush1.msra.mxu0 0.0
      %2224 = vmatprep.subr.mxu0 0.0
      %2225 = vmatpush1.msra.mxu0 0.0
      %2226 = vmatprep.subr.mxu0 0.0
      %2227 = vmatpush1.msra.mxu0 0.0
      %2228 = vmatprep.subr.mxu0 0.0
      %2229 = vmatpush1.msra.mxu0 0.0
      %2230 = vmatprep.subr.mxu0 0.0
      %2231 = vmatpush1.msra.mxu0 0.0
      %2232 = vmatprep.subr.mxu0 0.0
      %2233 = vmatpush1.msra.mxu0 0.0
      %2234 = vmatprep.subr.mxu0 0.0
      %2235 = vmatpush1.msra.mxu0 %v2210
      %2236 = vmatprep.subr.mxu0 0.0
      %2237 = vmatpush1.msra.mxu0 %v2102
      %2238 = vmatprep.subr.mxu0 0.0
      %2239 = vmatpush1.msra.mxu0 %v2101
      %2240 = vmatprep.subr.mxu0 0.0
      %2241 = vmatpush1.msra.mxu0 %v2100
      %2242 = vmatprep.subr.mxu0 0.0
      %2243 = vmatpush1.msra.mxu0 %v2099
      %2244 = vmatprep.subr.mxu0 0.0
      %2245 = vmatpush2.msra.mxu0 0.0
      %2246 = vmatprep.subr.mxu0 0.0
      %2247 = vmatpush2.msra.mxu0 0.0
      %2248 = vmatprep.subr.mxu0 0.0
      %2249 = vmatpush2.msra.mxu0 0.0
      %2250 = vmatprep.subr.mxu0 0.0
      %2251 = vmatpush2.msra.mxu0 0.0
      %2252 = vmatprep.subr.mxu0 0.0
      %2253 = vmatpush2.msra.mxu0 0.0
      %2254 = vmatprep.subr.mxu0 0.0
      %2255 = vmatpush2.msra.mxu0 0.0
      %2256 = vmatprep.subr.mxu0 0.0
      %2257 = vmatpush2.msra.mxu0 0.0
      %2258 = vmatprep.subr.mxu0 0.0
      %2259 = vmatpush2.msra.mxu0 0.0
      %2260 = vmatprep.subr.mxu0 0.0
      %2261 = vmatpush2.msra.mxu0 0.0
      %2262 = vmatprep.subr.mxu0 0.0
      %2263 = vmatpush2.msra.mxu0 0.0
      %2264 = vmatprep.subr.mxu0 0.0
      %2265 = vmatpush2.msra.mxu0 0.0
      %2266 = vmatprep.subr.mxu0 0.0
      %2267 = vmatpush2.msra.mxu0 0.0
      %2268 = vmatprep.subr.mxu0 0.0
      %2269 = vmatpush2.msra.mxu0 0.0
      %2270 = vmatprep.subr.mxu0 0.0
      %2271 = vmatpush2.msra.mxu0 0.0
      %2272 = vmatprep.subr.mxu0 0.0
      %2273 = vmatpush2.msra.mxu0 0.0
      %2274 = vmatprep.subr.mxu0 0.0
      %2275 = vmatpush2.msra.mxu0 0.0
      %2276 = vmatprep.mubr.f32.mxu0 0.0
      %2277 = vmatmul.mubr.f32.gmra.mxu0 %v2113
      %v2278 = vpop.f32.mrf.mxu0
      %v2279 = vadd.f32 %v2109, %v2278
      %v2280 = vpop.f32.mrf.mxu0
      %2281 = vmatprep.mubr.f32.mxu0 0.0
      %2282 = vmatmul.mubr.f32.gmra.mxu0 %v2116
      %v2283 = vpop.f32.mrf.mxu0
      %v2284 = vadd.f32 %v2109, %v2283
      %v2285 = vpop.f32.mrf.mxu0
      %2286 = vmatprep.mubr.f32.mxu0 0.0
      %2287 = vmatmul.mubr.f32.gmra.mxu0 %v2119
      %v2288 = vpop.f32.mrf.mxu0
      %v2289 = vadd.f32 %v2109, %v2288
      %v2290 = vpop.f32.mrf.mxu0
      %2291 = vmatprep.mubr.f32.mxu0 0.0
      %2292 = vmatmul.mubr.f32.gmra.mxu0 %v2122
      %v2293 = vpop.f32.mrf.mxu0
      %v2294 = vadd.f32 %v2109, %v2293
      %v2295 = vpop.f32.mrf.mxu0
      %2296 = vmatprep.mubr.f32.mxu0 0.0
      %2297 = vmatmul.mubr.f32.gmra.mxu0 %v2125
      %v2298 = vpop.f32.mrf.mxu0
      %v2299 = vadd.f32 %v2109, %v2298
      %v2300 = vpop.f32.mrf.mxu0
      %2301 = vmatprep.mubr.f32.mxu0 0.0
      %2302 = vmatmul.mubr.f32.gmra.mxu0 %v2128
      %v2303 = vpop.f32.mrf.mxu0
      %v2304 = vadd.f32 %v2109, %v2303
      %v2305 = vpop.f32.mrf.mxu0
      %2306 = vmatprep.mubr.f32.mxu0 0.0
      %2307 = vmatmul.mubr.f32.gmra.mxu0 %v2131
      %v2308 = vpop.f32.mrf.mxu0
      %v2309 = vadd.f32 %v2109, %v2308
      %v2310 = vpop.f32.mrf.mxu0
      %2311 = vmatprep.mubr.f32.mxu0 0.0
      %2312 = vmatmul.mubr.f32.gmra.mxu0 %v2134
      %v2313 = vpop.f32.mrf.mxu0
      %v2314 = vadd.f32 %v2109, %v2313
      %v2315 = vpop.f32.mrf.mxu0
      %2316 = vmatprep.mubr.f32.mxu0 0.0
      %2317 = vmatmul.mubr.f32.gmra.mxu0 %v2137
      %v2318 = vpop.f32.mrf.mxu0
      %v2319 = vadd.f32 %v2109, %v2318
      %v2320 = vpop.f32.mrf.mxu0
      %2321 = vmatprep.mubr.f32.mxu0 0.0
      %2322 = vmatmul.mubr.f32.gmra.mxu0 %v2140
      %v2323 = vpop.f32.mrf.mxu0
      %v2324 = vadd.f32 %v2109, %v2323
      %v2325 = vpop.f32.mrf.mxu0
      %2326 = vmatprep.mubr.f32.mxu0 0.0
      %2327 = vmatmul.mubr.f32.gmra.mxu0 %v2143
      %v2328 = vpop.f32.mrf.mxu0
      %v2329 = vadd.f32 %v2109, %v2328
      %v2330 = vpop.f32.mrf.mxu0
      %2331 = vmatprep.mubr.f32.mxu0 0.0
      %2332 = vmatmul.mubr.f32.gmra.mxu0 %v2146
      %v2333 = vpop.f32.mrf.mxu0
      %v2334 = vadd.f32 %v2109, %v2333
      %v2335 = vpop.f32.mrf.mxu0
      %2336 = vmatprep.mubr.f32.mxu0 0.0
      %2337 = vmatmul.mubr.f32.gmra.mxu0 %v2149
      %v2338 = vpop.f32.mrf.mxu0
      %v2339 = vadd.f32 %v2109, %v2338
      %v2340 = vpop.f32.mrf.mxu0
      %2341 = vmatprep.mubr.f32.mxu0 0.0
      %2342 = vmatmul.mubr.f32.gmra.mxu0 %v2152
      %v2343 = vpop.f32.mrf.mxu0
      %v2344 = vadd.f32 %v2109, %v2343
      %v2345 = vpop.f32.mrf.mxu0
      %2346 = vmatprep.mubr.f32.mxu0 0.0
      %2347 = vmatmul.mubr.f32.gmra.mxu0 %v2155
      %v2348 = vpop.f32.mrf.mxu0
      %v2349 = vadd.f32 %v2109, %v2348
      %v2350 = vpop.f32.mrf.mxu0
      %2351 = vmatprep.mubr.f32.mxu0 0.0
      %2352 = vmatmul.mubr.f32.gmra.mxu0 %v2158
      %v2353 = vpop.f32.mrf.mxu0
      %v2354 = vadd.f32 %v2109, %v2353
      %v2355 = vpop.f32.mrf.mxu0
      %2356 = vmatprep.mubr.f32.mxu0 0.0
      %2357 = vmatmul.mubr.f32.gmra.mxu0 %v2161
      %v2358 = vpop.f32.mrf.mxu0
      %v2359 = vadd.f32 %v2109, %v2358
      %v2360 = vpop.f32.mrf.mxu0
      %2361 = vmatprep.mubr.f32.mxu0 0.0
      %2362 = vmatmul.mubr.f32.gmra.mxu0 %v2164
      %v2363 = vpop.f32.mrf.mxu0
      %v2364 = vadd.f32 %v2109, %v2363
      %v2365 = vpop.f32.mrf.mxu0
      %2366 = vmatprep.mubr.f32.mxu0 0.0
      %2367 = vmatmul.mubr.f32.gmra.mxu0 %v2167
      %v2368 = vpop.f32.mrf.mxu0
      %v2369 = vadd.f32 %v2109, %v2368
      %v2370 = vpop.f32.mrf.mxu0
      %2371 = vmatprep.mubr.f32.mxu0 0.0
      %2372 = vmatmul.mubr.f32.gmra.mxu0 %v2170
      %v2373 = vpop.f32.mrf.mxu0
      %v2374 = vadd.f32 %v2109, %v2373
      %v2375 = vpop.f32.mrf.mxu0
      %2376 = vmatprep.mubr.f32.mxu0 0.0
      %2377 = vmatmul.mubr.f32.gmra.mxu0 %v2173
      %v2378 = vpop.f32.mrf.mxu0
      %v2379 = vadd.f32 %v2109, %v2378
      %v2380 = vpop.f32.mrf.mxu0
      %2381 = vmatprep.mubr.f32.mxu0 0.0
      %2382 = vmatmul.mubr.f32.gmra.mxu0 %v2176
      %v2383 = vpop.f32.mrf.mxu0
      %v2384 = vadd.f32 %v2109, %v2383
      %v2385 = vpop.f32.mrf.mxu0
      %2386 = vmatprep.mubr.f32.mxu0 0.0
      %2387 = vmatmul.mubr.f32.gmra.mxu0 %v2179
      %v2388 = vpop.f32.mrf.mxu0
      %v2389 = vadd.f32 %v2109, %v2388
      %v2390 = vpop.f32.mrf.mxu0
      %2391 = vmatprep.mubr.f32.mxu0 0.0
      %2392 = vmatmul.mubr.f32.gmra.mxu0 %v2182
      %v2393 = vpop.f32.mrf.mxu0
      %v2394 = vadd.f32 %v2109, %v2393
      %v2395 = vpop.f32.mrf.mxu0
      %2396 = vmatprep.mubr.f32.mxu0 0.0
      %2397 = vmatmul.mubr.f32.gmra.mxu0 %v2185
      %v2398 = vpop.f32.mrf.mxu0
      %v2399 = vadd.f32 %v2109, %v2398
      %v2400 = vpop.f32.mrf.mxu0
      %2401 = vmatprep.mubr.f32.mxu0 0.0
      %2402 = vmatmul.mubr.f32.gmra.mxu0 %v2188
      %v2403 = vpop.f32.mrf.mxu0
      %v2404 = vadd.f32 %v2109, %v2403
      %v2405 = vpop.f32.mrf.mxu0
      %2406 = vmatprep.mubr.f32.mxu0 0.0
      %2407 = vmatmul.mubr.f32.gmra.mxu0 %v2191
      %v2408 = vpop.f32.mrf.mxu0
      %v2409 = vadd.f32 %v2109, %v2408
      %v2410 = vpop.f32.mrf.mxu0
      %2411 = vmatprep.mubr.f32.mxu0 0.0
      %2412 = vmatmul.mubr.f32.gmra.mxu0 %v2194
      %v2413 = vpop.f32.mrf.mxu0
      %v2414 = vadd.f32 %v2109, %v2413
      %v2415 = vpop.f32.mrf.mxu0
      %2416 = vmatprep.mubr.f32.mxu0 0.0
      %2417 = vmatmul.mubr.f32.gmra.mxu0 %v2197
      %v2418 = vpop.f32.mrf.mxu0
      %v2419 = vadd.f32 %v2109, %v2418
      %v2420 = vpop.f32.mrf.mxu0
      %2421 = vmatprep.mubr.f32.mxu0 0.0
      %2422 = vmatmul.mubr.f32.gmra.mxu0 %v2200
      %v2423 = vpop.f32.mrf.mxu0
      %v2424 = vadd.f32 %v2109, %v2423
      %v2425 = vpop.f32.mrf.mxu0
      %2426 = vmatprep.mubr.f32.mxu0 0.0
      %2427 = vmatmul.mubr.f32.gmra.mxu0 %v2203
      %v2428 = vpop.f32.mrf.mxu0
      %v2429 = vadd.f32 %v2109, %v2428
      %v2430 = vpop.f32.mrf.mxu0
      %2431 = vmatprep.mubr.f32.mxu0 0.0
      %2432 = vmatmul.mubr.f32.gmra.mxu0 %v2206
      %v2433 = vpop.f32.mrf.mxu0
      %v2434 = vadd.f32 %v2109, %v2433
      %v2435 = vpop.f32.mrf.mxu0
      %2436 = vdwg.mxu0
      %vm2437 = vcmp.ge.f32.partialorder %v2279, 0.0
      %vm2438 = vcmp.ge.f32.partialorder %v2284, 0.0
      %vm2439 = vcmp.ge.f32.partialorder %v2289, 0.0
      %vm2440 = vcmp.ge.f32.partialorder %v2294, 0.0
      %vm2441 = vcmp.ge.f32.partialorder %v2299, 0.0
      %vm2442 = vcmp.ge.f32.partialorder %v2304, 0.0
      %vm2443 = vcmp.ge.f32.partialorder %v2309, 0.0
      %vm2444 = vcmp.ge.f32.partialorder %v2314, 0.0
      %vm2445 = vcmp.ge.f32.partialorder %v2319, 0.0
      %vm2446 = vcmp.ge.f32.partialorder %v2324, 0.0
      %vm2447 = vcmp.ge.f32.partialorder %v2329, 0.0
      %vm2448 = vcmp.ge.f32.partialorder %v2334, 0.0
      %vm2449 = vcmp.ge.f32.partialorder %v2339, 0.0
      %vm2450 = vcmp.ge.f32.partialorder %v2344, 0.0
      %vm2451 = vcmp.ge.f32.partialorder %v2349, 0.0
      %vm2452 = vcmp.ge.f32.partialorder %v2354, 0.0
      %vm2453 = vcmp.ge.f32.partialorder %v2359, 0.0
      %vm2454 = vcmp.ge.f32.partialorder %v2364, 0.0
      %vm2455 = vcmp.ge.f32.partialorder %v2369, 0.0
      %vm2456 = vcmp.ge.f32.partialorder %v2374, 0.0
      %vm2457 = vcmp.ge.f32.partialorder %v2379, 0.0
      %vm2458 = vcmp.ge.f32.partialorder %v2384, 0.0
      %vm2459 = vcmp.ge.f32.partialorder %v2389, 0.0
      %vm2460 = vcmp.ge.f32.partialorder %v2394, 0.0
      %vm2461 = vcmp.ge.f32.partialorder %v2399, 0.0
      %vm2462 = vcmp.ge.f32.partialorder %v2404, 0.0
      %vm2463 = vcmp.ge.f32.partialorder %v2409, 0.0
      %vm2464 = vcmp.ge.f32.partialorder %v2414, 0.0
      %vm2465 = vcmp.ge.f32.partialorder %v2419, 0.0
      %vm2466 = vcmp.ge.f32.partialorder %v2424, 0.0
      %vm2467 = vcmp.ge.f32.partialorder %v2429, 0.0
      %vm2468 = vcmp.ge.f32.partialorder %v2434, 0.0
      %v2469 = vmul.f32 %v2279, 0.2
      %v2470 = vmul.f32 %v2284, 0.2
      %v2471 = vmul.f32 %v2289, 0.2
      %v2472 = vmul.f32 %v2294, 0.2
      %v2473 = vmul.f32 %v2299, 0.2
      %v2474 = vmul.f32 %v2304, 0.2
      %v2475 = vmul.f32 %v2309, 0.2
      %v2476 = vmul.f32 %v2314, 0.2
      %v2477 = vmul.f32 %v2319, 0.2
      %v2478 = vmul.f32 %v2324, 0.2
      %v2479 = vmul.f32 %v2329, 0.2
      %v2480 = vmul.f32 %v2334, 0.2
      %v2481 = vmul.f32 %v2339, 0.2
      %v2482 = vmul.f32 %v2344, 0.2
      %v2483 = vmul.f32 %v2349, 0.2
      %v2484 = vmul.f32 %v2354, 0.2
      %v2485 = vmul.f32 %v2359, 0.2
      %v2486 = vmul.f32 %v2364, 0.2
      %v2487 = vmul.f32 %v2369, 0.2
      %v2488 = vmul.f32 %v2374, 0.2
      %v2489 = vmul.f32 %v2379, 0.2
      %v2490 = vmul.f32 %v2384, 0.2
      %v2491 = vmul.f32 %v2389, 0.2
      %v2492 = vmul.f32 %v2394, 0.2
      %v2493 = vmul.f32 %v2399, 0.2
      %v2494 = vmul.f32 %v2404, 0.2
      %v2495 = vmul.f32 %v2409, 0.2
      %v2496 = vmul.f32 %v2414, 0.2
      %v2497 = vmul.f32 %v2419, 0.2
      %v2498 = vmul.f32 %v2424, 0.2
      %v2499 = vmul.f32 %v2429, 0.2
      %v2500 = vmul.f32 %v2434, 0.2
      %v2501 = vsel %vm2437, %v2279, %v2469
      %v2502 = vsel %vm2438, %v2284, %v2470
      %v2503 = vsel %vm2439, %v2289, %v2471
      %v2504 = vsel %vm2440, %v2294, %v2472
      %v2505 = vsel %vm2441, %v2299, %v2473
      %v2506 = vsel %vm2442, %v2304, %v2474
      %v2507 = vsel %vm2443, %v2309, %v2475
      %v2508 = vsel %vm2444, %v2314, %v2476
      %v2509 = vsel %vm2445, %v2319, %v2477
      %v2510 = vsel %vm2446, %v2324, %v2478
      %v2511 = vsel %vm2447, %v2329, %v2479
      %v2512 = vsel %vm2448, %v2334, %v2480
      %v2513 = vsel %vm2449, %v2339, %v2481
      %v2514 = vsel %vm2450, %v2344, %v2482
      %v2515 = vsel %vm2451, %v2349, %v2483
      %v2516 = vsel %vm2452, %v2354, %v2484
      %v2517 = vsel %vm2453, %v2359, %v2485
      %v2518 = vsel %vm2454, %v2364, %v2486
      %v2519 = vsel %vm2455, %v2369, %v2487
      %v2520 = vsel %vm2456, %v2374, %v2488
      %v2521 = vsel %vm2457, %v2379, %v2489
      %v2522 = vsel %vm2458, %v2384, %v2490
      %v2523 = vsel %vm2459, %v2389, %v2491
      %v2524 = vsel %vm2460, %v2394, %v2492
      %v2525 = vsel %vm2461, %v2399, %v2493
      %v2526 = vsel %vm2462, %v2404, %v2494
      %v2527 = vsel %vm2463, %v2409, %v2495
      %v2528 = vsel %vm2464, %v2414, %v2496
      %v2529 = vsel %vm2465, %v2419, %v2497
      %v2530 = vsel %vm2466, %v2424, %v2498
      %v2531 = vsel %vm2467, %v2429, %v2499
      %v2532 = vsel %vm2468, %v2434, %v2500
      %s2533 = scalar_lea.vmem [#allocation3], 24
      %2534 = vst.msk [vmem:[%s2533 + $0x1] sm:$0xff] %vm252, %v2501
      %2535 = vst.msk [vmem:[%s2533 + $0x9] sm:$0xff] %vm252, %v2502
      %2536 = vst.msk [vmem:[%s2533 + $0x19] sm:$0xff] %vm252, %v2503
      %2537 = vst.msk [vmem:[%s2533 + $0x21] sm:$0xff] %vm252, %v2504
      %2538 = vst.msk [vmem:[%s2533 + $0x31] sm:$0xff] %vm252, %v2505
      %2539 = vst.msk [vmem:[%s2533 + $0x39] sm:$0xff] %vm252, %v2506
      %2540 = vst.msk [vmem:[%s2533 + $0x49] sm:$0xff] %vm252, %v2507
      %2541 = vst.msk [vmem:[%s2533 + $0x51] sm:$0xff] %vm252, %v2508
      %2542 = vst.msk [vmem:[%s2533 + $0x61] sm:$0xff] %vm252, %v2509
      %2543 = vst.msk [vmem:[%s2533 + $0x69] sm:$0xff] %vm252, %v2510
      %2544 = vst.msk [vmem:[%s2533 + $0x79] sm:$0xff] %vm252, %v2511
      %2545 = vst.msk [vmem:[%s2533 + $0x81] sm:$0xff] %vm252, %v2512
      %2546 = vst.msk [vmem:[%s2533 + $0x91] sm:$0xff] %vm252, %v2513
      %2547 = vst.msk [vmem:[%s2533 + $0x99] sm:$0xff] %vm252, %v2514
      %2548 = vst.msk [vmem:[%s2533 + $0xa9] sm:$0xff] %vm252, %v2515
      %2549 = vst.msk [vmem:[%s2533 + $0xb1] sm:$0xff] %vm252, %v2516
      %2550 = vst.msk [vmem:[%s2533 + $0xc1] sm:$0xff] %vm252, %v2517
      %2551 = vst.msk [vmem:[%s2533 + $0xc9] sm:$0xff] %vm252, %v2518
      %2552 = vst.msk [vmem:[%s2533 + $0xd9] sm:$0xff] %vm252, %v2519
      %2553 = vst.msk [vmem:[%s2533 + $0xe1] sm:$0xff] %vm252, %v2520
      %2554 = vst.msk [vmem:[%s2533 + $0xf1] sm:$0xff] %vm252, %v2521
      %2555 = vst.msk [vmem:[%s2533 + $0xf9] sm:$0xff] %vm252, %v2522
      %2556 = vst.msk [vmem:[%s2533 + $0x109] sm:$0xff] %vm252, %v2523
      %2557 = vst.msk [vmem:[%s2533 + $0x111] sm:$0xff] %vm252, %v2524
      %2558 = vst.msk [vmem:[%s2533 + $0x121] sm:$0xff] %vm252, %v2525
      %2559 = vst.msk [vmem:[%s2533 + $0x129] sm:$0xff] %vm252, %v2526
      %2560 = vst.msk [vmem:[%s2533 + $0x139] sm:$0xff] %vm252, %v2527
      %2561 = vst.msk [vmem:[%s2533 + $0x141] sm:$0xff] %vm252, %v2528
      %2562 = vst.msk [vmem:[%s2533 + $0x151] sm:$0xff] %vm252, %v2529
      %2563 = vst.msk [vmem:[%s2533 + $0x159] sm:$0xff] %vm252, %v2530
      %2564 = vst.msk [vmem:[%s2533 + $0x169] sm:$0xff] %vm252, %v2531
      %2565 = vst.msk [vmem:[%s2533 + $0x171] sm:$0xff] %vm252, %v2532
      %v2566 = vld [vmem:[#allocation3] sm:$0xff]
      %v2567 = vld [vmem:[#allocation3 + $0x8] sm:$0xff]
      %v2568 = vld [vmem:[#allocation3 + $0x18] sm:$0xff]
      %v2569 = vld [vmem:[#allocation3 + $0x20] sm:$0xff]
      %v2570 = vld [vmem:[#allocation3 + $0x30] sm:$0xff]
      %v2571 = vld [vmem:[#allocation3 + $0x38] sm:$0xff]
      %v2572 = vld [vmem:[#allocation3 + $0x48] sm:$0xff]
      %v2573 = vld [vmem:[#allocation3 + $0x50] sm:$0xff]
      %v2574 = vld [vmem:[#allocation3 + $0x60] sm:$0xff]
      %v2575 = vld [vmem:[#allocation3 + $0x68] sm:$0xff]
      %v2576 = vld [vmem:[#allocation3 + $0x78] sm:$0xff]
      %v2577 = vld [vmem:[#allocation3 + $0x80] sm:$0xff]
      %v2578 = vld [vmem:[#allocation3 + $0x90] sm:$0xff]
      %v2579 = vld [vmem:[#allocation3 + $0x98] sm:$0xff]
      %v2580 = vld [vmem:[#allocation3 + $0xa8] sm:$0xff]
      %v2581 = vld [vmem:[#allocation3 + $0xb0] sm:$0xff]
      %v2582 = vld [vmem:[#allocation3 + $0xc0] sm:$0xff]
      %v2583 = vld [vmem:[#allocation3 + $0xc8] sm:$0xff]
      %v2584 = vld [vmem:[#allocation3 + $0xd8] sm:$0xff]
      %v2585 = vld [vmem:[#allocation3 + $0xe0] sm:$0xff]
      %v2586 = vld [vmem:[#allocation3 + $0xf0] sm:$0xff]
      %v2587 = vld [vmem:[#allocation3 + $0xf8] sm:$0xff]
      %v2588 = vld [vmem:[#allocation3 + $0x108] sm:$0xff]
      %v2589 = vld [vmem:[#allocation3 + $0x110] sm:$0xff]
      %v2590 = vld [vmem:[#allocation3 + $0x120] sm:$0xff]
      %v2591 = vld [vmem:[#allocation3 + $0x128] sm:$0xff]
      %v2592 = vld [vmem:[#allocation3 + $0x138] sm:$0xff]
      %v2593 = vld [vmem:[#allocation3 + $0x140] sm:$0xff]
      %v2594 = vld [vmem:[#allocation3 + $0x150] sm:$0xff]
      %v2595 = vld [vmem:[#allocation3 + $0x158] sm:$0xff]
      %v2596 = vld [vmem:[#allocation3 + $0x168] sm:$0xff]
      %v2597 = vld [vmem:[#allocation3 + $0x170] sm:$0xff]
      %v2598 = vld [vmem:[#allocation3 + $0x1] sm:$0xff]
      %v2599 = vld [vmem:[#allocation3 + $0x9] sm:$0xff]
      %v2600 = vld [vmem:[#allocation3 + $0x19] sm:$0xff]
      %v2601 = vld [vmem:[#allocation3 + $0x21] sm:$0xff]
      %v2602 = vld [vmem:[#allocation3 + $0x31] sm:$0xff]
      %v2603 = vld [vmem:[#allocation3 + $0x39] sm:$0xff]
      %v2604 = vld [vmem:[#allocation3 + $0x49] sm:$0xff]
      %v2605 = vld [vmem:[#allocation3 + $0x51] sm:$0xff]
      %v2606 = vld [vmem:[#allocation3 + $0x61] sm:$0xff]
      %v2607 = vld [vmem:[#allocation3 + $0x69] sm:$0xff]
      %v2608 = vld [vmem:[#allocation3 + $0x79] sm:$0xff]
      %v2609 = vld [vmem:[#allocation3 + $0x81] sm:$0xff]
      %v2610 = vld [vmem:[#allocation3 + $0x91] sm:$0xff]
      %v2611 = vld [vmem:[#allocation3 + $0x99] sm:$0xff]
      %v2612 = vld [vmem:[#allocation3 + $0xa9] sm:$0xff]
      %v2613 = vld [vmem:[#allocation3 + $0xb1] sm:$0xff]
      %v2614 = vld [vmem:[#allocation3 + $0xc1] sm:$0xff]
      %v2615 = vld [vmem:[#allocation3 + $0xc9] sm:$0xff]
      %v2616 = vld [vmem:[#allocation3 + $0xd9] sm:$0xff]
      %v2617 = vld [vmem:[#allocation3 + $0xe1] sm:$0xff]
      %v2618 = vld [vmem:[#allocation3 + $0xf1] sm:$0xff]
      %v2619 = vld [vmem:[#allocation3 + $0xf9] sm:$0xff]
      %v2620 = vld [vmem:[#allocation3 + $0x109] sm:$0xff]
      %v2621 = vld [vmem:[#allocation3 + $0x111] sm:$0xff]
      %v2622 = vld [vmem:[#allocation3 + $0x121] sm:$0xff]
      %v2623 = vld [vmem:[#allocation3 + $0x129] sm:$0xff]
      %v2624 = vld [vmem:[#allocation3 + $0x139] sm:$0xff]
      %v2625 = vld [vmem:[#allocation3 + $0x141] sm:$0xff]
      %v2626 = vld [vmem:[#allocation3 + $0x151] sm:$0xff]
      %v2627 = vld [vmem:[#allocation3 + $0x159] sm:$0xff]
      %v2628 = vld [vmem:[#allocation3 + $0x169] sm:$0xff]
      %v2629 = vld [vmem:[#allocation3 + $0x171] sm:$0xff]
      %v2630 = vld [vmem:[#allocation3 + $0x2] sm:$0xff]
      %v2631 = vld [vmem:[#allocation3 + $0xa] sm:$0xff]
      %v2632 = vld [vmem:[#allocation3 + $0x1a] sm:$0xff]
      %v2633 = vld [vmem:[#allocation3 + $0x22] sm:$0xff]
      %v2634 = vld [vmem:[#allocation3 + $0x32] sm:$0xff]
      %v2635 = vld [vmem:[#allocation3 + $0x3a] sm:$0xff]
      %v2636 = vld [vmem:[#allocation3 + $0x4a] sm:$0xff]
      %v2637 = vld [vmem:[#allocation3 + $0x52] sm:$0xff]
      %v2638 = vld [vmem:[#allocation3 + $0x62] sm:$0xff]
      %v2639 = vld [vmem:[#allocation3 + $0x6a] sm:$0xff]
      %v2640 = vld [vmem:[#allocation3 + $0x7a] sm:$0xff]
      %v2641 = vld [vmem:[#allocation3 + $0x82] sm:$0xff]
      %v2642 = vld [vmem:[#allocation3 + $0x92] sm:$0xff]
      %v2643 = vld [vmem:[#allocation3 + $0x9a] sm:$0xff]
      %v2644 = vld [vmem:[#allocation3 + $0xaa] sm:$0xff]
      %v2645 = vld [vmem:[#allocation3 + $0xb2] sm:$0xff]
      %v2646 = vld [vmem:[#allocation3 + $0xc2] sm:$0xff]
      %v2647 = vld [vmem:[#allocation3 + $0xca] sm:$0xff]
      %v2648 = vld [vmem:[#allocation3 + $0xda] sm:$0xff]
      %v2649 = vld [vmem:[#allocation3 + $0xe2] sm:$0xff]
      %v2650 = vld [vmem:[#allocation3 + $0xf2] sm:$0xff]
      %v2651 = vld [vmem:[#allocation3 + $0xfa] sm:$0xff]
      %v2652 = vld [vmem:[#allocation3 + $0x10a] sm:$0xff]
      %v2653 = vld [vmem:[#allocation3 + $0x112] sm:$0xff]
      %v2654 = vld [vmem:[#allocation3 + $0x122] sm:$0xff]
      %v2655 = vld [vmem:[#allocation3 + $0x12a] sm:$0xff]
      %v2656 = vld [vmem:[#allocation3 + $0x13a] sm:$0xff]
      %v2657 = vld [vmem:[#allocation3 + $0x142] sm:$0xff]
      %v2658 = vld [vmem:[#allocation3 + $0x152] sm:$0xff]
      %v2659 = vld [vmem:[#allocation3 + $0x15a] sm:$0xff]
      %v2660 = vld [vmem:[#allocation3 + $0x16a] sm:$0xff]
      %v2661 = vld [vmem:[#allocation3 + $0x172] sm:$0xff]
      %v2662 = vld [vmem:[%s2533] sm:$0xff]
      %v2663 = vld [vmem:[%s2533 + $0x8] sm:$0xff]
      %v2664 = vld [vmem:[%s2533 + $0x18] sm:$0xff]
      %v2665 = vld [vmem:[%s2533 + $0x20] sm:$0xff]
      %v2666 = vld [vmem:[%s2533 + $0x30] sm:$0xff]
      %v2667 = vld [vmem:[%s2533 + $0x38] sm:$0xff]
      %v2668 = vld [vmem:[%s2533 + $0x48] sm:$0xff]
      %v2669 = vld [vmem:[%s2533 + $0x50] sm:$0xff]
      %v2670 = vld [vmem:[%s2533 + $0x60] sm:$0xff]
      %v2671 = vld [vmem:[%s2533 + $0x68] sm:$0xff]
      %v2672 = vld [vmem:[%s2533 + $0x78] sm:$0xff]
      %v2673 = vld [vmem:[%s2533 + $0x80] sm:$0xff]
      %v2674 = vld [vmem:[%s2533 + $0x90] sm:$0xff]
      %v2675 = vld [vmem:[%s2533 + $0x98] sm:$0xff]
      %v2676 = vld [vmem:[%s2533 + $0xa8] sm:$0xff]
      %v2677 = vld [vmem:[%s2533 + $0xb0] sm:$0xff]
      %v2678 = vld [vmem:[%s2533 + $0xc0] sm:$0xff]
      %v2679 = vld [vmem:[%s2533 + $0xc8] sm:$0xff]
      %v2680 = vld [vmem:[%s2533 + $0xd8] sm:$0xff]
      %v2681 = vld [vmem:[%s2533 + $0xe0] sm:$0xff]
      %v2682 = vld [vmem:[%s2533 + $0xf0] sm:$0xff]
      %v2683 = vld [vmem:[%s2533 + $0xf8] sm:$0xff]
      %v2684 = vld [vmem:[%s2533 + $0x108] sm:$0xff]
      %v2685 = vld [vmem:[%s2533 + $0x110] sm:$0xff]
      %v2686 = vld [vmem:[%s2533 + $0x120] sm:$0xff]
      %v2687 = vld [vmem:[%s2533 + $0x128] sm:$0xff]
      %v2688 = vld [vmem:[%s2533 + $0x138] sm:$0xff]
      %v2689 = vld [vmem:[%s2533 + $0x140] sm:$0xff]
      %v2690 = vld [vmem:[%s2533 + $0x150] sm:$0xff]
      %v2691 = vld [vmem:[%s2533 + $0x158] sm:$0xff]
      %v2692 = vld [vmem:[%s2533 + $0x168] sm:$0xff]
      %v2693 = vld [vmem:[%s2533 + $0x170] sm:$0xff]
      %v2694 = vld [vmem:[%s2533 + $0x1] sm:$0xff]
      %v2695 = vld [vmem:[%s2533 + $0x9] sm:$0xff]
      %v2696 = vld [vmem:[%s2533 + $0x19] sm:$0xff]
      %v2697 = vld [vmem:[%s2533 + $0x21] sm:$0xff]
      %v2698 = vld [vmem:[%s2533 + $0x31] sm:$0xff]
      %v2699 = vld [vmem:[%s2533 + $0x39] sm:$0xff]
      %v2700 = vld [vmem:[%s2533 + $0x49] sm:$0xff]
      %v2701 = vld [vmem:[%s2533 + $0x51] sm:$0xff]
      %v2702 = vld [vmem:[%s2533 + $0x61] sm:$0xff]
      %v2703 = vld [vmem:[%s2533 + $0x69] sm:$0xff]
      %v2704 = vld [vmem:[%s2533 + $0x79] sm:$0xff]
      %v2705 = vld [vmem:[%s2533 + $0x81] sm:$0xff]
      %v2706 = vld [vmem:[%s2533 + $0x91] sm:$0xff]
      %v2707 = vld [vmem:[%s2533 + $0x99] sm:$0xff]
      %v2708 = vld [vmem:[%s2533 + $0xa9] sm:$0xff]
      %v2709 = vld [vmem:[%s2533 + $0xb1] sm:$0xff]
      %v2710 = vld [vmem:[%s2533 + $0xc1] sm:$0xff]
      %v2711 = vld [vmem:[%s2533 + $0xc9] sm:$0xff]
      %v2712 = vld [vmem:[%s2533 + $0xd9] sm:$0xff]
      %v2713 = vld [vmem:[%s2533 + $0xe1] sm:$0xff]
      %v2714 = vld [vmem:[%s2533 + $0xf1] sm:$0xff]
      %v2715 = vld [vmem:[%s2533 + $0xf9] sm:$0xff]
      %v2716 = vld [vmem:[%s2533 + $0x109] sm:$0xff]
      %v2717 = vld [vmem:[%s2533 + $0x111] sm:$0xff]
      %v2718 = vld [vmem:[%s2533 + $0x121] sm:$0xff]
      %v2719 = vld [vmem:[%s2533 + $0x129] sm:$0xff]
      %v2720 = vld [vmem:[%s2533 + $0x139] sm:$0xff]
      %v2721 = vld [vmem:[%s2533 + $0x141] sm:$0xff]
      %v2722 = vld [vmem:[%s2533 + $0x151] sm:$0xff]
      %v2723 = vld [vmem:[%s2533 + $0x159] sm:$0xff]
      %v2724 = vld [vmem:[%s2533 + $0x169] sm:$0xff]
      %v2725 = vld [vmem:[%s2533 + $0x171] sm:$0xff]
      %v2726 = vld [vmem:[%s2533 + $0x2] sm:$0xff]
      %v2727 = vld [vmem:[%s2533 + $0xa] sm:$0xff]
      %v2728 = vld [vmem:[%s2533 + $0x1a] sm:$0xff]
      %v2729 = vld [vmem:[%s2533 + $0x22] sm:$0xff]
      %v2730 = vld [vmem:[%s2533 + $0x32] sm:$0xff]
      %v2731 = vld [vmem:[%s2533 + $0x3a] sm:$0xff]
      %v2732 = vld [vmem:[%s2533 + $0x4a] sm:$0xff]
      %v2733 = vld [vmem:[%s2533 + $0x52] sm:$0xff]
      %v2734 = vld [vmem:[%s2533 + $0x62] sm:$0xff]
      %v2735 = vld [vmem:[%s2533 + $0x6a] sm:$0xff]
      %v2736 = vld [vmem:[%s2533 + $0x7a] sm:$0xff]
      %v2737 = vld [vmem:[%s2533 + $0x82] sm:$0xff]
      %v2738 = vld [vmem:[%s2533 + $0x92] sm:$0xff]
      %v2739 = vld [vmem:[%s2533 + $0x9a] sm:$0xff]
      %v2740 = vld [vmem:[%s2533 + $0xaa] sm:$0xff]
      %v2741 = vld [vmem:[%s2533 + $0xb2] sm:$0xff]
      %v2742 = vld [vmem:[%s2533 + $0xc2] sm:$0xff]
      %v2743 = vld [vmem:[%s2533 + $0xca] sm:$0xff]
      %v2744 = vld [vmem:[%s2533 + $0xda] sm:$0xff]
      %v2745 = vld [vmem:[%s2533 + $0xe2] sm:$0xff]
      %v2746 = vld [vmem:[%s2533 + $0xf2] sm:$0xff]
      %v2747 = vld [vmem:[%s2533 + $0xfa] sm:$0xff]
      %v2748 = vld [vmem:[%s2533 + $0x10a] sm:$0xff]
      %v2749 = vld [vmem:[%s2533 + $0x112] sm:$0xff]
      %v2750 = vld [vmem:[%s2533 + $0x122] sm:$0xff]
      %v2751 = vld [vmem:[%s2533 + $0x12a] sm:$0xff]
      %v2752 = vld [vmem:[%s2533 + $0x13a] sm:$0xff]
      %v2753 = vld [vmem:[%s2533 + $0x142] sm:$0xff]
      %v2754 = vld [vmem:[%s2533 + $0x152] sm:$0xff]
      %v2755 = vld [vmem:[%s2533 + $0x15a] sm:$0xff]
      %v2756 = vld [vmem:[%s2533 + $0x16a] sm:$0xff]
      %v2757 = vld [vmem:[%s2533 + $0x172] sm:$0xff]
      %s2758 = scalar_lea.vmem [#allocation3], 48
      %v2759 = vld [vmem:[%s2758] sm:$0xff]
      %v2760 = vld [vmem:[%s2758 + $0x8] sm:$0xff]
      %v2761 = vld [vmem:[%s2758 + $0x18] sm:$0xff]
      %v2762 = vld [vmem:[%s2758 + $0x20] sm:$0xff]
      %v2763 = vld [vmem:[%s2758 + $0x30] sm:$0xff]
      %v2764 = vld [vmem:[%s2758 + $0x38] sm:$0xff]
      %v2765 = vld [vmem:[%s2758 + $0x48] sm:$0xff]
      %v2766 = vld [vmem:[%s2758 + $0x50] sm:$0xff]
      %v2767 = vld [vmem:[%s2758 + $0x60] sm:$0xff]
      %v2768 = vld [vmem:[%s2758 + $0x68] sm:$0xff]
      %v2769 = vld [vmem:[%s2758 + $0x78] sm:$0xff]
      %v2770 = vld [vmem:[%s2758 + $0x80] sm:$0xff]
      %v2771 = vld [vmem:[%s2758 + $0x90] sm:$0xff]
      %v2772 = vld [vmem:[%s2758 + $0x98] sm:$0xff]
      %v2773 = vld [vmem:[%s2758 + $0xa8] sm:$0xff]
      %v2774 = vld [vmem:[%s2758 + $0xb0] sm:$0xff]
      %v2775 = vld [vmem:[%s2758 + $0xc0] sm:$0xff]
      %v2776 = vld [vmem:[%s2758 + $0xc8] sm:$0xff]
      %v2777 = vld [vmem:[%s2758 + $0xd8] sm:$0xff]
      %v2778 = vld [vmem:[%s2758 + $0xe0] sm:$0xff]
      %v2779 = vld [vmem:[%s2758 + $0xf0] sm:$0xff]
      %v2780 = vld [vmem:[%s2758 + $0xf8] sm:$0xff]
      %v2781 = vld [vmem:[%s2758 + $0x108] sm:$0xff]
      %v2782 = vld [vmem:[%s2758 + $0x110] sm:$0xff]
      %v2783 = vld [vmem:[%s2758 + $0x120] sm:$0xff]
      %v2784 = vld [vmem:[%s2758 + $0x128] sm:$0xff]
      %v2785 = vld [vmem:[%s2758 + $0x138] sm:$0xff]
      %v2786 = vld [vmem:[%s2758 + $0x140] sm:$0xff]
      %v2787 = vld [vmem:[%s2758 + $0x150] sm:$0xff]
      %v2788 = vld [vmem:[%s2758 + $0x158] sm:$0xff]
      %v2789 = vld [vmem:[%s2758 + $0x168] sm:$0xff]
      %v2790 = vld [vmem:[%s2758 + $0x170] sm:$0xff]
      %v2791 = vld [vmem:[%s2758 + $0x1] sm:$0xff]
      %v2792 = vld [vmem:[%s2758 + $0x9] sm:$0xff]
      %v2793 = vld [vmem:[%s2758 + $0x19] sm:$0xff]
      %v2794 = vld [vmem:[%s2758 + $0x21] sm:$0xff]
      %v2795 = vld [vmem:[%s2758 + $0x31] sm:$0xff]
      %v2796 = vld [vmem:[%s2758 + $0x39] sm:$0xff]
      %v2797 = vld [vmem:[%s2758 + $0x49] sm:$0xff]
      %v2798 = vld [vmem:[%s2758 + $0x51] sm:$0xff]
      %v2799 = vld [vmem:[%s2758 + $0x61] sm:$0xff]
      %v2800 = vld [vmem:[%s2758 + $0x69] sm:$0xff]
      %v2801 = vld [vmem:[%s2758 + $0x79] sm:$0xff]
      %v2802 = vld [vmem:[%s2758 + $0x81] sm:$0xff]
      %v2803 = vld [vmem:[%s2758 + $0x91] sm:$0xff]
      %v2804 = vld [vmem:[%s2758 + $0x99] sm:$0xff]
      %v2805 = vld [vmem:[%s2758 + $0xa9] sm:$0xff]
      %v2806 = vld [vmem:[%s2758 + $0xb1] sm:$0xff]
      %v2807 = vld [vmem:[%s2758 + $0xc1] sm:$0xff]
      %v2808 = vld [vmem:[%s2758 + $0xc9] sm:$0xff]
      %v2809 = vld [vmem:[%s2758 + $0xd9] sm:$0xff]
      %v2810 = vld [vmem:[%s2758 + $0xe1] sm:$0xff]
      %v2811 = vld [vmem:[%s2758 + $0xf1] sm:$0xff]
      %v2812 = vld [vmem:[%s2758 + $0xf9] sm:$0xff]
      %v2813 = vld [vmem:[%s2758 + $0x109] sm:$0xff]
      %v2814 = vld [vmem:[%s2758 + $0x111] sm:$0xff]
      %v2815 = vld [vmem:[%s2758 + $0x121] sm:$0xff]
      %v2816 = vld [vmem:[%s2758 + $0x129] sm:$0xff]
      %v2817 = vld [vmem:[%s2758 + $0x139] sm:$0xff]
      %v2818 = vld [vmem:[%s2758 + $0x141] sm:$0xff]
      %v2819 = vld [vmem:[%s2758 + $0x151] sm:$0xff]
      %v2820 = vld [vmem:[%s2758 + $0x159] sm:$0xff]
      %v2821 = vld [vmem:[%s2758 + $0x169] sm:$0xff]
      %v2822 = vld [vmem:[%s2758 + $0x171] sm:$0xff]
      %v2823 = vld [vmem:[%s2758 + $0x2] sm:$0xff]
      %v2824 = vld [vmem:[%s2758 + $0xa] sm:$0xff]
      %v2825 = vld [vmem:[%s2758 + $0x1a] sm:$0xff]
      %v2826 = vld [vmem:[%s2758 + $0x22] sm:$0xff]
      %v2827 = vld [vmem:[%s2758 + $0x32] sm:$0xff]
      %v2828 = vld [vmem:[%s2758 + $0x3a] sm:$0xff]
      %v2829 = vld [vmem:[%s2758 + $0x4a] sm:$0xff]
      %v2830 = vld [vmem:[%s2758 + $0x52] sm:$0xff]
      %v2831 = vld [vmem:[%s2758 + $0x62] sm:$0xff]
      %v2832 = vld [vmem:[%s2758 + $0x6a] sm:$0xff]
      %v2833 = vld [vmem:[%s2758 + $0x7a] sm:$0xff]
      %v2834 = vld [vmem:[%s2758 + $0x82] sm:$0xff]
      %v2835 = vld [vmem:[%s2758 + $0x92] sm:$0xff]
      %v2836 = vld [vmem:[%s2758 + $0x9a] sm:$0xff]
      %v2837 = vld [vmem:[%s2758 + $0xaa] sm:$0xff]
      %v2838 = vld [vmem:[%s2758 + $0xb2] sm:$0xff]
      %v2839 = vld [vmem:[%s2758 + $0xc2] sm:$0xff]
      %v2840 = vld [vmem:[%s2758 + $0xca] sm:$0xff]
      %v2841 = vld [vmem:[%s2758 + $0xda] sm:$0xff]
      %v2842 = vld [vmem:[%s2758 + $0xe2] sm:$0xff]
      %v2843 = vld [vmem:[%s2758 + $0xf2] sm:$0xff]
      %v2844 = vld [vmem:[%s2758 + $0xfa] sm:$0xff]
      %v2845 = vld [vmem:[%s2758 + $0x10a] sm:$0xff]
      %v2846 = vld [vmem:[%s2758 + $0x112] sm:$0xff]
      %v2847 = vld [vmem:[%s2758 + $0x122] sm:$0xff]
      %v2848 = vld [vmem:[%s2758 + $0x12a] sm:$0xff]
      %v2849 = vld [vmem:[%s2758 + $0x13a] sm:$0xff]
      %v2850 = vld [vmem:[%s2758 + $0x142] sm:$0xff]
      %v2851 = vld [vmem:[%s2758 + $0x152] sm:$0xff]
      %v2852 = vld [vmem:[%s2758 + $0x15a] sm:$0xff]
      %v2853 = vld [vmem:[%s2758 + $0x16a] sm:$0xff]
      %v2854 = vld [vmem:[%s2758 + $0x172] sm:$0xff]
      %2887 = vrot.lane.b32.xlu0 %v2598, 4
      %v2888 = vpop.permute.xlu0 %2887
      %2889 = vrot.lane.b32.xlu0 %v2599, 4
      %v2890 = vpop.permute.xlu0 %2889
      %2891 = vrot.lane.b32.xlu0 %v2600, 4
      %v2892 = vpop.permute.xlu0 %2891
      %2893 = vrot.lane.b32.xlu0 %v2601, 4
      %v2894 = vpop.permute.xlu0 %2893
      %2895 = vrot.lane.b32.xlu0 %v2602, 4
      %v2896 = vpop.permute.xlu0 %2895
      %2897 = vrot.lane.b32.xlu0 %v2603, 4
      %v2898 = vpop.permute.xlu0 %2897
      %2899 = vrot.lane.b32.xlu0 %v2604, 4
      %v2900 = vpop.permute.xlu0 %2899
      %2901 = vrot.lane.b32.xlu0 %v2605, 4
      %v2902 = vpop.permute.xlu0 %2901
      %2903 = vrot.lane.b32.xlu0 %v2606, 4
      %v2904 = vpop.permute.xlu0 %2903
      %2905 = vrot.lane.b32.xlu0 %v2607, 4
      %v2906 = vpop.permute.xlu0 %2905
      %2907 = vrot.lane.b32.xlu0 %v2608, 4
      %v2908 = vpop.permute.xlu0 %2907
      %2909 = vrot.lane.b32.xlu0 %v2609, 4
      %v2910 = vpop.permute.xlu0 %2909
      %2911 = vrot.lane.b32.xlu0 %v2610, 4
      %v2912 = vpop.permute.xlu0 %2911
      %2913 = vrot.lane.b32.xlu0 %v2611, 4
      %v2914 = vpop.permute.xlu0 %2913
      %2915 = vrot.lane.b32.xlu0 %v2612, 4
      %v2916 = vpop.permute.xlu0 %2915
      %2917 = vrot.lane.b32.xlu0 %v2613, 4
      %v2918 = vpop.permute.xlu0 %2917
      %2919 = vrot.lane.b32.xlu0 %v2614, 4
      %v2920 = vpop.permute.xlu0 %2919
      %2921 = vrot.lane.b32.xlu0 %v2615, 4
      %v2922 = vpop.permute.xlu0 %2921
      %2923 = vrot.lane.b32.xlu0 %v2616, 4
      %v2924 = vpop.permute.xlu0 %2923
      %2925 = vrot.lane.b32.xlu0 %v2617, 4
      %v2926 = vpop.permute.xlu0 %2925
      %2927 = vrot.lane.b32.xlu0 %v2618, 4
      %v2928 = vpop.permute.xlu0 %2927
      %2929 = vrot.lane.b32.xlu0 %v2619, 4
      %v2930 = vpop.permute.xlu0 %2929
      %2931 = vrot.lane.b32.xlu0 %v2620, 4
      %v2932 = vpop.permute.xlu0 %2931
      %2933 = vrot.lane.b32.xlu0 %v2621, 4
      %v2934 = vpop.permute.xlu0 %2933
      %2935 = vrot.lane.b32.xlu0 %v2622, 4
      %v2936 = vpop.permute.xlu0 %2935
      %2937 = vrot.lane.b32.xlu0 %v2623, 4
      %v2938 = vpop.permute.xlu0 %2937
      %2939 = vrot.lane.b32.xlu0 %v2624, 4
      %v2940 = vpop.permute.xlu0 %2939
      %2941 = vrot.lane.b32.xlu0 %v2625, 4
      %v2942 = vpop.permute.xlu0 %2941
      %2943 = vrot.lane.b32.xlu0 %v2626, 4
      %v2944 = vpop.permute.xlu0 %2943
      %2945 = vrot.lane.b32.xlu0 %v2627, 4
      %v2946 = vpop.permute.xlu0 %2945
      %2947 = vrot.lane.b32.xlu0 %v2628, 4
      %v2948 = vpop.permute.xlu0 %2947
      %2949 = vrot.lane.b32.xlu0 %v2629, 4
      %v2950 = vpop.permute.xlu0 %2949
      %3015 = vrot.lane.b32.xlu0 %v2630, 8
      %v3016 = vpop.permute.xlu0 %3015
      %3017 = vrot.lane.b32.xlu0 %v2631, 8
      %v3018 = vpop.permute.xlu0 %3017
      %3019 = vrot.lane.b32.xlu0 %v2632, 8
      %v3020 = vpop.permute.xlu0 %3019
      %3021 = vrot.lane.b32.xlu0 %v2633, 8
      %v3022 = vpop.permute.xlu0 %3021
      %3023 = vrot.lane.b32.xlu0 %v2634, 8
      %v3024 = vpop.permute.xlu0 %3023
      %3025 = vrot.lane.b32.xlu0 %v2635, 8
      %v3026 = vpop.permute.xlu0 %3025
      %3027 = vrot.lane.b32.xlu0 %v2636, 8
      %v3028 = vpop.permute.xlu0 %3027
      %3029 = vrot.lane.b32.xlu0 %v2637, 8
      %v3030 = vpop.permute.xlu0 %3029
      %3031 = vrot.lane.b32.xlu0 %v2638, 8
      %v3032 = vpop.permute.xlu0 %3031
      %3033 = vrot.lane.b32.xlu0 %v2639, 8
      %v3034 = vpop.permute.xlu0 %3033
      %3035 = vrot.lane.b32.xlu0 %v2640, 8
      %v3036 = vpop.permute.xlu0 %3035
      %3037 = vrot.lane.b32.xlu0 %v2641, 8
      %v3038 = vpop.permute.xlu0 %3037
      %3039 = vrot.lane.b32.xlu0 %v2642, 8
      %v3040 = vpop.permute.xlu0 %3039
      %3041 = vrot.lane.b32.xlu0 %v2643, 8
      %v3042 = vpop.permute.xlu0 %3041
      %3043 = vrot.lane.b32.xlu0 %v2644, 8
      %v3044 = vpop.permute.xlu0 %3043
      %3045 = vrot.lane.b32.xlu0 %v2645, 8
      %v3046 = vpop.permute.xlu0 %3045
      %3047 = vrot.lane.b32.xlu0 %v2646, 8
      %v3048 = vpop.permute.xlu0 %3047
      %3049 = vrot.lane.b32.xlu0 %v2647, 8
      %v3050 = vpop.permute.xlu0 %3049
      %3051 = vrot.lane.b32.xlu0 %v2648, 8
      %v3052 = vpop.permute.xlu0 %3051
      %3053 = vrot.lane.b32.xlu0 %v2649, 8
      %v3054 = vpop.permute.xlu0 %3053
      %3055 = vrot.lane.b32.xlu0 %v2650, 8
      %v3056 = vpop.permute.xlu0 %3055
      %3057 = vrot.lane.b32.xlu0 %v2651, 8
      %v3058 = vpop.permute.xlu0 %3057
      %3059 = vrot.lane.b32.xlu0 %v2652, 8
      %v3060 = vpop.permute.xlu0 %3059
      %3061 = vrot.lane.b32.xlu0 %v2653, 8
      %v3062 = vpop.permute.xlu0 %3061
      %3063 = vrot.lane.b32.xlu0 %v2654, 8
      %v3064 = vpop.permute.xlu0 %3063
      %3065 = vrot.lane.b32.xlu0 %v2655, 8
      %v3066 = vpop.permute.xlu0 %3065
      %3067 = vrot.lane.b32.xlu0 %v2656, 8
      %v3068 = vpop.permute.xlu0 %3067
      %3069 = vrot.lane.b32.xlu0 %v2657, 8
      %v3070 = vpop.permute.xlu0 %3069
      %3071 = vrot.lane.b32.xlu0 %v2658, 8
      %v3072 = vpop.permute.xlu0 %3071
      %3073 = vrot.lane.b32.xlu0 %v2659, 8
      %v3074 = vpop.permute.xlu0 %3073
      %3075 = vrot.lane.b32.xlu0 %v2660, 8
      %v3076 = vpop.permute.xlu0 %3075
      %3077 = vrot.lane.b32.xlu0 %v2661, 8
      %v3078 = vpop.permute.xlu0 %3077
      %3143 = vrot.lane.b32.xlu0 %v2662, 12
      %v3144 = vpop.permute.xlu0 %3143
      %3145 = vrot.lane.b32.xlu0 %v2663, 12
      %v3146 = vpop.permute.xlu0 %3145
      %3147 = vrot.lane.b32.xlu0 %v2664, 12
      %v3148 = vpop.permute.xlu0 %3147
      %3149 = vrot.lane.b32.xlu0 %v2665, 12
      %v3150 = vpop.permute.xlu0 %3149
      %3151 = vrot.lane.b32.xlu0 %v2666, 12
      %v3152 = vpop.permute.xlu0 %3151
      %3153 = vrot.lane.b32.xlu0 %v2667, 12
      %v3154 = vpop.permute.xlu0 %3153
      %3155 = vrot.lane.b32.xlu0 %v2668, 12
      %v3156 = vpop.permute.xlu0 %3155
      %3157 = vrot.lane.b32.xlu0 %v2669, 12
      %v3158 = vpop.permute.xlu0 %3157
      %3159 = vrot.lane.b32.xlu0 %v2670, 12
      %v3160 = vpop.permute.xlu0 %3159
      %3161 = vrot.lane.b32.xlu0 %v2671, 12
      %v3162 = vpop.permute.xlu0 %3161
      %3163 = vrot.lane.b32.xlu0 %v2672, 12
      %v3164 = vpop.permute.xlu0 %3163
      %3165 = vrot.lane.b32.xlu0 %v2673, 12
      %v3166 = vpop.permute.xlu0 %3165
      %3167 = vrot.lane.b32.xlu0 %v2674, 12
      %v3168 = vpop.permute.xlu0 %3167
      %3169 = vrot.lane.b32.xlu0 %v2675, 12
      %v3170 = vpop.permute.xlu0 %3169
      %3171 = vrot.lane.b32.xlu0 %v2676, 12
      %v3172 = vpop.permute.xlu0 %3171
      %3173 = vrot.lane.b32.xlu0 %v2677, 12
      %v3174 = vpop.permute.xlu0 %3173
      %3175 = vrot.lane.b32.xlu0 %v2678, 12
      %v3176 = vpop.permute.xlu0 %3175
      %3177 = vrot.lane.b32.xlu0 %v2679, 12
      %v3178 = vpop.permute.xlu0 %3177
      %3179 = vrot.lane.b32.xlu0 %v2680, 12
      %v3180 = vpop.permute.xlu0 %3179
      %3181 = vrot.lane.b32.xlu0 %v2681, 12
      %v3182 = vpop.permute.xlu0 %3181
      %3183 = vrot.lane.b32.xlu0 %v2682, 12
      %v3184 = vpop.permute.xlu0 %3183
      %3185 = vrot.lane.b32.xlu0 %v2683, 12
      %v3186 = vpop.permute.xlu0 %3185
      %3187 = vrot.lane.b32.xlu0 %v2684, 12
      %v3188 = vpop.permute.xlu0 %3187
      %3189 = vrot.lane.b32.xlu0 %v2685, 12
      %v3190 = vpop.permute.xlu0 %3189
      %3191 = vrot.lane.b32.xlu0 %v2686, 12
      %v3192 = vpop.permute.xlu0 %3191
      %3193 = vrot.lane.b32.xlu0 %v2687, 12
      %v3194 = vpop.permute.xlu0 %3193
      %3195 = vrot.lane.b32.xlu0 %v2688, 12
      %v3196 = vpop.permute.xlu0 %3195
      %3197 = vrot.lane.b32.xlu0 %v2689, 12
      %v3198 = vpop.permute.xlu0 %3197
      %3199 = vrot.lane.b32.xlu0 %v2690, 12
      %v3200 = vpop.permute.xlu0 %3199
      %3201 = vrot.lane.b32.xlu0 %v2691, 12
      %v3202 = vpop.permute.xlu0 %3201
      %3203 = vrot.lane.b32.xlu0 %v2692, 12
      %v3204 = vpop.permute.xlu0 %3203
      %3205 = vrot.lane.b32.xlu0 %v2693, 12
      %v3206 = vpop.permute.xlu0 %3205
      %3271 = vrot.lane.b32.xlu0 %v2694, 16
      %v3272 = vpop.permute.xlu0 %3271
      %3273 = vrot.lane.b32.xlu0 %v2695, 16
      %v3274 = vpop.permute.xlu0 %3273
      %3275 = vrot.lane.b32.xlu0 %v2696, 16
      %v3276 = vpop.permute.xlu0 %3275
      %3277 = vrot.lane.b32.xlu0 %v2697, 16
      %v3278 = vpop.permute.xlu0 %3277
      %3279 = vrot.lane.b32.xlu0 %v2698, 16
      %v3280 = vpop.permute.xlu0 %3279
      %3281 = vrot.lane.b32.xlu0 %v2699, 16
      %v3282 = vpop.permute.xlu0 %3281
      %3283 = vrot.lane.b32.xlu0 %v2700, 16
      %v3284 = vpop.permute.xlu0 %3283
      %3285 = vrot.lane.b32.xlu0 %v2701, 16
      %v3286 = vpop.permute.xlu0 %3285
      %3287 = vrot.lane.b32.xlu0 %v2702, 16
      %v3288 = vpop.permute.xlu0 %3287
      %3289 = vrot.lane.b32.xlu0 %v2703, 16
      %v3290 = vpop.permute.xlu0 %3289
      %3291 = vrot.lane.b32.xlu0 %v2704, 16
      %v3292 = vpop.permute.xlu0 %3291
      %3293 = vrot.lane.b32.xlu0 %v2705, 16
      %v3294 = vpop.permute.xlu0 %3293
      %3295 = vrot.lane.b32.xlu0 %v2706, 16
      %v3296 = vpop.permute.xlu0 %3295
      %3297 = vrot.lane.b32.xlu0 %v2707, 16
      %v3298 = vpop.permute.xlu0 %3297
      %3299 = vrot.lane.b32.xlu0 %v2708, 16
      %v3300 = vpop.permute.xlu0 %3299
      %3301 = vrot.lane.b32.xlu0 %v2709, 16
      %v3302 = vpop.permute.xlu0 %3301
      %3303 = vrot.lane.b32.xlu0 %v2710, 16
      %v3304 = vpop.permute.xlu0 %3303
      %3305 = vrot.lane.b32.xlu0 %v2711, 16
      %v3306 = vpop.permute.xlu0 %3305
      %3307 = vrot.lane.b32.xlu0 %v2712, 16
      %v3308 = vpop.permute.xlu0 %3307
      %3309 = vrot.lane.b32.xlu0 %v2713, 16
      %v3310 = vpop.permute.xlu0 %3309
      %3311 = vrot.lane.b32.xlu0 %v2714, 16
      %v3312 = vpop.permute.xlu0 %3311
      %3313 = vrot.lane.b32.xlu0 %v2715, 16
      %v3314 = vpop.permute.xlu0 %3313
      %3315 = vrot.lane.b32.xlu0 %v2716, 16
      %v3316 = vpop.permute.xlu0 %3315
      %3317 = vrot.lane.b32.xlu0 %v2717, 16
      %v3318 = vpop.permute.xlu0 %3317
      %3319 = vrot.lane.b32.xlu0 %v2718, 16
      %v3320 = vpop.permute.xlu0 %3319
      %3321 = vrot.lane.b32.xlu0 %v2719, 16
      %v3322 = vpop.permute.xlu0 %3321
      %3323 = vrot.lane.b32.xlu0 %v2720, 16
      %v3324 = vpop.permute.xlu0 %3323
      %3325 = vrot.lane.b32.xlu0 %v2721, 16
      %v3326 = vpop.permute.xlu0 %3325
      %3327 = vrot.lane.b32.xlu0 %v2722, 16
      %v3328 = vpop.permute.xlu0 %3327
      %3329 = vrot.lane.b32.xlu0 %v2723, 16
      %v3330 = vpop.permute.xlu0 %3329
      %3331 = vrot.lane.b32.xlu0 %v2724, 16
      %v3332 = vpop.permute.xlu0 %3331
      %3333 = vrot.lane.b32.xlu0 %v2725, 16
      %v3334 = vpop.permute.xlu0 %3333
      %3399 = vrot.lane.b32.xlu0 %v2726, 20
      %v3400 = vpop.permute.xlu0 %3399
      %3401 = vrot.lane.b32.xlu0 %v2727, 20
      %v3402 = vpop.permute.xlu0 %3401
      %3403 = vrot.lane.b32.xlu0 %v2728, 20
      %v3404 = vpop.permute.xlu0 %3403
      %3405 = vrot.lane.b32.xlu0 %v2729, 20
      %v3406 = vpop.permute.xlu0 %3405
      %3407 = vrot.lane.b32.xlu0 %v2730, 20
      %v3408 = vpop.permute.xlu0 %3407
      %3409 = vrot.lane.b32.xlu0 %v2731, 20
      %v3410 = vpop.permute.xlu0 %3409
      %3411 = vrot.lane.b32.xlu0 %v2732, 20
      %v3412 = vpop.permute.xlu0 %3411
      %3413 = vrot.lane.b32.xlu0 %v2733, 20
      %v3414 = vpop.permute.xlu0 %3413
      %3415 = vrot.lane.b32.xlu0 %v2734, 20
      %v3416 = vpop.permute.xlu0 %3415
      %3417 = vrot.lane.b32.xlu0 %v2735, 20
      %v3418 = vpop.permute.xlu0 %3417
      %3419 = vrot.lane.b32.xlu0 %v2736, 20
      %v3420 = vpop.permute.xlu0 %3419
      %3421 = vrot.lane.b32.xlu0 %v2737, 20
      %v3422 = vpop.permute.xlu0 %3421
      %3423 = vrot.lane.b32.xlu0 %v2738, 20
      %v3424 = vpop.permute.xlu0 %3423
      %3425 = vrot.lane.b32.xlu0 %v2739, 20
      %v3426 = vpop.permute.xlu0 %3425
      %3427 = vrot.lane.b32.xlu0 %v2740, 20
      %v3428 = vpop.permute.xlu0 %3427
      %3429 = vrot.lane.b32.xlu0 %v2741, 20
      %v3430 = vpop.permute.xlu0 %3429
      %3431 = vrot.lane.b32.xlu0 %v2742, 20
      %v3432 = vpop.permute.xlu0 %3431
      %3433 = vrot.lane.b32.xlu0 %v2743, 20
      %v3434 = vpop.permute.xlu0 %3433
      %3435 = vrot.lane.b32.xlu0 %v2744, 20
      %v3436 = vpop.permute.xlu0 %3435
      %3437 = vrot.lane.b32.xlu0 %v2745, 20
      %v3438 = vpop.permute.xlu0 %3437
      %3439 = vrot.lane.b32.xlu0 %v2746, 20
      %v3440 = vpop.permute.xlu0 %3439
      %3441 = vrot.lane.b32.xlu0 %v2747, 20
      %v3442 = vpop.permute.xlu0 %3441
      %3443 = vrot.lane.b32.xlu0 %v2748, 20
      %v3444 = vpop.permute.xlu0 %3443
      %3445 = vrot.lane.b32.xlu0 %v2749, 20
      %v3446 = vpop.permute.xlu0 %3445
      %3447 = vrot.lane.b32.xlu0 %v2750, 20
      %v3448 = vpop.permute.xlu0 %3447
      %3449 = vrot.lane.b32.xlu0 %v2751, 20
      %v3450 = vpop.permute.xlu0 %3449
      %3451 = vrot.lane.b32.xlu0 %v2752, 20
      %v3452 = vpop.permute.xlu0 %3451
      %3453 = vrot.lane.b32.xlu0 %v2753, 20
      %v3454 = vpop.permute.xlu0 %3453
      %3455 = vrot.lane.b32.xlu0 %v2754, 20
      %v3456 = vpop.permute.xlu0 %3455
      %3457 = vrot.lane.b32.xlu0 %v2755, 20
      %v3458 = vpop.permute.xlu0 %3457
      %3459 = vrot.lane.b32.xlu0 %v2756, 20
      %v3460 = vpop.permute.xlu0 %3459
      %3461 = vrot.lane.b32.xlu0 %v2757, 20
      %v3462 = vpop.permute.xlu0 %3461
      %3527 = vrot.lane.b32.xlu0 %v2759, 24
      %v3528 = vpop.permute.xlu0 %3527
      %3529 = vrot.lane.b32.xlu0 %v2760, 24
      %v3530 = vpop.permute.xlu0 %3529
      %3531 = vrot.lane.b32.xlu0 %v2761, 24
      %v3532 = vpop.permute.xlu0 %3531
      %3533 = vrot.lane.b32.xlu0 %v2762, 24
      %v3534 = vpop.permute.xlu0 %3533
      %3535 = vrot.lane.b32.xlu0 %v2763, 24
      %v3536 = vpop.permute.xlu0 %3535
      %3537 = vrot.lane.b32.xlu0 %v2764, 24
      %v3538 = vpop.permute.xlu0 %3537
      %3539 = vrot.lane.b32.xlu0 %v2765, 24
      %v3540 = vpop.permute.xlu0 %3539
      %3541 = vrot.lane.b32.xlu0 %v2766, 24
      %v3542 = vpop.permute.xlu0 %3541
      %3543 = vrot.lane.b32.xlu0 %v2767, 24
      %v3544 = vpop.permute.xlu0 %3543
      %3545 = vrot.lane.b32.xlu0 %v2768, 24
      %v3546 = vpop.permute.xlu0 %3545
      %3547 = vrot.lane.b32.xlu0 %v2769, 24
      %v3548 = vpop.permute.xlu0 %3547
      %3549 = vrot.lane.b32.xlu0 %v2770, 24
      %v3550 = vpop.permute.xlu0 %3549
      %3551 = vrot.lane.b32.xlu0 %v2771, 24
      %v3552 = vpop.permute.xlu0 %3551
      %3553 = vrot.lane.b32.xlu0 %v2772, 24
      %v3554 = vpop.permute.xlu0 %3553
      %3555 = vrot.lane.b32.xlu0 %v2773, 24
      %v3556 = vpop.permute.xlu0 %3555
      %3557 = vrot.lane.b32.xlu0 %v2774, 24
      %v3558 = vpop.permute.xlu0 %3557
      %3559 = vrot.lane.b32.xlu0 %v2775, 24
      %v3560 = vpop.permute.xlu0 %3559
      %3561 = vrot.lane.b32.xlu0 %v2776, 24
      %v3562 = vpop.permute.xlu0 %3561
      %3563 = vrot.lane.b32.xlu0 %v2777, 24
      %v3564 = vpop.permute.xlu0 %3563
      %3565 = vrot.lane.b32.xlu0 %v2778, 24
      %v3566 = vpop.permute.xlu0 %3565
      %3567 = vrot.lane.b32.xlu0 %v2779, 24
      %v3568 = vpop.permute.xlu0 %3567
      %3569 = vrot.lane.b32.xlu0 %v2780, 24
      %v3570 = vpop.permute.xlu0 %3569
      %3571 = vrot.lane.b32.xlu0 %v2781, 24
      %v3572 = vpop.permute.xlu0 %3571
      %3573 = vrot.lane.b32.xlu0 %v2782, 24
      %v3574 = vpop.permute.xlu0 %3573
      %3575 = vrot.lane.b32.xlu0 %v2783, 24
      %v3576 = vpop.permute.xlu0 %3575
      %3577 = vrot.lane.b32.xlu0 %v2784, 24
      %v3578 = vpop.permute.xlu0 %3577
      %3579 = vrot.lane.b32.xlu0 %v2785, 24
      %v3580 = vpop.permute.xlu0 %3579
      %3581 = vrot.lane.b32.xlu0 %v2786, 24
      %v3582 = vpop.permute.xlu0 %3581
      %3583 = vrot.lane.b32.xlu0 %v2787, 24
      %v3584 = vpop.permute.xlu0 %3583
      %3585 = vrot.lane.b32.xlu0 %v2788, 24
      %v3586 = vpop.permute.xlu0 %3585
      %3587 = vrot.lane.b32.xlu0 %v2789, 24
      %v3588 = vpop.permute.xlu0 %3587
      %3589 = vrot.lane.b32.xlu0 %v2790, 24
      %v3590 = vpop.permute.xlu0 %3589
      %3655 = vrot.lane.b32.xlu0 %v2791, 28
      %v3656 = vpop.permute.xlu0 %3655
      %3657 = vrot.lane.b32.xlu0 %v2792, 28
      %v3658 = vpop.permute.xlu0 %3657
      %3659 = vrot.lane.b32.xlu0 %v2793, 28
      %v3660 = vpop.permute.xlu0 %3659
      %3661 = vrot.lane.b32.xlu0 %v2794, 28
      %v3662 = vpop.permute.xlu0 %3661
      %3663 = vrot.lane.b32.xlu0 %v2795, 28
      %v3664 = vpop.permute.xlu0 %3663
      %3665 = vrot.lane.b32.xlu0 %v2796, 28
      %v3666 = vpop.permute.xlu0 %3665
      %3667 = vrot.lane.b32.xlu0 %v2797, 28
      %v3668 = vpop.permute.xlu0 %3667
      %3669 = vrot.lane.b32.xlu0 %v2798, 28
      %v3670 = vpop.permute.xlu0 %3669
      %3671 = vrot.lane.b32.xlu0 %v2799, 28
      %v3672 = vpop.permute.xlu0 %3671
      %3673 = vrot.lane.b32.xlu0 %v2800, 28
      %v3674 = vpop.permute.xlu0 %3673
      %3675 = vrot.lane.b32.xlu0 %v2801, 28
      %v3676 = vpop.permute.xlu0 %3675
      %3677 = vrot.lane.b32.xlu0 %v2802, 28
      %v3678 = vpop.permute.xlu0 %3677
      %3679 = vrot.lane.b32.xlu0 %v2803, 28
      %v3680 = vpop.permute.xlu0 %3679
      %3681 = vrot.lane.b32.xlu0 %v2804, 28
      %v3682 = vpop.permute.xlu0 %3681
      %3683 = vrot.lane.b32.xlu0 %v2805, 28
      %v3684 = vpop.permute.xlu0 %3683
      %3685 = vrot.lane.b32.xlu0 %v2806, 28
      %v3686 = vpop.permute.xlu0 %3685
      %3687 = vrot.lane.b32.xlu0 %v2807, 28
      %v3688 = vpop.permute.xlu0 %3687
      %3689 = vrot.lane.b32.xlu0 %v2808, 28
      %v3690 = vpop.permute.xlu0 %3689
      %3691 = vrot.lane.b32.xlu0 %v2809, 28
      %v3692 = vpop.permute.xlu0 %3691
      %3693 = vrot.lane.b32.xlu0 %v2810, 28
      %v3694 = vpop.permute.xlu0 %3693
      %3695 = vrot.lane.b32.xlu0 %v2811, 28
      %v3696 = vpop.permute.xlu0 %3695
      %3697 = vrot.lane.b32.xlu0 %v2812, 28
      %v3698 = vpop.permute.xlu0 %3697
      %3699 = vrot.lane.b32.xlu0 %v2813, 28
      %v3700 = vpop.permute.xlu0 %3699
      %3701 = vrot.lane.b32.xlu0 %v2814, 28
      %v3702 = vpop.permute.xlu0 %3701
      %3703 = vrot.lane.b32.xlu0 %v2815, 28
      %v3704 = vpop.permute.xlu0 %3703
      %3705 = vrot.lane.b32.xlu0 %v2816, 28
      %v3706 = vpop.permute.xlu0 %3705
      %3707 = vrot.lane.b32.xlu0 %v2817, 28
      %v3708 = vpop.permute.xlu0 %3707
      %3709 = vrot.lane.b32.xlu0 %v2818, 28
      %v3710 = vpop.permute.xlu0 %3709
      %3711 = vrot.lane.b32.xlu0 %v2819, 28
      %v3712 = vpop.permute.xlu0 %3711
      %3713 = vrot.lane.b32.xlu0 %v2820, 28
      %v3714 = vpop.permute.xlu0 %3713
      %3715 = vrot.lane.b32.xlu0 %v2821, 28
      %v3716 = vpop.permute.xlu0 %3715
      %3717 = vrot.lane.b32.xlu0 %v2822, 28
      %v3718 = vpop.permute.xlu0 %3717
      %3783 = vrot.lane.b32.xlu0 %v2823, 32
      %v3784 = vpop.permute.xlu0 %3783
      %3785 = vrot.lane.b32.xlu0 %v2824, 32
      %v3786 = vpop.permute.xlu0 %3785
      %3787 = vrot.lane.b32.xlu0 %v2825, 32
      %v3788 = vpop.permute.xlu0 %3787
      %3789 = vrot.lane.b32.xlu0 %v2826, 32
      %v3790 = vpop.permute.xlu0 %3789
      %3791 = vrot.lane.b32.xlu0 %v2827, 32
      %v3792 = vpop.permute.xlu0 %3791
      %3793 = vrot.lane.b32.xlu0 %v2828, 32
      %v3794 = vpop.permute.xlu0 %3793
      %3795 = vrot.lane.b32.xlu0 %v2829, 32
      %v3796 = vpop.permute.xlu0 %3795
      %3797 = vrot.lane.b32.xlu0 %v2830, 32
      %v3798 = vpop.permute.xlu0 %3797
      %3799 = vrot.lane.b32.xlu0 %v2831, 32
      %v3800 = vpop.permute.xlu0 %3799
      %3801 = vrot.lane.b32.xlu0 %v2832, 32
      %v3802 = vpop.permute.xlu0 %3801
      %3803 = vrot.lane.b32.xlu0 %v2833, 32
      %v3804 = vpop.permute.xlu0 %3803
      %3805 = vrot.lane.b32.xlu0 %v2834, 32
      %v3806 = vpop.permute.xlu0 %3805
      %3807 = vrot.lane.b32.xlu0 %v2835, 32
      %v3808 = vpop.permute.xlu0 %3807
      %3809 = vrot.lane.b32.xlu0 %v2836, 32
      %v3810 = vpop.permute.xlu0 %3809
      %3811 = vrot.lane.b32.xlu0 %v2837, 32
      %v3812 = vpop.permute.xlu0 %3811
      %3813 = vrot.lane.b32.xlu0 %v2838, 32
      %v3814 = vpop.permute.xlu0 %3813
      %3815 = vrot.lane.b32.xlu0 %v2839, 32
      %v3816 = vpop.permute.xlu0 %3815
      %3817 = vrot.lane.b32.xlu0 %v2840, 32
      %v3818 = vpop.permute.xlu0 %3817
      %3819 = vrot.lane.b32.xlu0 %v2841, 32
      %v3820 = vpop.permute.xlu0 %3819
      %3821 = vrot.lane.b32.xlu0 %v2842, 32
      %v3822 = vpop.permute.xlu0 %3821
      %3823 = vrot.lane.b32.xlu0 %v2843, 32
      %v3824 = vpop.permute.xlu0 %3823
      %3825 = vrot.lane.b32.xlu0 %v2844, 32
      %v3826 = vpop.permute.xlu0 %3825
      %3827 = vrot.lane.b32.xlu0 %v2845, 32
      %v3828 = vpop.permute.xlu0 %3827
      %3829 = vrot.lane.b32.xlu0 %v2846, 32
      %v3830 = vpop.permute.xlu0 %3829
      %3831 = vrot.lane.b32.xlu0 %v2847, 32
      %v3832 = vpop.permute.xlu0 %3831
      %3833 = vrot.lane.b32.xlu0 %v2848, 32
      %v3834 = vpop.permute.xlu0 %3833
      %3835 = vrot.lane.b32.xlu0 %v2849, 32
      %v3836 = vpop.permute.xlu0 %3835
      %3837 = vrot.lane.b32.xlu0 %v2850, 32
      %v3838 = vpop.permute.xlu0 %3837
      %3839 = vrot.lane.b32.xlu0 %v2851, 32
      %v3840 = vpop.permute.xlu0 %3839
      %3841 = vrot.lane.b32.xlu0 %v2852, 32
      %v3842 = vpop.permute.xlu0 %3841
      %3843 = vrot.lane.b32.xlu0 %v2853, 32
      %v3844 = vpop.permute.xlu0 %3843
      %3845 = vrot.lane.b32.xlu0 %v2854, 32
      %v3846 = vpop.permute.xlu0 %3845
      %v3879 = vsel %vm252, %v2566, %v2888
      %v3880 = vsel %vm252, %v2567, %v2890
      %v3881 = vsel %vm252, %v2568, %v2892
      %v3882 = vsel %vm252, %v2569, %v2894
      %v3883 = vsel %vm252, %v2570, %v2896
      %v3884 = vsel %vm252, %v2571, %v2898
      %v3885 = vsel %vm252, %v2572, %v2900
      %v3886 = vsel %vm252, %v2573, %v2902
      %v3887 = vsel %vm252, %v2574, %v2904
      %v3888 = vsel %vm252, %v2575, %v2906
      %v3889 = vsel %vm252, %v2576, %v2908
      %v3890 = vsel %vm252, %v2577, %v2910
      %v3891 = vsel %vm252, %v2578, %v2912
      %v3892 = vsel %vm252, %v2579, %v2914
      %v3893 = vsel %vm252, %v2580, %v2916
      %v3894 = vsel %vm252, %v2581, %v2918
      %v3895 = vsel %vm252, %v2582, %v2920
      %v3896 = vsel %vm252, %v2583, %v2922
      %v3897 = vsel %vm252, %v2584, %v2924
      %v3898 = vsel %vm252, %v2585, %v2926
      %v3899 = vsel %vm252, %v2586, %v2928
      %v3900 = vsel %vm252, %v2587, %v2930
      %v3901 = vsel %vm252, %v2588, %v2932
      %v3902 = vsel %vm252, %v2589, %v2934
      %v3903 = vsel %vm252, %v2590, %v2936
      %v3904 = vsel %vm252, %v2591, %v2938
      %v3905 = vsel %vm252, %v2592, %v2940
      %v3906 = vsel %vm252, %v2593, %v2942
      %v3907 = vsel %vm252, %v2594, %v2944
      %v3908 = vsel %vm252, %v2595, %v2946
      %v3909 = vsel %vm252, %v2596, %v2948
      %v3910 = vsel %vm252, %v2597, %v2950
      %v3911 = vsel %vm1868, %v3879, %v3016
      %v3912 = vsel %vm1868, %v3880, %v3018
      %v3913 = vsel %vm1868, %v3881, %v3020
      %v3914 = vsel %vm1868, %v3882, %v3022
      %v3915 = vsel %vm1868, %v3883, %v3024
      %v3916 = vsel %vm1868, %v3884, %v3026
      %v3917 = vsel %vm1868, %v3885, %v3028
      %v3918 = vsel %vm1868, %v3886, %v3030
      %v3919 = vsel %vm1868, %v3887, %v3032
      %v3920 = vsel %vm1868, %v3888, %v3034
      %v3921 = vsel %vm1868, %v3889, %v3036
      %v3922 = vsel %vm1868, %v3890, %v3038
      %v3923 = vsel %vm1868, %v3891, %v3040
      %v3924 = vsel %vm1868, %v3892, %v3042
      %v3925 = vsel %vm1868, %v3893, %v3044
      %v3926 = vsel %vm1868, %v3894, %v3046
      %v3927 = vsel %vm1868, %v3895, %v3048
      %v3928 = vsel %vm1868, %v3896, %v3050
      %v3929 = vsel %vm1868, %v3897, %v3052
      %v3930 = vsel %vm1868, %v3898, %v3054
      %v3931 = vsel %vm1868, %v3899, %v3056
      %v3932 = vsel %vm1868, %v3900, %v3058
      %v3933 = vsel %vm1868, %v3901, %v3060
      %v3934 = vsel %vm1868, %v3902, %v3062
      %v3935 = vsel %vm1868, %v3903, %v3064
      %v3936 = vsel %vm1868, %v3904, %v3066
      %v3937 = vsel %vm1868, %v3905, %v3068
      %v3938 = vsel %vm1868, %v3906, %v3070
      %v3939 = vsel %vm1868, %v3907, %v3072
      %v3940 = vsel %vm1868, %v3908, %v3074
      %v3941 = vsel %vm1868, %v3909, %v3076
      %v3942 = vsel %vm1868, %v3910, %v3078
      %v3943 = vsel %vm1901, %v3911, %v3144
      %v3944 = vsel %vm1901, %v3912, %v3146
      %v3945 = vsel %vm1901, %v3913, %v3148
      %v3946 = vsel %vm1901, %v3914, %v3150
      %v3947 = vsel %vm1901, %v3915, %v3152
      %v3948 = vsel %vm1901, %v3916, %v3154
      %v3949 = vsel %vm1901, %v3917, %v3156
      %v3950 = vsel %vm1901, %v3918, %v3158
      %v3951 = vsel %vm1901, %v3919, %v3160
      %v3952 = vsel %vm1901, %v3920, %v3162
      %v3953 = vsel %vm1901, %v3921, %v3164
      %v3954 = vsel %vm1901, %v3922, %v3166
      %v3955 = vsel %vm1901, %v3923, %v3168
      %v3956 = vsel %vm1901, %v3924, %v3170
      %v3957 = vsel %vm1901, %v3925, %v3172
      %v3958 = vsel %vm1901, %v3926, %v3174
      %v3959 = vsel %vm1901, %v3927, %v3176
      %v3960 = vsel %vm1901, %v3928, %v3178
      %v3961 = vsel %vm1901, %v3929, %v3180
      %v3962 = vsel %vm1901, %v3930, %v3182
      %v3963 = vsel %vm1901, %v3931, %v3184
      %v3964 = vsel %vm1901, %v3932, %v3186
      %v3965 = vsel %vm1901, %v3933, %v3188
      %v3966 = vsel %vm1901, %v3934, %v3190
      %v3967 = vsel %vm1901, %v3935, %v3192
      %v3968 = vsel %vm1901, %v3936, %v3194
      %v3969 = vsel %vm1901, %v3937, %v3196
      %v3970 = vsel %vm1901, %v3938, %v3198
      %v3971 = vsel %vm1901, %v3939, %v3200
      %v3972 = vsel %vm1901, %v3940, %v3202
      %v3973 = vsel %vm1901, %v3941, %v3204
      %v3974 = vsel %vm1901, %v3942, %v3206
      %v3975 = vsel %vm1934, %v3943, %v3272
      %v3976 = vsel %vm1934, %v3944, %v3274
      %v3977 = vsel %vm1934, %v3945, %v3276
      %v3978 = vsel %vm1934, %v3946, %v3278
      %v3979 = vsel %vm1934, %v3947, %v3280
      %v3980 = vsel %vm1934, %v3948, %v3282
      %v3981 = vsel %vm1934, %v3949, %v3284
      %v3982 = vsel %vm1934, %v3950, %v3286
      %v3983 = vsel %vm1934, %v3951, %v3288
      %v3984 = vsel %vm1934, %v3952, %v3290
      %v3985 = vsel %vm1934, %v3953, %v3292
      %v3986 = vsel %vm1934, %v3954, %v3294
      %v3987 = vsel %vm1934, %v3955, %v3296
      %v3988 = vsel %vm1934, %v3956, %v3298
      %v3989 = vsel %vm1934, %v3957, %v3300
      %v3990 = vsel %vm1934, %v3958, %v3302
      %v3991 = vsel %vm1934, %v3959, %v3304
      %v3992 = vsel %vm1934, %v3960, %v3306
      %v3993 = vsel %vm1934, %v3961, %v3308
      %v3994 = vsel %vm1934, %v3962, %v3310
      %v3995 = vsel %vm1934, %v3963, %v3312
      %v3996 = vsel %vm1934, %v3964, %v3314
      %v3997 = vsel %vm1934, %v3965, %v3316
      %v3998 = vsel %vm1934, %v3966, %v3318
      %v3999 = vsel %vm1934, %v3967, %v3320
      %v4000 = vsel %vm1934, %v3968, %v3322
      %v4001 = vsel %vm1934, %v3969, %v3324
      %v4002 = vsel %vm1934, %v3970, %v3326
      %v4003 = vsel %vm1934, %v3971, %v3328
      %v4004 = vsel %vm1934, %v3972, %v3330
      %v4005 = vsel %vm1934, %v3973, %v3332
      %v4006 = vsel %vm1934, %v3974, %v3334
      %v4007 = vsel %vm1967, %v3975, %v3400
      %v4008 = vsel %vm1967, %v3976, %v3402
      %v4009 = vsel %vm1967, %v3977, %v3404
      %v4010 = vsel %vm1967, %v3978, %v3406
      %v4011 = vsel %vm1967, %v3979, %v3408
      %v4012 = vsel %vm1967, %v3980, %v3410
      %v4013 = vsel %vm1967, %v3981, %v3412
      %v4014 = vsel %vm1967, %v3982, %v3414
      %v4015 = vsel %vm1967, %v3983, %v3416
      %v4016 = vsel %vm1967, %v3984, %v3418
      %v4017 = vsel %vm1967, %v3985, %v3420
      %v4018 = vsel %vm1967, %v3986, %v3422
      %v4019 = vsel %vm1967, %v3987, %v3424
      %v4020 = vsel %vm1967, %v3988, %v3426
      %v4021 = vsel %vm1967, %v3989, %v3428
      %v4022 = vsel %vm1967, %v3990, %v3430
      %v4023 = vsel %vm1967, %v3991, %v3432
      %v4024 = vsel %vm1967, %v3992, %v3434
      %v4025 = vsel %vm1967, %v3993, %v3436
      %v4026 = vsel %vm1967, %v3994, %v3438
      %v4027 = vsel %vm1967, %v3995, %v3440
      %v4028 = vsel %vm1967, %v3996, %v3442
      %v4029 = vsel %vm1967, %v3997, %v3444
      %v4030 = vsel %vm1967, %v3998, %v3446
      %v4031 = vsel %vm1967, %v3999, %v3448
      %v4032 = vsel %vm1967, %v4000, %v3450
      %v4033 = vsel %vm1967, %v4001, %v3452
      %v4034 = vsel %vm1967, %v4002, %v3454
      %v4035 = vsel %vm1967, %v4003, %v3456
      %v4036 = vsel %vm1967, %v4004, %v3458
      %v4037 = vsel %vm1967, %v4005, %v3460
      %v4038 = vsel %vm1967, %v4006, %v3462
      %v4039 = vsel %vm2000, %v4007, %v3528
      %v4040 = vsel %vm2000, %v4008, %v3530
      %v4041 = vsel %vm2000, %v4009, %v3532
      %v4042 = vsel %vm2000, %v4010, %v3534
      %v4043 = vsel %vm2000, %v4011, %v3536
      %v4044 = vsel %vm2000, %v4012, %v3538
      %v4045 = vsel %vm2000, %v4013, %v3540
      %v4046 = vsel %vm2000, %v4014, %v3542
      %v4047 = vsel %vm2000, %v4015, %v3544
      %v4048 = vsel %vm2000, %v4016, %v3546
      %v4049 = vsel %vm2000, %v4017, %v3548
      %v4050 = vsel %vm2000, %v4018, %v3550
      %v4051 = vsel %vm2000, %v4019, %v3552
      %v4052 = vsel %vm2000, %v4020, %v3554
      %v4053 = vsel %vm2000, %v4021, %v3556
      %v4054 = vsel %vm2000, %v4022, %v3558
      %v4055 = vsel %vm2000, %v4023, %v3560
      %v4056 = vsel %vm2000, %v4024, %v3562
      %v4057 = vsel %vm2000, %v4025, %v3564
      %v4058 = vsel %vm2000, %v4026, %v3566
      %v4059 = vsel %vm2000, %v4027, %v3568
      %v4060 = vsel %vm2000, %v4028, %v3570
      %v4061 = vsel %vm2000, %v4029, %v3572
      %v4062 = vsel %vm2000, %v4030, %v3574
      %v4063 = vsel %vm2000, %v4031, %v3576
      %v4064 = vsel %vm2000, %v4032, %v3578
      %v4065 = vsel %vm2000, %v4033, %v3580
      %v4066 = vsel %vm2000, %v4034, %v3582
      %v4067 = vsel %vm2000, %v4035, %v3584
      %v4068 = vsel %vm2000, %v4036, %v3586
      %v4069 = vsel %vm2000, %v4037, %v3588
      %v4070 = vsel %vm2000, %v4038, %v3590
      %v4071 = vsel %vm2033, %v4039, %v3656
      %v4072 = vsel %vm2033, %v4040, %v3658
      %v4073 = vsel %vm2033, %v4041, %v3660
      %v4074 = vsel %vm2033, %v4042, %v3662
      %v4075 = vsel %vm2033, %v4043, %v3664
      %v4076 = vsel %vm2033, %v4044, %v3666
      %v4077 = vsel %vm2033, %v4045, %v3668
      %v4078 = vsel %vm2033, %v4046, %v3670
      %v4079 = vsel %vm2033, %v4047, %v3672
      %v4080 = vsel %vm2033, %v4048, %v3674
      %v4081 = vsel %vm2033, %v4049, %v3676
      %v4082 = vsel %vm2033, %v4050, %v3678
      %v4083 = vsel %vm2033, %v4051, %v3680
      %v4084 = vsel %vm2033, %v4052, %v3682
      %v4085 = vsel %vm2033, %v4053, %v3684
      %v4086 = vsel %vm2033, %v4054, %v3686
      %v4087 = vsel %vm2033, %v4055, %v3688
      %v4088 = vsel %vm2033, %v4056, %v3690
      %v4089 = vsel %vm2033, %v4057, %v3692
      %v4090 = vsel %vm2033, %v4058, %v3694
      %v4091 = vsel %vm2033, %v4059, %v3696
      %v4092 = vsel %vm2033, %v4060, %v3698
      %v4093 = vsel %vm2033, %v4061, %v3700
      %v4094 = vsel %vm2033, %v4062, %v3702
      %v4095 = vsel %vm2033, %v4063, %v3704
      %v4096 = vsel %vm2033, %v4064, %v3706
      %v4097 = vsel %vm2033, %v4065, %v3708
      %v4098 = vsel %vm2033, %v4066, %v3710
      %v4099 = vsel %vm2033, %v4067, %v3712
      %v4100 = vsel %vm2033, %v4068, %v3714
      %v4101 = vsel %vm2033, %v4069, %v3716
      %v4102 = vsel %vm2033, %v4070, %v3718
      %v4103 = vsel %vm2066, %v4071, %v3784
      %v4104 = vsel %vm2066, %v4072, %v3786
      %v4105 = vsel %vm2066, %v4073, %v3788
      %v4106 = vsel %vm2066, %v4074, %v3790
      %v4107 = vsel %vm2066, %v4075, %v3792
      %v4108 = vsel %vm2066, %v4076, %v3794
      %v4109 = vsel %vm2066, %v4077, %v3796
      %v4110 = vsel %vm2066, %v4078, %v3798
      %v4111 = vsel %vm2066, %v4079, %v3800
      %v4112 = vsel %vm2066, %v4080, %v3802
      %v4113 = vsel %vm2066, %v4081, %v3804
      %v4114 = vsel %vm2066, %v4082, %v3806
      %v4115 = vsel %vm2066, %v4083, %v3808
      %v4116 = vsel %vm2066, %v4084, %v3810
      %v4117 = vsel %vm2066, %v4085, %v3812
      %v4118 = vsel %vm2066, %v4086, %v3814
      %v4119 = vsel %vm2066, %v4087, %v3816
      %v4120 = vsel %vm2066, %v4088, %v3818
      %v4121 = vsel %vm2066, %v4089, %v3820
      %v4122 = vsel %vm2066, %v4090, %v3822
      %v4123 = vsel %vm2066, %v4091, %v3824
      %v4124 = vsel %vm2066, %v4092, %v3826
      %v4125 = vsel %vm2066, %v4093, %v3828
      %v4126 = vsel %vm2066, %v4094, %v3830
      %v4127 = vsel %vm2066, %v4095, %v3832
      %v4128 = vsel %vm2066, %v4096, %v3834
      %v4129 = vsel %vm2066, %v4097, %v3836
      %v4130 = vsel %vm2066, %v4098, %v3838
      %v4131 = vsel %vm2066, %v4099, %v3840
      %v4132 = vsel %vm2066, %v4100, %v3842
      %v4133 = vsel %vm2066, %v4101, %v3844
      %v4134 = vsel %vm2066, %v4102, %v3846
      %v4135 = vld [vmem:[%s3] sm:$0xff]
      %v4136 = vld [vmem:[%s3 + $0x8] sm:$0xff]
      %v4137 = vld [vmem:[%s3 + $0x10] sm:$0xff]
      %v4138 = vld [vmem:[%s3 + $0x18] sm:$0xff]
      %v4139 = vld [vmem:[%s3 + $0x20] sm:$0xf]
      %v4140 = vld [vmem:[%s4] sm:$0x1]
      %v4142 = vlaneseq
      %v4143 = vshrl.u32 %v4142, 7
      %v4144 = vsub.s32 0, %v4143
      %v4145 = vrot.slane %v4140, %v4144
      %v4148 = vsel %vm2111, %v4103, 0
      %v4151 = vsel %vm2111, %v4104, 0
      %v4154 = vsel %vm2111, %v4105, 0
      %v4157 = vsel %vm2111, %v4106, 0
      %v4160 = vsel %vm2111, %v4107, 0
      %v4163 = vsel %vm2111, %v4108, 0
      %v4166 = vsel %vm2111, %v4109, 0
      %v4169 = vsel %vm2111, %v4110, 0
      %v4172 = vsel %vm2111, %v4111, 0
      %v4175 = vsel %vm2111, %v4112, 0
      %v4178 = vsel %vm2111, %v4113, 0
      %v4181 = vsel %vm2111, %v4114, 0
      %v4184 = vsel %vm2111, %v4115, 0
      %v4187 = vsel %vm2111, %v4116, 0
      %v4190 = vsel %vm2111, %v4117, 0
      %v4193 = vsel %vm2111, %v4118, 0
      %v4196 = vsel %vm2111, %v4119, 0
      %v4199 = vsel %vm2111, %v4120, 0
      %v4202 = vsel %vm2111, %v4121, 0
      %v4205 = vsel %vm2111, %v4122, 0
      %v4208 = vsel %vm2111, %v4123, 0
      %v4211 = vsel %vm2111, %v4124, 0
      %v4214 = vsel %vm2111, %v4125, 0
      %v4217 = vsel %vm2111, %v4126, 0
      %v4220 = vsel %vm2111, %v4127, 0
      %v4223 = vsel %vm2111, %v4128, 0
      %v4226 = vsel %vm2111, %v4129, 0
      %v4229 = vsel %vm2111, %v4130, 0
      %v4232 = vsel %vm2111, %v4131, 0
      %v4235 = vsel %vm2111, %v4132, 0
      %v4238 = vsel %vm2111, %v4133, 0
      %v4241 = vsel %vm2111, %v4134, 0
      %v4244 = vsel %vm2208, %v4139, 0
      %4246 = vmatprep.subr.mxu0 0.0
      %4247 = vmatpush1.msra.mxu0 0.0
      %4248 = vmatprep.subr.mxu0 0.0
      %4249 = vmatpush1.msra.mxu0 0.0
      %4250 = vmatprep.subr.mxu0 0.0
      %4251 = vmatpush1.msra.mxu0 0.0
      %4252 = vmatprep.subr.mxu0 0.0
      %4253 = vmatpush1.msra.mxu0 0.0
      %4254 = vmatprep.subr.mxu0 0.0
      %4255 = vmatpush1.msra.mxu0 0.0
      %4256 = vmatprep.subr.mxu0 0.0
      %4257 = vmatpush1.msra.mxu0 0.0
      %4258 = vmatprep.subr.mxu0 0.0
      %4259 = vmatpush1.msra.mxu0 0.0
      %4260 = vmatprep.subr.mxu0 0.0
      %4261 = vmatpush1.msra.mxu0 0.0
      %4262 = vmatprep.subr.mxu0 0.0
      %4263 = vmatpush1.msra.mxu0 0.0
      %4264 = vmatprep.subr.mxu0 0.0
      %4265 = vmatpush1.msra.mxu0 0.0
      %4266 = vmatprep.subr.mxu0 0.0
      %4267 = vmatpush1.msra.mxu0 0.0
      %4268 = vmatprep.subr.mxu0 0.0
      %4269 = vmatpush1.msra.mxu0 %v4244
      %4270 = vmatprep.subr.mxu0 0.0
      %4271 = vmatpush1.msra.mxu0 %v4138
      %4272 = vmatprep.subr.mxu0 0.0
      %4273 = vmatpush1.msra.mxu0 %v4137
      %4274 = vmatprep.subr.mxu0 0.0
      %4275 = vmatpush1.msra.mxu0 %v4136
      %4276 = vmatprep.subr.mxu0 0.0
      %4277 = vmatpush1.msra.mxu0 %v4135
      %4278 = vmatprep.subr.mxu0 0.0
      %4279 = vmatpush2.msra.mxu0 0.0
      %4280 = vmatprep.subr.mxu0 0.0
      %4281 = vmatpush2.msra.mxu0 0.0
      %4282 = vmatprep.subr.mxu0 0.0
      %4283 = vmatpush2.msra.mxu0 0.0
      %4284 = vmatprep.subr.mxu0 0.0
      %4285 = vmatpush2.msra.mxu0 0.0
      %4286 = vmatprep.subr.mxu0 0.0
      %4287 = vmatpush2.msra.mxu0 0.0
      %4288 = vmatprep.subr.mxu0 0.0
      %4289 = vmatpush2.msra.mxu0 0.0
      %4290 = vmatprep.subr.mxu0 0.0
      %4291 = vmatpush2.msra.mxu0 0.0
      %4292 = vmatprep.subr.mxu0 0.0
      %4293 = vmatpush2.msra.mxu0 0.0
      %4294 = vmatprep.subr.mxu0 0.0
      %4295 = vmatpush2.msra.mxu0 0.0
      %4296 = vmatprep.subr.mxu0 0.0
      %4297 = vmatpush2.msra.mxu0 0.0
      %4298 = vmatprep.subr.mxu0 0.0
      %4299 = vmatpush2.msra.mxu0 0.0
      %4300 = vmatprep.subr.mxu0 0.0
      %4301 = vmatpush2.msra.mxu0 0.0
      %4302 = vmatprep.subr.mxu0 0.0
      %4303 = vmatpush2.msra.mxu0 0.0
      %4304 = vmatprep.subr.mxu0 0.0
      %4305 = vmatpush2.msra.mxu0 0.0
      %4306 = vmatprep.subr.mxu0 0.0
      %4307 = vmatpush2.msra.mxu0 0.0
      %4308 = vmatprep.subr.mxu0 0.0
      %4309 = vmatpush2.msra.mxu0 0.0
      %4310 = vmatprep.mubr.f32.mxu0 0.0
      %4311 = vmatmul.mubr.f32.gmra.mxu0 %v4148
      %v4312 = vpop.f32.mrf.mxu0
      %v4313 = vadd.f32 %v4145, %v4312
      %v4314 = vpop.f32.mrf.mxu0
      %4315 = vmatprep.mubr.f32.mxu0 0.0
      %4316 = vmatmul.mubr.f32.gmra.mxu0 %v4151
      %v4317 = vpop.f32.mrf.mxu0
      %v4318 = vadd.f32 %v4145, %v4317
      %v4319 = vpop.f32.mrf.mxu0
      %4320 = vmatprep.mubr.f32.mxu0 0.0
      %4321 = vmatmul.mubr.f32.gmra.mxu0 %v4154
      %v4322 = vpop.f32.mrf.mxu0
      %v4323 = vadd.f32 %v4145, %v4322
      %v4324 = vpop.f32.mrf.mxu0
      %4325 = vmatprep.mubr.f32.mxu0 0.0
      %4326 = vmatmul.mubr.f32.gmra.mxu0 %v4157
      %v4327 = vpop.f32.mrf.mxu0
      %v4328 = vadd.f32 %v4145, %v4327
      %v4329 = vpop.f32.mrf.mxu0
      %4330 = vmatprep.mubr.f32.mxu0 0.0
      %4331 = vmatmul.mubr.f32.gmra.mxu0 %v4160
      %v4332 = vpop.f32.mrf.mxu0
      %v4333 = vadd.f32 %v4145, %v4332
      %v4334 = vpop.f32.mrf.mxu0
      %4335 = vmatprep.mubr.f32.mxu0 0.0
      %4336 = vmatmul.mubr.f32.gmra.mxu0 %v4163
      %v4337 = vpop.f32.mrf.mxu0
      %v4338 = vadd.f32 %v4145, %v4337
      %v4339 = vpop.f32.mrf.mxu0
      %4340 = vmatprep.mubr.f32.mxu0 0.0
      %4341 = vmatmul.mubr.f32.gmra.mxu0 %v4166
      %v4342 = vpop.f32.mrf.mxu0
      %v4343 = vadd.f32 %v4145, %v4342
      %v4344 = vpop.f32.mrf.mxu0
      %4345 = vmatprep.mubr.f32.mxu0 0.0
      %4346 = vmatmul.mubr.f32.gmra.mxu0 %v4169
      %v4347 = vpop.f32.mrf.mxu0
      %v4348 = vadd.f32 %v4145, %v4347
      %v4349 = vpop.f32.mrf.mxu0
      %4350 = vmatprep.mubr.f32.mxu0 0.0
      %4351 = vmatmul.mubr.f32.gmra.mxu0 %v4172
      %v4352 = vpop.f32.mrf.mxu0
      %v4353 = vadd.f32 %v4145, %v4352
      %v4354 = vpop.f32.mrf.mxu0
      %4355 = vmatprep.mubr.f32.mxu0 0.0
      %4356 = vmatmul.mubr.f32.gmra.mxu0 %v4175
      %v4357 = vpop.f32.mrf.mxu0
      %v4358 = vadd.f32 %v4145, %v4357
      %v4359 = vpop.f32.mrf.mxu0
      %4360 = vmatprep.mubr.f32.mxu0 0.0
      %4361 = vmatmul.mubr.f32.gmra.mxu0 %v4178
      %v4362 = vpop.f32.mrf.mxu0
      %v4363 = vadd.f32 %v4145, %v4362
      %v4364 = vpop.f32.mrf.mxu0
      %4365 = vmatprep.mubr.f32.mxu0 0.0
      %4366 = vmatmul.mubr.f32.gmra.mxu0 %v4181
      %v4367 = vpop.f32.mrf.mxu0
      %v4368 = vadd.f32 %v4145, %v4367
      %v4369 = vpop.f32.mrf.mxu0
      %4370 = vmatprep.mubr.f32.mxu0 0.0
      %4371 = vmatmul.mubr.f32.gmra.mxu0 %v4184
      %v4372 = vpop.f32.mrf.mxu0
      %v4373 = vadd.f32 %v4145, %v4372
      %v4374 = vpop.f32.mrf.mxu0
      %4375 = vmatprep.mubr.f32.mxu0 0.0
      %4376 = vmatmul.mubr.f32.gmra.mxu0 %v4187
      %v4377 = vpop.f32.mrf.mxu0
      %v4378 = vadd.f32 %v4145, %v4377
      %v4379 = vpop.f32.mrf.mxu0
      %4380 = vmatprep.mubr.f32.mxu0 0.0
      %4381 = vmatmul.mubr.f32.gmra.mxu0 %v4190
      %v4382 = vpop.f32.mrf.mxu0
      %v4383 = vadd.f32 %v4145, %v4382
      %v4384 = vpop.f32.mrf.mxu0
      %4385 = vmatprep.mubr.f32.mxu0 0.0
      %4386 = vmatmul.mubr.f32.gmra.mxu0 %v4193
      %v4387 = vpop.f32.mrf.mxu0
      %v4388 = vadd.f32 %v4145, %v4387
      %v4389 = vpop.f32.mrf.mxu0
      %4390 = vmatprep.mubr.f32.mxu0 0.0
      %4391 = vmatmul.mubr.f32.gmra.mxu0 %v4196
      %v4392 = vpop.f32.mrf.mxu0
      %v4393 = vadd.f32 %v4145, %v4392
      %v4394 = vpop.f32.mrf.mxu0
      %4395 = vmatprep.mubr.f32.mxu0 0.0
      %4396 = vmatmul.mubr.f32.gmra.mxu0 %v4199
      %v4397 = vpop.f32.mrf.mxu0
      %v4398 = vadd.f32 %v4145, %v4397
      %v4399 = vpop.f32.mrf.mxu0
      %4400 = vmatprep.mubr.f32.mxu0 0.0
      %4401 = vmatmul.mubr.f32.gmra.mxu0 %v4202
      %v4402 = vpop.f32.mrf.mxu0
      %v4403 = vadd.f32 %v4145, %v4402
      %v4404 = vpop.f32.mrf.mxu0
      %4405 = vmatprep.mubr.f32.mxu0 0.0
      %4406 = vmatmul.mubr.f32.gmra.mxu0 %v4205
      %v4407 = vpop.f32.mrf.mxu0
      %v4408 = vadd.f32 %v4145, %v4407
      %v4409 = vpop.f32.mrf.mxu0
      %4410 = vmatprep.mubr.f32.mxu0 0.0
      %4411 = vmatmul.mubr.f32.gmra.mxu0 %v4208
      %v4412 = vpop.f32.mrf.mxu0
      %v4413 = vadd.f32 %v4145, %v4412
      %v4414 = vpop.f32.mrf.mxu0
      %4415 = vmatprep.mubr.f32.mxu0 0.0
      %4416 = vmatmul.mubr.f32.gmra.mxu0 %v4211
      %v4417 = vpop.f32.mrf.mxu0
      %v4418 = vadd.f32 %v4145, %v4417
      %v4419 = vpop.f32.mrf.mxu0
      %4420 = vmatprep.mubr.f32.mxu0 0.0
      %4421 = vmatmul.mubr.f32.gmra.mxu0 %v4214
      %v4422 = vpop.f32.mrf.mxu0
      %v4423 = vadd.f32 %v4145, %v4422
      %v4424 = vpop.f32.mrf.mxu0
      %4425 = vmatprep.mubr.f32.mxu0 0.0
      %4426 = vmatmul.mubr.f32.gmra.mxu0 %v4217
      %v4427 = vpop.f32.mrf.mxu0
      %v4428 = vadd.f32 %v4145, %v4427
      %v4429 = vpop.f32.mrf.mxu0
      %4430 = vmatprep.mubr.f32.mxu0 0.0
      %4431 = vmatmul.mubr.f32.gmra.mxu0 %v4220
      %v4432 = vpop.f32.mrf.mxu0
      %v4433 = vadd.f32 %v4145, %v4432
      %v4434 = vpop.f32.mrf.mxu0
      %4435 = vmatprep.mubr.f32.mxu0 0.0
      %4436 = vmatmul.mubr.f32.gmra.mxu0 %v4223
      %v4437 = vpop.f32.mrf.mxu0
      %v4438 = vadd.f32 %v4145, %v4437
      %v4439 = vpop.f32.mrf.mxu0
      %4440 = vmatprep.mubr.f32.mxu0 0.0
      %4441 = vmatmul.mubr.f32.gmra.mxu0 %v4226
      %v4442 = vpop.f32.mrf.mxu0
      %v4443 = vadd.f32 %v4145, %v4442
      %v4444 = vpop.f32.mrf.mxu0
      %4445 = vmatprep.mubr.f32.mxu0 0.0
      %4446 = vmatmul.mubr.f32.gmra.mxu0 %v4229
      %v4447 = vpop.f32.mrf.mxu0
      %v4448 = vadd.f32 %v4145, %v4447
      %v4449 = vpop.f32.mrf.mxu0
      %4450 = vmatprep.mubr.f32.mxu0 0.0
      %4451 = vmatmul.mubr.f32.gmra.mxu0 %v4232
      %v4452 = vpop.f32.mrf.mxu0
      %v4453 = vadd.f32 %v4145, %v4452
      %v4454 = vpop.f32.mrf.mxu0
      %4455 = vmatprep.mubr.f32.mxu0 0.0
      %4456 = vmatmul.mubr.f32.gmra.mxu0 %v4235
      %v4457 = vpop.f32.mrf.mxu0
      %v4458 = vadd.f32 %v4145, %v4457
      %v4459 = vpop.f32.mrf.mxu0
      %4460 = vmatprep.mubr.f32.mxu0 0.0
      %4461 = vmatmul.mubr.f32.gmra.mxu0 %v4238
      %v4462 = vpop.f32.mrf.mxu0
      %v4463 = vadd.f32 %v4145, %v4462
      %v4464 = vpop.f32.mrf.mxu0
      %4465 = vmatprep.mubr.f32.mxu0 0.0
      %4466 = vmatmul.mubr.f32.gmra.mxu0 %v4241
      %v4467 = vpop.f32.mrf.mxu0
      %v4468 = vadd.f32 %v4145, %v4467
      %v4469 = vpop.f32.mrf.mxu0
      %4470 = vdwg.mxu0
      %v4471 = vld [vmem:[%s5] sm:$0xf]
      %v4472 = vmul.f32 %v4313, 0.1
      %v4473 = vmul.f32 %v4318, 0.1
      %v4474 = vmul.f32 %v4323, 0.1
      %v4475 = vmul.f32 %v4328, 0.1
      %v4476 = vmul.f32 %v4333, 0.1
      %v4477 = vmul.f32 %v4338, 0.1
      %v4478 = vmul.f32 %v4343, 0.1
      %v4479 = vmul.f32 %v4348, 0.1
      %v4480 = vmul.f32 %v4353, 0.1
      %v4481 = vmul.f32 %v4358, 0.1
      %v4482 = vmul.f32 %v4363, 0.1
      %v4483 = vmul.f32 %v4368, 0.1
      %v4484 = vmul.f32 %v4373, 0.1
      %v4485 = vmul.f32 %v4378, 0.1
      %v4486 = vmul.f32 %v4383, 0.1
      %v4487 = vmul.f32 %v4388, 0.1
      %v4488 = vmul.f32 %v4393, 0.1
      %v4489 = vmul.f32 %v4398, 0.1
      %v4490 = vmul.f32 %v4403, 0.1
      %v4491 = vmul.f32 %v4408, 0.1
      %v4492 = vmul.f32 %v4413, 0.1
      %v4493 = vmul.f32 %v4418, 0.1
      %v4494 = vmul.f32 %v4423, 0.1
      %v4495 = vmul.f32 %v4428, 0.1
      %v4496 = vmul.f32 %v4433, 0.1
      %v4497 = vmul.f32 %v4438, 0.1
      %v4498 = vmul.f32 %v4443, 0.1
      %v4499 = vmul.f32 %v4448, 0.1
      %v4500 = vmul.f32 %v4453, 0.1
      %v4501 = vmul.f32 %v4458, 0.1
      %v4502 = vmul.f32 %v4463, 0.1
      %v4503 = vmul.f32 %v4468, 0.1
      %v4505 = vsel %vm252, %v362, 0
      %v4508 = vsel %vm252, %v363, 0
      %v4511 = vsel %vm252, %v364, 0
      %v4514 = vsel %vm252, %v365, 0
      %v4517 = vsel %vm252, %v366, 0
      %v4520 = vsel %vm252, %v367, 0
      %v4523 = vsel %vm252, %v368, 0
      %v4526 = vsel %vm252, %v369, 0
      %v4529 = vsel %vm252, %v370, 0
      %v4532 = vsel %vm252, %v371, 0
      %v4535 = vsel %vm252, %v372, 0
      %v4538 = vsel %vm252, %v373, 0
      %v4541 = vsel %vm252, %v374, 0
      %v4544 = vsel %vm252, %v375, 0
      %v4547 = vsel %vm252, %v376, 0
      %v4550 = vsel %vm252, %v377, 0
      %v4553 = vsel %vm252, %v378, 0
      %v4556 = vsel %vm252, %v379, 0
      %v4559 = vsel %vm252, %v380, 0
      %v4562 = vsel %vm252, %v381, 0
      %v4565 = vsel %vm252, %v382, 0
      %v4568 = vsel %vm252, %v383, 0
      %v4571 = vsel %vm252, %v384, 0
      %v4574 = vsel %vm252, %v385, 0
      %v4577 = vsel %vm252, %v386, 0
      %v4580 = vsel %vm252, %v387, 0
      %v4583 = vsel %vm252, %v388, 0
      %v4586 = vsel %vm252, %v389, 0
      %v4589 = vsel %vm252, %v390, 0
      %v4592 = vsel %vm252, %v391, 0
      %v4595 = vsel %vm252, %v392, 0
      %v4598 = vsel %vm252, %v393, 0
      %v4601 = vsel %vm2208, %v4471, 0
      %4603 = vmatprep.subr.mxu0 0.0
      %4604 = vmatpush1.msra.mxu0 0.0
      %4605 = vmatprep.subr.mxu0 0.0
      %4606 = vmatpush1.msra.mxu0 0.0
      %4607 = vmatprep.subr.mxu0 0.0
      %4608 = vmatpush1.msra.mxu0 0.0
      %4609 = vmatprep.subr.mxu0 0.0
      %4610 = vmatpush1.msra.mxu0 0.0
      %4611 = vmatprep.subr.mxu0 0.0
      %4612 = vmatpush1.msra.mxu0 0.0
      %4613 = vmatprep.subr.mxu0 0.0
      %4614 = vmatpush1.msra.mxu0 0.0
      %4615 = vmatprep.subr.mxu0 0.0
      %4616 = vmatpush1.msra.mxu0 0.0
      %4617 = vmatprep.subr.mxu0 0.0
      %4618 = vmatpush1.msra.mxu0 0.0
      %4619 = vmatprep.subr.mxu0 0.0
      %4620 = vmatpush1.msra.mxu0 0.0
      %4621 = vmatprep.subr.mxu0 0.0
      %4622 = vmatpush1.msra.mxu0 0.0
      %4623 = vmatprep.subr.mxu0 0.0
      %4624 = vmatpush1.msra.mxu0 0.0
      %4625 = vmatprep.subr.mxu0 0.0
      %4626 = vmatpush1.msra.mxu0 0.0
      %4627 = vmatprep.subr.mxu0 0.0
      %4628 = vmatpush1.msra.mxu0 0.0
      %4629 = vmatprep.subr.mxu0 0.0
      %4630 = vmatpush1.msra.mxu0 0.0
      %4631 = vmatprep.subr.mxu0 0.0
      %4632 = vmatpush1.msra.mxu0 0.0
      %4633 = vmatprep.subr.mxu0 0.0
      %4634 = vmatpush1.msra.mxu0 %v4601
      %4635 = vmatprep.subr.mxu0 0.0
      %4636 = vmatpush2.msra.mxu0 0.0
      %4637 = vmatprep.subr.mxu0 0.0
      %4638 = vmatpush2.msra.mxu0 0.0
      %4639 = vmatprep.subr.mxu0 0.0
      %4640 = vmatpush2.msra.mxu0 0.0
      %4641 = vmatprep.subr.mxu0 0.0
      %4642 = vmatpush2.msra.mxu0 0.0
      %4643 = vmatprep.subr.mxu0 0.0
      %4644 = vmatpush2.msra.mxu0 0.0
      %4645 = vmatprep.subr.mxu0 0.0
      %4646 = vmatpush2.msra.mxu0 0.0
      %4647 = vmatprep.subr.mxu0 0.0
      %4648 = vmatpush2.msra.mxu0 0.0
      %4649 = vmatprep.subr.mxu0 0.0
      %4650 = vmatpush2.msra.mxu0 0.0
      %4651 = vmatprep.subr.mxu0 0.0
      %4652 = vmatpush2.msra.mxu0 0.0
      %4653 = vmatprep.subr.mxu0 0.0
      %4654 = vmatpush2.msra.mxu0 0.0
      %4655 = vmatprep.subr.mxu0 0.0
      %4656 = vmatpush2.msra.mxu0 0.0
      %4657 = vmatprep.subr.mxu0 0.0
      %4658 = vmatpush2.msra.mxu0 0.0
      %4659 = vmatprep.subr.mxu0 0.0
      %4660 = vmatpush2.msra.mxu0 0.0
      %4661 = vmatprep.subr.mxu0 0.0
      %4662 = vmatpush2.msra.mxu0 0.0
      %4663 = vmatprep.subr.mxu0 0.0
      %4664 = vmatpush2.msra.mxu0 0.0
      %4665 = vmatprep.subr.mxu0 0.0
      %4666 = vmatpush2.msra.mxu0 0.0
      %4667 = vmatprep.mubr.f32.mxu0 0.0
      %4668 = vmatmul.mubr.f32.gmra.mxu0 %v4505
      %v4669 = vpop.f32.mrf.mxu0
      %v4670 = vadd.f32 %v4472, %v4669
      %v4671 = vpop.f32.mrf.mxu0
      %4672 = vmatprep.mubr.f32.mxu0 0.0
      %4673 = vmatmul.mubr.f32.gmra.mxu0 %v4508
      %v4674 = vpop.f32.mrf.mxu0
      %v4675 = vadd.f32 %v4473, %v4674
      %v4676 = vpop.f32.mrf.mxu0
      %4677 = vmatprep.mubr.f32.mxu0 0.0
      %4678 = vmatmul.mubr.f32.gmra.mxu0 %v4511
      %v4679 = vpop.f32.mrf.mxu0
      %v4680 = vadd.f32 %v4474, %v4679
      %v4681 = vpop.f32.mrf.mxu0
      %4682 = vmatprep.mubr.f32.mxu0 0.0
      %4683 = vmatmul.mubr.f32.gmra.mxu0 %v4514
      %v4684 = vpop.f32.mrf.mxu0
      %v4685 = vadd.f32 %v4475, %v4684
      %v4686 = vpop.f32.mrf.mxu0
      %4687 = vmatprep.mubr.f32.mxu0 0.0
      %4688 = vmatmul.mubr.f32.gmra.mxu0 %v4517
      %v4689 = vpop.f32.mrf.mxu0
      %v4690 = vadd.f32 %v4476, %v4689
      %v4691 = vpop.f32.mrf.mxu0
      %4692 = vmatprep.mubr.f32.mxu0 0.0
      %4693 = vmatmul.mubr.f32.gmra.mxu0 %v4520
      %v4694 = vpop.f32.mrf.mxu0
      %v4695 = vadd.f32 %v4477, %v4694
      %v4696 = vpop.f32.mrf.mxu0
      %4697 = vmatprep.mubr.f32.mxu0 0.0
      %4698 = vmatmul.mubr.f32.gmra.mxu0 %v4523
      %v4699 = vpop.f32.mrf.mxu0
      %v4700 = vadd.f32 %v4478, %v4699
      %v4701 = vpop.f32.mrf.mxu0
      %4702 = vmatprep.mubr.f32.mxu0 0.0
      %4703 = vmatmul.mubr.f32.gmra.mxu0 %v4526
      %v4704 = vpop.f32.mrf.mxu0
      %v4705 = vadd.f32 %v4479, %v4704
      %v4706 = vpop.f32.mrf.mxu0
      %4707 = vmatprep.mubr.f32.mxu0 0.0
      %4708 = vmatmul.mubr.f32.gmra.mxu0 %v4529
      %v4709 = vpop.f32.mrf.mxu0
      %v4710 = vadd.f32 %v4480, %v4709
      %v4711 = vpop.f32.mrf.mxu0
      %4712 = vmatprep.mubr.f32.mxu0 0.0
      %4713 = vmatmul.mubr.f32.gmra.mxu0 %v4532
      %v4714 = vpop.f32.mrf.mxu0
      %v4715 = vadd.f32 %v4481, %v4714
      %v4716 = vpop.f32.mrf.mxu0
      %4717 = vmatprep.mubr.f32.mxu0 0.0
      %4718 = vmatmul.mubr.f32.gmra.mxu0 %v4535
      %v4719 = vpop.f32.mrf.mxu0
      %v4720 = vadd.f32 %v4482, %v4719
      %v4721 = vpop.f32.mrf.mxu0
      %4722 = vmatprep.mubr.f32.mxu0 0.0
      %4723 = vmatmul.mubr.f32.gmra.mxu0 %v4538
      %v4724 = vpop.f32.mrf.mxu0
      %v4725 = vadd.f32 %v4483, %v4724
      %v4726 = vpop.f32.mrf.mxu0
      %4727 = vmatprep.mubr.f32.mxu0 0.0
      %4728 = vmatmul.mubr.f32.gmra.mxu0 %v4541
      %v4729 = vpop.f32.mrf.mxu0
      %v4730 = vadd.f32 %v4484, %v4729
      %v4731 = vpop.f32.mrf.mxu0
      %4732 = vmatprep.mubr.f32.mxu0 0.0
      %4733 = vmatmul.mubr.f32.gmra.mxu0 %v4544
      %v4734 = vpop.f32.mrf.mxu0
      %v4735 = vadd.f32 %v4485, %v4734
      %v4736 = vpop.f32.mrf.mxu0
      %4737 = vmatprep.mubr.f32.mxu0 0.0
      %4738 = vmatmul.mubr.f32.gmra.mxu0 %v4547
      %v4739 = vpop.f32.mrf.mxu0
      %v4740 = vadd.f32 %v4486, %v4739
      %v4741 = vpop.f32.mrf.mxu0
      %4742 = vmatprep.mubr.f32.mxu0 0.0
      %4743 = vmatmul.mubr.f32.gmra.mxu0 %v4550
      %v4744 = vpop.f32.mrf.mxu0
      %v4745 = vadd.f32 %v4487, %v4744
      %v4746 = vpop.f32.mrf.mxu0
      %4747 = vmatprep.mubr.f32.mxu0 0.0
      %4748 = vmatmul.mubr.f32.gmra.mxu0 %v4553
      %v4749 = vpop.f32.mrf.mxu0
      %v4750 = vadd.f32 %v4488, %v4749
      %v4751 = vpop.f32.mrf.mxu0
      %4752 = vmatprep.mubr.f32.mxu0 0.0
      %4753 = vmatmul.mubr.f32.gmra.mxu0 %v4556
      %v4754 = vpop.f32.mrf.mxu0
      %v4755 = vadd.f32 %v4489, %v4754
      %v4756 = vpop.f32.mrf.mxu0
      %4757 = vmatprep.mubr.f32.mxu0 0.0
      %4758 = vmatmul.mubr.f32.gmra.mxu0 %v4559
      %v4759 = vpop.f32.mrf.mxu0
      %v4760 = vadd.f32 %v4490, %v4759
      %v4761 = vpop.f32.mrf.mxu0
      %4762 = vmatprep.mubr.f32.mxu0 0.0
      %4763 = vmatmul.mubr.f32.gmra.mxu0 %v4562
      %v4764 = vpop.f32.mrf.mxu0
      %v4765 = vadd.f32 %v4491, %v4764
      %v4766 = vpop.f32.mrf.mxu0
      %4767 = vmatprep.mubr.f32.mxu0 0.0
      %4768 = vmatmul.mubr.f32.gmra.mxu0 %v4565
      %v4769 = vpop.f32.mrf.mxu0
      %v4770 = vadd.f32 %v4492, %v4769
      %v4771 = vpop.f32.mrf.mxu0
      %4772 = vmatprep.mubr.f32.mxu0 0.0
      %4773 = vmatmul.mubr.f32.gmra.mxu0 %v4568
      %v4774 = vpop.f32.mrf.mxu0
      %v4775 = vadd.f32 %v4493, %v4774
      %v4776 = vpop.f32.mrf.mxu0
      %4777 = vmatprep.mubr.f32.mxu0 0.0
      %4778 = vmatmul.mubr.f32.gmra.mxu0 %v4571
      %v4779 = vpop.f32.mrf.mxu0
      %v4780 = vadd.f32 %v4494, %v4779
      %v4781 = vpop.f32.mrf.mxu0
      %4782 = vmatprep.mubr.f32.mxu0 0.0
      %4783 = vmatmul.mubr.f32.gmra.mxu0 %v4574
      %v4784 = vpop.f32.mrf.mxu0
      %v4785 = vadd.f32 %v4495, %v4784
      %v4786 = vpop.f32.mrf.mxu0
      %4787 = vmatprep.mubr.f32.mxu0 0.0
      %4788 = vmatmul.mubr.f32.gmra.mxu0 %v4577
      %v4789 = vpop.f32.mrf.mxu0
      %v4790 = vadd.f32 %v4496, %v4789
      %v4791 = vpop.f32.mrf.mxu0
      %4792 = vmatprep.mubr.f32.mxu0 0.0
      %4793 = vmatmul.mubr.f32.gmra.mxu0 %v4580
      %v4794 = vpop.f32.mrf.mxu0
      %v4795 = vadd.f32 %v4497, %v4794
      %v4796 = vpop.f32.mrf.mxu0
      %4797 = vmatprep.mubr.f32.mxu0 0.0
      %4798 = vmatmul.mubr.f32.gmra.mxu0 %v4583
      %v4799 = vpop.f32.mrf.mxu0
      %v4800 = vadd.f32 %v4498, %v4799
      %v4801 = vpop.f32.mrf.mxu0
      %4802 = vmatprep.mubr.f32.mxu0 0.0
      %4803 = vmatmul.mubr.f32.gmra.mxu0 %v4586
      %v4804 = vpop.f32.mrf.mxu0
      %v4805 = vadd.f32 %v4499, %v4804
      %v4806 = vpop.f32.mrf.mxu0
      %4807 = vmatprep.mubr.f32.mxu0 0.0
      %4808 = vmatmul.mubr.f32.gmra.mxu0 %v4589
      %v4809 = vpop.f32.mrf.mxu0
      %v4810 = vadd.f32 %v4500, %v4809
      %v4811 = vpop.f32.mrf.mxu0
      %4812 = vmatprep.mubr.f32.mxu0 0.0
      %4813 = vmatmul.mubr.f32.gmra.mxu0 %v4592
      %v4814 = vpop.f32.mrf.mxu0
      %v4815 = vadd.f32 %v4501, %v4814
      %v4816 = vpop.f32.mrf.mxu0
      %4817 = vmatprep.mubr.f32.mxu0 0.0
      %4818 = vmatmul.mubr.f32.gmra.mxu0 %v4595
      %v4819 = vpop.f32.mrf.mxu0
      %v4820 = vadd.f32 %v4502, %v4819
      %v4821 = vpop.f32.mrf.mxu0
      %4822 = vmatprep.mubr.f32.mxu0 0.0
      %4823 = vmatmul.mubr.f32.gmra.mxu0 %v4598
      %v4824 = vpop.f32.mrf.mxu0
      %v4825 = vadd.f32 %v4503, %v4824
      %v4826 = vpop.f32.mrf.mxu0
      %4827 = vdwg.mxu0
      %4828 = vst.msk [vmem:[%s251] sm:$0xff] %vm1868, %v4670
      %4829 = vst.msk [vmem:[%s251 + $0x8] sm:$0xff] %vm1868, %v4675
      %4830 = vst.msk [vmem:[%s251 + $0x10] sm:$0xff] %vm1868, %v4680
      %4831 = vst.msk [vmem:[%s251 + $0x18] sm:$0xff] %vm1868, %v4685
      %4832 = vst.msk [vmem:[%s251 + $0x20] sm:$0xff] %vm1868, %v4690
      %4833 = vst.msk [vmem:[%s251 + $0x28] sm:$0xff] %vm1868, %v4695
      %4834 = vst.msk [vmem:[%s251 + $0x30] sm:$0xff] %vm1868, %v4700
      %4835 = vst.msk [vmem:[%s251 + $0x38] sm:$0xff] %vm1868, %v4705
      %4836 = vst.msk [vmem:[%s251 + $0x40] sm:$0xff] %vm1868, %v4710
      %4837 = vst.msk [vmem:[%s251 + $0x48] sm:$0xff] %vm1868, %v4715
      %4838 = vst.msk [vmem:[%s251 + $0x50] sm:$0xff] %vm1868, %v4720
      %4839 = vst.msk [vmem:[%s251 + $0x58] sm:$0xff] %vm1868, %v4725
      %4840 = vst.msk [vmem:[%s251 + $0x60] sm:$0xff] %vm1868, %v4730
      %4841 = vst.msk [vmem:[%s251 + $0x68] sm:$0xff] %vm1868, %v4735
      %4842 = vst.msk [vmem:[%s251 + $0x70] sm:$0xff] %vm1868, %v4740
      %4843 = vst.msk [vmem:[%s251 + $0x78] sm:$0xff] %vm1868, %v4745
      %4844 = vst.msk [vmem:[%s251 + $0x80] sm:$0xff] %vm1868, %v4750
      %4845 = vst.msk [vmem:[%s251 + $0x88] sm:$0xff] %vm1868, %v4755
      %4846 = vst.msk [vmem:[%s251 + $0x90] sm:$0xff] %vm1868, %v4760
      %4847 = vst.msk [vmem:[%s251 + $0x98] sm:$0xff] %vm1868, %v4765
      %4848 = vst.msk [vmem:[%s251 + $0xa0] sm:$0xff] %vm1868, %v4770
      %4849 = vst.msk [vmem:[%s251 + $0xa8] sm:$0xff] %vm1868, %v4775
      %4850 = vst.msk [vmem:[%s251 + $0xb0] sm:$0xff] %vm1868, %v4780
      %4851 = vst.msk [vmem:[%s251 + $0xb8] sm:$0xff] %vm1868, %v4785
      %4852 = vst.msk [vmem:[%s251 + $0xc0] sm:$0xff] %vm1868, %v4790
      %4853 = vst.msk [vmem:[%s251 + $0xc8] sm:$0xff] %vm1868, %v4795
      %4854 = vst.msk [vmem:[%s251 + $0xd0] sm:$0xff] %vm1868, %v4800
      %4855 = vst.msk [vmem:[%s251 + $0xd8] sm:$0xff] %vm1868, %v4805
      %4856 = vst.msk [vmem:[%s251 + $0xe0] sm:$0xff] %vm1868, %v4810
      %4857 = vst.msk [vmem:[%s251 + $0xe8] sm:$0xff] %vm1868, %v4815
      %4858 = vst.msk [vmem:[%s251 + $0xf0] sm:$0xff] %vm1868, %v4820
      %4859 = vst.msk [vmem:[%s251 + $0xf8] sm:$0xff] %vm1868, %v4825
      %p4860 = scmp.lt.s32.totalorder %s17, 1
      %s4861 = scalar_select %p4860, %s17, 1
      %s4862 = smul.addr %s4861, 32
      %s4863 = smul.addr %s4862, 8
      %s4864 = scalar_lea.vmem %s6, %s4863
      // Predicated region
      $region45: #{tpu_custom_call.1} parent=43 // pred_check
        %p4865 = pneg %p166
      $region46: #{tpu_custom_call.1} parent=43 // pred_check_branch
        %4867 = sbr.rel (%p4865) target = $region48
      $region47: #{tpu_custom_call.1} parent=43 // pred_region
        _
      $region48: #{tpu_custom_call.1} parent=43 // pred_fallthru
        _
    $region44: #{tpu_custom_call.1} parent=5 // pred_fallthru
      _
    %p4868 = scmp.le.s32.totalorder 2, %s12
    // Predicated region
    $region49: #{tpu_custom_call.1} parent=5 // pred_check
      %p4869 = pneg %p4868
    $region50: #{tpu_custom_call.1} parent=5 // pred_check_branch
      %4871 = sbr.rel (%p4869) target = $region52
    $region51: #{tpu_custom_call.1} parent=5 // pred_region
      %s4872 = ssub.s32 %s12, 2
      // Predicated region
      $region53: #{tpu_custom_call.1} parent=51 // pred_check
        %p4873 = pneg %p172
      $region54: #{tpu_custom_call.1} parent=51 // pred_check_branch
        %4875 = sbr.rel (%p4873) target = $region56
      $region55: #{tpu_custom_call.1} parent=51 // pred_region
        %p4876 = scmp.lt.s32.totalorder %s18, 1
        %s4877 = scalar_select %p4876, %s18, 1
        %s4878 = smul.addr %s4877, 32
        %s4879 = smul.addr %s4878, 8
        %s4880 = scalar_lea.vmem %s6, %s4879
      $region56: #{tpu_custom_call.1} parent=51 // pred_fallthru
        _
    $region52: #{tpu_custom_call.1} parent=5 // pred_fallthru
      _
  $region6: #{tpu_custom_call.1} parent=0 // loop_footer
    %s16 = sadd.s32 1, %s12
  $region7: #{tpu_custom_call.1} parent=0 // loop_footer_branch
    %11 = sbr.rel target = $region3
  $region8: #{tpu_custom_call.1} parent=0 // loop_exit
    _

</llo_original>
